<compile_context>
chip_gen: v6e
topology: v6e:2x2x1
jax: 0.10.0
libtpu: 0.0.40
codegen_flags: <defaults>
</compile_context>

<pallas_src>
import functools

import numpy as np
import jax
import jax.numpy as jnp
from jax.experimental import pallas as pl
from jax.experimental.pallas import tpu as pltpu


_EPS = 1e-5
_SLOPE = 0.2
_VMEM_SPEC = pl.BlockSpec(memory_space=pltpu.MemorySpace.VMEM)


def _round_up(x, m):
    return ((x + m - 1) // m) * m


# ----------------------------------------------------------------------------
# Pallas kernel:
#   acc[Cout, W] = sum_q  Wstack[q] @ x_flat[:, off_q : off_q + W]   (MXU, f32 acc)
#   out          = LeakyReLU( BN_or_bias( acc ) )                    (VPU, f32)
# ----------------------------------------------------------------------------
def _make_layer_kernel(offsets, use_bn, use_act, count, width):
    inv_count = 1.0 / float(count)

    def kernel(w_ref, x_ref, m_ref, a_ref, o_ref):
        # In-kernel im2col: statically shifted contiguous lane-slices of the single
        # VMEM-resident flattened input, accumulated on the MXU in f32.
        acc = jnp.dot(w_ref[0], x_ref[:, offsets[0]:offsets[0] + width],
                      preferred_element_type=jnp.float32)
        for q in range(1, len(offsets)):
            off = offsets[q]
            acc = acc + jnp.dot(w_ref[q], x_ref[:, off:off + width],
                                preferred_element_type=jnp.float32)

        aff = a_ref[...]                                    # (Cout, 3) f32
        if use_bn:
            # Single-pass masked batch statistics over valid output pixels only
            # (mask zeroes garbage columns of the flat layout and the lane pad).
            msk = m_ref[...]                                # (1, width), 0/1 f32
            xm = acc * msk
            s1 = jnp.sum(xm, axis=1, keepdims=True) * inv_count        # E[x]
            s2 = jnp.sum(xm * acc, axis=1, keepdims=True) * inv_count  # E[x^2]
            var = s2 - s1 * s1
            acc = (acc - s1) * jax.lax.rsqrt(var + _EPS)
            acc = acc * aff[:, 1:2] + aff[:, 2:3]           # gamma, beta
        else:
            acc = acc + aff[:, 0:1]                         # conv bias
        if use_act:
            acc = jnp.where(acc >= 0, acc, _SLOPE * acc)    # LeakyReLU(0.2)
        o_ref[...] = acc.astype(o_ref.dtype)                # lane-dense bf16 store

    return kernel


def _fused_layer(wstack, x_flat, mask, affine, offsets, use_bn, use_act,
                 count, width):
    cout = wstack.shape[1]
    # Gridless whole-array VMEM blocks: every operand at these shapes is < 100 KiB,
    # so no pipelining / vmem_limit tuning is needed.
    return pl.pallas_call(
        _make_layer_kernel(tuple(offsets), use_bn, use_act, count, width),
        out_shape=jax.ShapeDtypeStruct((cout, width), jnp.bfloat16),
        in_specs=[_VMEM_SPEC, _VMEM_SPEC, _VMEM_SPEC, _VMEM_SPEC],
        out_specs=_VMEM_SPEC,
    )(wstack, x_flat, mask, affine)


# ----------------------------------------------------------------------------
# Per-layer wrapper: pad (+ space-to-depth for stride 2), flatten, call kernel,
# crop the valid output region.  All wrapper ops are activation-sized (bf16).
# ----------------------------------------------------------------------------
def conv_layer(h_cnhw, lyr):
    cin, n, hin, win = h_cnhw.shape
    stride = lyr["stride"]
    xp = jnp.pad(h_cnhw, ((0, 0), (0, 0), (1, 1), (1, 1)))       # pad=1, bf16
    if stride == 2:
        assert hin % 2 == 0 and win % 2 == 0, (hin, win)
        hp, wp = (hin + 2) // 2, (win + 2) // 2
        oh, ow = hin // 2, win // 2
        # space-to-depth: (C,N,2hp,2wp) -> (C*4, N, hp, wp); channel = c*4+ir*2+jr
        x4 = jnp.transpose(xp.reshape(cin, n, hp, 2, wp, 2),
                           (0, 3, 5, 1, 2, 4)).reshape(cin * 4, n, hp, wp)
        keff = 2
    else:
        hp, wp = hin + 2, win + 2
        oh, ow = hin - 1, win - 1
        x4 = xp
        keff = 4

    length = n * hp * wp
    width = _round_up(length, 128)                       # lane-dense output width
    offsets = tuple(i * wp + j for i in range(keff) for j in range(keff))
    lin = _round_up(width + offsets[-1], 128)
    x_flat = jnp.pad(x4.reshape(x4.shape[0], length), ((0, 0), (0, lin - length)))

    # Static validity mask for the flat layout (computed once at trace time).
    p = np.arange(width)
    valid = (p < length) & ((p % wp) < ow) & (((p // wp) % hp) < oh)
    mask = jnp.asarray(valid[None, :].astype(np.float32))
    count = n * oh * ow

    out = _fused_layer(lyr["wstack"], x_flat, mask, lyr["affine"], offsets,
                       lyr["use_bn"], lyr["use_act"], count, width)
    cout = lyr["wstack"].shape[1]
    return out[:, :length].reshape(cout, n, hp, wp)[:, :, :oh, :ow]


# ----------------------------------------------------------------------------
# Parameters (same structure as the PyTorch module; BatchNorm2d => use_bias=False
# for the middle convs).  Weights are pre-packed for the kernel at init time.
# ----------------------------------------------------------------------------
def init_params(key, input_nc, ndf=64, n_layers=3):
    keys = jax.random.split(key, n_layers + 2)

    def make_layer(k, cin, cout, stride, use_bn, use_act, with_bias):
        kw_, kb_ = jax.random.split(k)
        w = 0.02 * jax.random.normal(kw_, (cout, cin, 4, 4), jnp.float32)
        if stride == 2:
            # (cout,cin,2ib+ir,2jb+jr) -> (ib*2+jb, cout, cin*4+ir*2+jr)
            ws = jnp.transpose(w.reshape(cout, cin, 2, 2, 2, 2),
                               (2, 4, 0, 1, 3, 5)).reshape(4, cout, cin * 4)
        else:
            ws = jnp.transpose(w, (2, 3, 0, 1)).reshape(16, cout, cin)
        bias = (0.01 * jax.random.normal(kb_, (cout,), jnp.float32)
                if with_bias else jnp.zeros((cout,), jnp.float32))
        affine = jnp.stack([bias, jnp.ones((cout,), jnp.float32),
                            jnp.zeros((cout,), jnp.float32)], axis=1)
        return dict(w=w, wstack=ws.astype(jnp.bfloat16), affine=affine,
                    stride=stride, use_bn=use_bn, use_act=use_act)

    layers = [make_layer(keys[0], input_nc, ndf, 2, False, True, True)]
    nf_mult = 1
    for n in range(1, n_layers):
        nf_prev, nf_mult = nf_mult, min(2 ** n, 8)
        layers.append(make_layer(keys[n], ndf * nf_prev, ndf * nf_mult, 2,
                                 True, True, False))
    nf_prev, nf_mult = nf_mult, min(2 ** n_layers, 8)
    layers.append(make_layer(keys[n_layers], ndf * nf_prev, ndf * nf_mult, 1,
                             True, True, False))
    layers.append(make_layer(keys[n_layers + 1], ndf * nf_mult, 1, 1,
                             False, False, True))
    return layers


def nlayer_discriminator_forward(x_nchw, layers):
    h = jnp.transpose(x_nchw, (1, 0, 2, 3)).astype(jnp.bfloat16)   # (C,N,H,W) once
    for lyr in layers:
        h = conv_layer(h, lyr)
    return jnp.transpose(h, (1, 0, 2, 3)).astype(jnp.float32)      # NCHW


# ----------------------------------------------------------------------------
# Precision-matched pure-JAX reference (bf16 conv operands, f32 accumulation).
# ----------------------------------------------------------------------------
def _reference_forward(x_nchw, layers):
    h = x_nchw.astype(jnp.bfloat16)
    for lyr in layers:
        w = lyr["w"].astype(jnp.bfloat16)
        out = jax.lax.conv_general_dilated(
            h, w, window_strides=(lyr["stride"],) * 2, padding=((1, 1), (1, 1)),
            dimension_numbers=("NCHW", "OIHW", "NCHW"),
            preferred_element_type=jnp.float32)
        a = lyr["affine"]
        if lyr["use_bn"]:
            mean = jnp.mean(out, axis=(0, 2, 3), keepdims=True)
            var = jnp.mean(jnp.square(out - mean), axis=(0, 2, 3), keepdims=True)
            out = (out - mean) * jax.lax.rsqrt(var + _EPS)
            out = out * a[:, 1].reshape(1, -1, 1, 1) + a[:, 2].reshape(1, -1, 1, 1)
        else:
            out = out + a[:, 0].reshape(1, -1, 1, 1)
        if lyr["use_act"]:
            out = jnp.where(out >= 0, out, _SLOPE * out)
        h = out.astype(jnp.bfloat16)
    return h.astype(jnp.float32)


if __name__ == "__main__":
    key = jax.random.PRNGKey(0)
    kx, kp = jax.random.split(key)

    # n_layers=3 (5 convs, strides 2,2,2,1,1) needs >= ~32px input for a valid map.
    N, C, H, W = 2, 4, 32, 32
    x = jax.random.normal(kx, (N, C, H, W), jnp.float32)
    params = init_params(kp, input_nc=C, ndf=8, n_layers=3)

    fwd = jax.jit(functools.partial(nlayer_discriminator_forward, layers=params))
    out = jax.block_until_ready(fwd(x))

    assert out.shape == (2, 1, 2, 2), out.shape
    assert bool(jnp.all(jnp.isfinite(out)))

    ref = jax.jit(functools.partial(_reference_forward, layers=params))(x)
    err = float(jnp.max(jnp.abs(out - ref)))
    assert err < 5e-2, f"max abs err vs reference = {err}"
    print("KERNEL_OK")
</pallas_src>

<mosaic_0001>
module attributes {stable_mosaic.version = 11 : i64} {
  func.func @kernel(%arg0: memref<4x8x16xbf16, #tpu.memory_space<vmem>>, %arg1: memref<16x768xbf16, #tpu.memory_space<vmem>>, %arg2: memref<1x640xf32, #tpu.memory_space<vmem>>, %arg3: memref<8x3xf32, #tpu.memory_space<vmem>>, %arg4: memref<8x640xbf16, #tpu.memory_space<vmem>>) attributes {dimension_semantics = [], scalar_prefetch = 0 : i64, scratch_operands = 0 : i64, tpu.core_type = #tpu.core_type<tc>} {
    %c0 = arith.constant 0 : index
    %c0_0 = arith.constant 0 : index
    %c0_1 = arith.constant 0 : index
    %0 = vector.load %arg0[%c0, %c0_0, %c0_1] : memref<4x8x16xbf16, #tpu.memory_space<vmem>>, vector<1x8x16xbf16>
    %1 = vector.shape_cast %0 : vector<1x8x16xbf16> to vector<8x16xbf16>
    %c0_2 = arith.constant 0 : index
    %c0_3 = arith.constant 0 : index
    %2 = vector.load %arg1[%c0_2, %c0_3] : memref<16x768xbf16, #tpu.memory_space<vmem>>, vector<16x640xbf16>
    %cst = arith.constant dense<0.000000e+00> : vector<8x640xf32>
    %3 = tpu.matmul %1, %2, %cst {dimension_numbers = #tpu.dot_dimension_numbers<[1], [0], [0], [1], [0, 0, 1, 1], [], []>} : vector<8x16xbf16>, vector<16x640xbf16>, vector<8x640xf32> -> vector<8x640xf32>
    %c1 = arith.constant 1 : index
    %c0_4 = arith.constant 0 : index
    %c0_5 = arith.constant 0 : index
    %4 = vector.load %arg0[%c1, %c0_4, %c0_5] : memref<4x8x16xbf16, #tpu.memory_space<vmem>>, vector<1x8x16xbf16>
    %5 = vector.shape_cast %4 : vector<1x8x16xbf16> to vector<8x16xbf16>
    %c0_6 = arith.constant 0 : index
    %c1_7 = arith.constant 1 : index
    %6 = vector.load %arg1[%c0_6, %c1_7] : memref<16x768xbf16, #tpu.memory_space<vmem>>, vector<16x640xbf16>
    %cst_8 = arith.constant dense<0.000000e+00> : vector<8x640xf32>
    %7 = tpu.matmul %5, %6, %cst_8 {dimension_numbers = #tpu.dot_dimension_numbers<[1], [0], [0], [1], [0, 0, 1, 1], [], []>} : vector<8x16xbf16>, vector<16x640xbf16>, vector<8x640xf32> -> vector<8x640xf32>
    %8 = arith.addf %3, %7 : vector<8x640xf32>
    %c2 = arith.constant 2 : index
    %c0_9 = arith.constant 0 : index
    %c0_10 = arith.constant 0 : index
    %9 = vector.load %arg0[%c2, %c0_9, %c0_10] : memref<4x8x16xbf16, #tpu.memory_space<vmem>>, vector<1x8x16xbf16>
    %10 = vector.shape_cast %9 : vector<1x8x16xbf16> to vector<8x16xbf16>
    %c0_11 = arith.constant 0 : index
    %c17 = arith.constant 17 : index
    %11 = vector.load %arg1[%c0_11, %c17] : memref<16x768xbf16, #tpu.memory_space<vmem>>, vector<16x640xbf16>
    %cst_12 = arith.constant dense<0.000000e+00> : vector<8x640xf32>
    %12 = tpu.matmul %10, %11, %cst_12 {dimension_numbers = #tpu.dot_dimension_numbers<[1], [0], [0], [1], [0, 0, 1, 1], [], []>} : vector<8x16xbf16>, vector<16x640xbf16>, vector<8x640xf32> -> vector<8x640xf32>
    %13 = arith.addf %8, %12 : vector<8x640xf32>
    %c3 = arith.constant 3 : index
    %c0_13 = arith.constant 0 : index
    %c0_14 = arith.constant 0 : index
    %14 = vector.load %arg0[%c3, %c0_13, %c0_14] : memref<4x8x16xbf16, #tpu.memory_space<vmem>>, vector<1x8x16xbf16>
    %15 = vector.shape_cast %14 : vector<1x8x16xbf16> to vector<8x16xbf16>
    %c0_15 = arith.constant 0 : index
    %c18 = arith.constant 18 : index
    %16 = vector.load %arg1[%c0_15, %c18] : memref<16x768xbf16, #tpu.memory_space<vmem>>, vector<16x640xbf16>
    %cst_16 = arith.constant dense<0.000000e+00> : vector<8x640xf32>
    %17 = tpu.matmul %15, %16, %cst_16 {dimension_numbers = #tpu.dot_dimension_numbers<[1], [0], [0], [1], [0, 0, 1, 1], [], []>} : vector<8x16xbf16>, vector<16x640xbf16>, vector<8x640xf32> -> vector<8x640xf32>
    %18 = arith.addf %13, %17 : vector<8x640xf32>
    %c0_17 = arith.constant 0 : index
    %c0_18 = arith.constant 0 : index
    %19 = vector.load %arg3[%c0_17, %c0_18] : memref<8x3xf32, #tpu.memory_space<vmem>>, vector<8x3xf32>
    %20 = vector.extract_strided_slice %19 {offsets = [0, 0], sizes = [8, 1], strides = [1, 1]} : vector<8x3xf32> to vector<8x1xf32>
    %21 = vector.broadcast %20 : vector<8x1xf32> to vector<8x640xf32>
    %22 = arith.addf %18, %21 : vector<8x640xf32>
    %cst_19 = arith.constant 0.000000e+00 : f32
    %23 = vector.broadcast %cst_19 : f32 to vector<8x640xf32>
    %24 = arith.cmpf oge, %22, %23 : vector<8x640xf32>
    %cst_20 = arith.constant 2.000000e-01 : f32
    %25 = vector.broadcast %cst_20 : f32 to vector<8x640xf32>
    %26 = arith.mulf %25, %22 : vector<8x640xf32>
    %27 = arith.select %24, %22, %26 : vector<8x640xi1>, vector<8x640xf32>
    %28 = arith.truncf %27 : vector<8x640xf32> to vector<8x640xbf16>
    %c0_21 = arith.constant 0 : index
    %c0_22 = arith.constant 0 : index
    %29 = vector.load %arg4[%c0_21, %c0_22] : memref<8x640xbf16, #tpu.memory_space<vmem>>, vector<8x640xbf16>
    tpu.vector_store %arg4[%c0_21, %c0_22], %28 {strides = array<i32>} : memref<8x640xbf16, #tpu.memory_space<vmem>>, vector<8x640xbf16>,
    return
  }
}

module attributes {stable_mosaic.version = 11 : i64} {
  func.func @kernel(%arg0: memref<4x16x32xbf16, #tpu.memory_space<vmem>>, %arg1: memref<32x384xbf16, #tpu.memory_space<vmem>>, %arg2: memref<1x256xf32, #tpu.memory_space<vmem>>, %arg3: memref<16x3xf32, #tpu.memory_space<vmem>>, %arg4: memref<16x256xbf16, #tpu.memory_space<vmem>>) attributes {dimension_semantics = [], scalar_prefetch = 0 : i64, scratch_operands = 0 : i64, tpu.core_type = #tpu.core_type<tc>} {
    %c0 = arith.constant 0 : index
    %c0_0 = arith.constant 0 : index
    %c0_1 = arith.constant 0 : index
    %0 = vector.load %arg0[%c0, %c0_0, %c0_1] : memref<4x16x32xbf16, #tpu.memory_space<vmem>>, vector<1x16x32xbf16>
    %1 = vector.shape_cast %0 : vector<1x16x32xbf16> to vector<16x32xbf16>
    %c0_2 = arith.constant 0 : index
    %c0_3 = arith.constant 0 : index
    %2 = vector.load %arg1[%c0_2, %c0_3] : memref<32x384xbf16, #tpu.memory_space<vmem>>, vector<32x256xbf16>
    %cst = arith.constant dense<0.000000e+00> : vector<16x256xf32>
    %3 = tpu.matmul %1, %2, %cst {dimension_numbers = #tpu.dot_dimension_numbers<[1], [0], [0], [1], [0, 0, 1, 1], [], []>} : vector<16x32xbf16>, vector<32x256xbf16>, vector<16x256xf32> -> vector<16x256xf32>
    %c1 = arith.constant 1 : index
    %c0_4 = arith.constant 0 : index
    %c0_5 = arith.constant 0 : index
    %4 = vector.load %arg0[%c1, %c0_4, %c0_5] : memref<4x16x32xbf16, #tpu.memory_space<vmem>>, vector<1x16x32xbf16>
    %5 = vector.shape_cast %4 : vector<1x16x32xbf16> to vector<16x32xbf16>
    %c0_6 = arith.constant 0 : index
    %c1_7 = arith.constant 1 : index
    %6 = vector.load %arg1[%c0_6, %c1_7] : memref<32x384xbf16, #tpu.memory_space<vmem>>, vector<32x256xbf16>
    %cst_8 = arith.constant dense<0.000000e+00> : vector<16x256xf32>
    %7 = tpu.matmul %5, %6, %cst_8 {dimension_numbers = #tpu.dot_dimension_numbers<[1], [0], [0], [1], [0, 0, 1, 1], [], []>} : vector<16x32xbf16>, vector<32x256xbf16>, vector<16x256xf32> -> vector<16x256xf32>
    %8 = arith.addf %3, %7 : vector<16x256xf32>
    %c2 = arith.constant 2 : index
    %c0_9 = arith.constant 0 : index
    %c0_10 = arith.constant 0 : index
    %9 = vector.load %arg0[%c2, %c0_9, %c0_10] : memref<4x16x32xbf16, #tpu.memory_space<vmem>>, vector<1x16x32xbf16>
    %10 = vector.shape_cast %9 : vector<1x16x32xbf16> to vector<16x32xbf16>
    %c0_11 = arith.constant 0 : index
    %c9 = arith.constant 9 : index
    %11 = vector.load %arg1[%c0_11, %c9] : memref<32x384xbf16, #tpu.memory_space<vmem>>, vector<32x256xbf16>
    %cst_12 = arith.constant dense<0.000000e+00> : vector<16x256xf32>
    %12 = tpu.matmul %10, %11, %cst_12 {dimension_numbers = #tpu.dot_dimension_numbers<[1], [0], [0], [1], [0, 0, 1, 1], [], []>} : vector<16x32xbf16>, vector<32x256xbf16>, vector<16x256xf32> -> vector<16x256xf32>
    %13 = arith.addf %8, %12 : vector<16x256xf32>
    %c3 = arith.constant 3 : index
    %c0_13 = arith.constant 0 : index
    %c0_14 = arith.constant 0 : index
    %14 = vector.load %arg0[%c3, %c0_13, %c0_14] : memref<4x16x32xbf16, #tpu.memory_space<vmem>>, vector<1x16x32xbf16>
    %15 = vector.shape_cast %14 : vector<1x16x32xbf16> to vector<16x32xbf16>
    %c0_15 = arith.constant 0 : index
    %c10 = arith.constant 10 : index
    %16 = vector.load %arg1[%c0_15, %c10] : memref<32x384xbf16, #tpu.memory_space<vmem>>, vector<32x256xbf16>
    %cst_16 = arith.constant dense<0.000000e+00> : vector<16x256xf32>
    %17 = tpu.matmul %15, %16, %cst_16 {dimension_numbers = #tpu.dot_dimension_numbers<[1], [0], [0], [1], [0, 0, 1, 1], [], []>} : vector<16x32xbf16>, vector<32x256xbf16>, vector<16x256xf32> -> vector<16x256xf32>
    %18 = arith.addf %13, %17 : vector<16x256xf32>
    %c0_17 = arith.constant 0 : index
    %c0_18 = arith.constant 0 : index
    %19 = vector.load %arg3[%c0_17, %c0_18] : memref<16x3xf32, #tpu.memory_space<vmem>>, vector<16x3xf32>
    %c0_19 = arith.constant 0 : index
    %c0_20 = arith.constant 0 : index
    %20 = vector.load %arg2[%c0_19, %c0_20] : memref<1x256xf32, #tpu.memory_space<vmem>>, vector<1x256xf32>
    %21 = vector.broadcast %20 : vector<1x256xf32> to vector<16x256xf32>
    %22 = arith.mulf %18, %21 : vector<16x256xf32>
    %cst_21 = arith.constant dense<0.000000e+00> : vector<16xf32>
    %23 = vector.multi_reduction <add>, %22, %cst_21 [1] : vector<16x256xf32> to vector<16xf32>
    %24 = vector.shape_cast %23 : vector<16xf32> to vector<16x1xf32>
    %cst_22 = arith.constant 7.812500e-03 : f32
    %25 = vector.broadcast %cst_22 : f32 to vector<16x1xf32>
    %26 = arith.mulf %24, %25 : vector<16x1xf32>
    %27 = arith.mulf %22, %18 : vector<16x256xf32>
    %cst_23 = arith.constant dense<0.000000e+00> : vector<16xf32>
    %28 = vector.multi_reduction <add>, %27, %cst_23 [1] : vector<16x256xf32> to vector<16xf32>
    %29 = vector.shape_cast %28 : vector<16xf32> to vector<16x1xf32>
    %cst_24 = arith.constant 7.812500e-03 : f32
    %30 = vector.broadcast %cst_24 : f32 to vector<16x1xf32>
    %31 = arith.mulf %29, %30 : vector<16x1xf32>
    %32 = arith.mulf %26, %26 : vector<16x1xf32>
    %33 = arith.subf %31, %32 : vector<16x1xf32>
    %34 = vector.broadcast %26 : vector<16x1xf32> to vector<16x256xf32>
    %35 = arith.subf %18, %34 : vector<16x256xf32>
    %cst_25 = arith.constant 9.99999974E-6 : f32
    %36 = vector.broadcast %cst_25 : f32 to vector<16x1xf32>
    %37 = arith.addf %33, %36 : vector<16x1xf32>
    %38 = math.rsqrt %37 : vector<16x1xf32>
    %39 = vector.broadcast %38 : vector<16x1xf32> to vector<16x256xf32>
    %40 = arith.mulf %35, %39 : vector<16x256xf32>
    %41 = vector.extract_strided_slice %19 {offsets = [0, 1], sizes = [16, 1], strides = [1, 1]} : vector<16x3xf32> to vector<16x1xf32>
    %42 = vector.broadcast %41 : vector<16x1xf32> to vector<16x256xf32>
    %43 = arith.mulf %40, %42 : vector<16x256xf32>
    %44 = vector.extract_strided_slice %19 {offsets = [0, 2], sizes = [16, 1], strides = [1, 1]} : vector<16x3xf32> to vector<16x1xf32>
    %45 = vector.broadcast %44 : vector<16x1xf32> to vector<16x256xf32>
    %46 = arith.addf %43, %45 : vector<16x256xf32>
    %cst_26 = arith.constant 0.000000e+00 : f32
    %47 = vector.broadcast %cst_26 : f32 to vector<16x256xf32>
    %48 = arith.cmpf oge, %46, %47 : vector<16x256xf32>
    %cst_27 = arith.constant 2.000000e-01 : f32
    %49 = vector.broadcast %cst_27 : f32 to vector<16x256xf32>
    %50 = arith.mulf %49, %46 : vector<16x256xf32>
    %51 = arith.select %48, %46, %50 : vector<16x256xi1>, vector<16x256xf32>
    %52 = arith.truncf %51 : vector<16x256xf32> to vector<16x256xbf16>
    %c0_28 = arith.constant 0 : index
    %c0_29 = arith.constant 0 : index
    %53 = vector.load %arg4[%c0_28, %c0_29] : memref<16x256xbf16, #tpu.memory_space<vmem>>, vector<16x256xbf16>
    tpu.vector_store %arg4[%c0_28, %c0_29], %52 {strides = array<i32>} : memref<16x256xbf16, #tpu.memory_space<vmem>>, vector<16x256xbf16>,
    return
  }
}

module attributes {stable_mosaic.version = 11 : i64} {
  func.func @kernel(%arg0: memref<4x32x64xbf16, #tpu.memory_space<vmem>>, %arg1: memref<64x256xbf16, #tpu.memory_space<vmem>>, %arg2: memref<1x128xf32, #tpu.memory_space<vmem>>, %arg3: memref<32x3xf32, #tpu.memory_space<vmem>>, %arg4: memref<32x128xbf16, #tpu.memory_space<vmem>>) attributes {dimension_semantics = [], scalar_prefetch = 0 : i64, scratch_operands = 0 : i64, tpu.core_type = #tpu.core_type<tc>} {
    %c0 = arith.constant 0 : index
    %c0_0 = arith.constant 0 : index
    %c0_1 = arith.constant 0 : index
    %0 = vector.load %arg0[%c0, %c0_0, %c0_1] : memref<4x32x64xbf16, #tpu.memory_space<vmem>>, vector<1x32x64xbf16>
    %1 = vector.shape_cast %0 : vector<1x32x64xbf16> to vector<32x64xbf16>
    %c0_2 = arith.constant 0 : index
    %c0_3 = arith.constant 0 : index
    %2 = vector.load %arg1[%c0_2, %c0_3] : memref<64x256xbf16, #tpu.memory_space<vmem>>, vector<64x128xbf16>
    %cst = arith.constant dense<0.000000e+00> : vector<32x128xf32>
    %3 = tpu.matmul %1, %2, %cst {dimension_numbers = #tpu.dot_dimension_numbers<[1], [0], [0], [1], [0, 0, 1, 1], [], []>} : vector<32x64xbf16>, vector<64x128xbf16>, vector<32x128xf32> -> vector<32x128xf32>
    %c1 = arith.constant 1 : index
    %c0_4 = arith.constant 0 : index
    %c0_5 = arith.constant 0 : index
    %4 = vector.load %arg0[%c1, %c0_4, %c0_5] : memref<4x32x64xbf16, #tpu.memory_space<vmem>>, vector<1x32x64xbf16>
    %5 = vector.shape_cast %4 : vector<1x32x64xbf16> to vector<32x64xbf16>
    %c0_6 = arith.constant 0 : index
    %c1_7 = arith.constant 1 : index
    %6 = vector.load %arg1[%c0_6, %c1_7] : memref<64x256xbf16, #tpu.memory_space<vmem>>, vector<64x128xbf16>
    %cst_8 = arith.constant dense<0.000000e+00> : vector<32x128xf32>
    %7 = tpu.matmul %5, %6, %cst_8 {dimension_numbers = #tpu.dot_dimension_numbers<[1], [0], [0], [1], [0, 0, 1, 1], [], []>} : vector<32x64xbf16>, vector<64x128xbf16>, vector<32x128xf32> -> vector<32x128xf32>
    %8 = arith.addf %3, %7 : vector<32x128xf32>
    %c2 = arith.constant 2 : index
    %c0_9 = arith.constant 0 : index
    %c0_10 = arith.constant 0 : index
    %9 = vector.load %arg0[%c2, %c0_9, %c0_10] : memref<4x32x64xbf16, #tpu.memory_space<vmem>>, vector<1x32x64xbf16>
    %10 = vector.shape_cast %9 : vector<1x32x64xbf16> to vector<32x64xbf16>
    %c0_11 = arith.constant 0 : index
    %c5 = arith.constant 5 : index
    %11 = vector.load %arg1[%c0_11, %c5] : memref<64x256xbf16, #tpu.memory_space<vmem>>, vector<64x128xbf16>
    %cst_12 = arith.constant dense<0.000000e+00> : vector<32x128xf32>
    %12 = tpu.matmul %10, %11, %cst_12 {dimension_numbers = #tpu.dot_dimension_numbers<[1], [0], [0], [1], [0, 0, 1, 1], [], []>} : vector<32x64xbf16>, vector<64x128xbf16>, vector<32x128xf32> -> vector<32x128xf32>
    %13 = arith.addf %8, %12 : vector<32x128xf32>
    %c3 = arith.constant 3 : index
    %c0_13 = arith.constant 0 : index
    %c0_14 = arith.constant 0 : index
    %14 = vector.load %arg0[%c3, %c0_13, %c0_14] : memref<4x32x64xbf16, #tpu.memory_space<vmem>>, vector<1x32x64xbf16>
    %15 = vector.shape_cast %14 : vector<1x32x64xbf16> to vector<32x64xbf16>
    %c0_15 = arith.constant 0 : index
    %c6 = arith.constant 6 : index
    %16 = vector.load %arg1[%c0_15, %c6] : memref<64x256xbf16, #tpu.memory_space<vmem>>, vector<64x128xbf16>
    %cst_16 = arith.constant dense<0.000000e+00> : vector<32x128xf32>
    %17 = tpu.matmul %15, %16, %cst_16 {dimension_numbers = #tpu.dot_dimension_numbers<[1], [0], [0], [1], [0, 0, 1, 1], [], []>} : vector<32x64xbf16>, vector<64x128xbf16>, vector<32x128xf32> -> vector<32x128xf32>
    %18 = arith.addf %13, %17 : vector<32x128xf32>
    %c0_17 = arith.constant 0 : index
    %c0_18 = arith.constant 0 : index
    %19 = vector.load %arg3[%c0_17, %c0_18] : memref<32x3xf32, #tpu.memory_space<vmem>>, vector<32x3xf32>
    %c0_19 = arith.constant 0 : index
    %c0_20 = arith.constant 0 : index
    %20 = vector.load %arg2[%c0_19, %c0_20] : memref<1x128xf32, #tpu.memory_space<vmem>>, vector<1x128xf32>
    %21 = vector.broadcast %20 : vector<1x128xf32> to vector<32x128xf32>
    %22 = arith.mulf %18, %21 : vector<32x128xf32>
    %cst_21 = arith.constant dense<0.000000e+00> : vector<32xf32>
    %23 = vector.multi_reduction <add>, %22, %cst_21 [1] : vector<32x128xf32> to vector<32xf32>
    %24 = vector.shape_cast %23 : vector<32xf32> to vector<32x1xf32>
    %cst_22 = arith.constant 3.125000e-02 : f32
    %25 = vector.broadcast %cst_22 : f32 to vector<32x1xf32>
    %26 = arith.mulf %24, %25 : vector<32x1xf32>
    %27 = arith.mulf %22, %18 : vector<32x128xf32>
    %cst_23 = arith.constant dense<0.000000e+00> : vector<32xf32>
    %28 = vector.multi_reduction <add>, %27, %cst_23 [1] : vector<32x128xf32> to vector<32xf32>
    %29 = vector.shape_cast %28 : vector<32xf32> to vector<32x1xf32>
    %cst_24 = arith.constant 3.125000e-02 : f32
    %30 = vector.broadcast %cst_24 : f32 to vector<32x1xf32>
    %31 = arith.mulf %29, %30 : vector<32x1xf32>
    %32 = arith.mulf %26, %26 : vector<32x1xf32>
    %33 = arith.subf %31, %32 : vector<32x1xf32>
    %34 = vector.broadcast %26 : vector<32x1xf32> to vector<32x128xf32>
    %35 = arith.subf %18, %34 : vector<32x128xf32>
    %cst_25 = arith.constant 9.99999974E-6 : f32
    %36 = vector.broadcast %cst_25 : f32 to vector<32x1xf32>
    %37 = arith.addf %33, %36 : vector<32x1xf32>
    %38 = math.rsqrt %37 : vector<32x1xf32>
    %39 = vector.broadcast %38 : vector<32x1xf32> to vector<32x128xf32>
    %40 = arith.mulf %35, %39 : vector<32x128xf32>
    %41 = vector.extract_strided_slice %19 {offsets = [0, 1], sizes = [32, 1], strides = [1, 1]} : vector<32x3xf32> to vector<32x1xf32>
    %42 = vector.broadcast %41 : vector<32x1xf32> to vector<32x128xf32>
    %43 = arith.mulf %40, %42 : vector<32x128xf32>
    %44 = vector.extract_strided_slice %19 {offsets = [0, 2], sizes = [32, 1], strides = [1, 1]} : vector<32x3xf32> to vector<32x1xf32>
    %45 = vector.broadcast %44 : vector<32x1xf32> to vector<32x128xf32>
    %46 = arith.addf %43, %45 : vector<32x128xf32>
    %cst_26 = arith.constant 0.000000e+00 : f32
    %47 = vector.broadcast %cst_26 : f32 to vector<32x128xf32>
    %48 = arith.cmpf oge, %46, %47 : vector<32x128xf32>
    %cst_27 = arith.constant 2.000000e-01 : f32
    %49 = vector.broadcast %cst_27 : f32 to vector<32x128xf32>
    %50 = arith.mulf %49, %46 : vector<32x128xf32>
    %51 = arith.select %48, %46, %50 : vector<32x128xi1>, vector<32x128xf32>
    %52 = arith.truncf %51 : vector<32x128xf32> to vector<32x128xbf16>
    %c0_28 = arith.constant 0 : index
    %c0_29 = arith.constant 0 : index
    %53 = vector.load %arg4[%c0_28, %c0_29] : memref<32x128xbf16, #tpu.memory_space<vmem>>, vector<32x128xbf16>
    tpu.vector_store %arg4[%c0_28, %c0_29], %52 {strides = array<i32>} : memref<32x128xbf16, #tpu.memory_space<vmem>>, vector<32x128xbf16>,
    return
  }
}

module attributes {stable_mosaic.version = 11 : i64} {
  func.func @kernel(%arg0: memref<16x64x32xbf16, #tpu.memory_space<vmem>>, %arg1: memref<32x256xbf16, #tpu.memory_space<vmem>>, %arg2: memref<1x128xf32, #tpu.memory_space<vmem>>, %arg3: memref<64x3xf32, #tpu.memory_space<vmem>>, %arg4: memref<64x128xbf16, #tpu.memory_space<vmem>>) attributes {dimension_semantics = [], scalar_prefetch = 0 : i64, scratch_operands = 0 : i64, tpu.core_type = #tpu.core_type<tc>} {
    %c0 = arith.constant 0 : index
    %c0_0 = arith.constant 0 : index
    %c0_1 = arith.constant 0 : index
    %0 = vector.load %arg0[%c0, %c0_0, %c0_1] : memref<16x64x32xbf16, #tpu.memory_space<vmem>>, vector<1x64x32xbf16>
    %1 = vector.shape_cast %0 : vector<1x64x32xbf16> to vector<64x32xbf16>
    %c0_2 = arith.constant 0 : index
    %c0_3 = arith.constant 0 : index
    %2 = vector.load %arg1[%c0_2, %c0_3] : memref<32x256xbf16, #tpu.memory_space<vmem>>, vector<32x128xbf16>
    %cst = arith.constant dense<0.000000e+00> : vector<64x128xf32>
    %3 = tpu.matmul %1, %2, %cst {dimension_numbers = #tpu.dot_dimension_numbers<[1], [0], [0], [1], [0, 0, 1, 1], [], []>} : vector<64x32xbf16>, vector<32x128xbf16>, vector<64x128xf32> -> vector<64x128xf32>
    %c1 = arith.constant 1 : index
    %c0_4 = arith.constant 0 : index
    %c0_5 = arith.constant 0 : index
    %4 = vector.load %arg0[%c1, %c0_4, %c0_5] : memref<16x64x32xbf16, #tpu.memory_space<vmem>>, vector<1x64x32xbf16>
    %5 = vector.shape_cast %4 : vector<1x64x32xbf16> to vector<64x32xbf16>
    %c0_6 = arith.constant 0 : index
    %c1_7 = arith.constant 1 : index
    %6 = vector.load %arg1[%c0_6, %c1_7] : memref<32x256xbf16, #tpu.memory_space<vmem>>, vector<32x128xbf16>
    %cst_8 = arith.constant dense<0.000000e+00> : vector<64x128xf32>
    %7 = tpu.matmul %5, %6, %cst_8 {dimension_numbers = #tpu.dot_dimension_numbers<[1], [0], [0], [1], [0, 0, 1, 1], [], []>} : vector<64x32xbf16>, vector<32x128xbf16>, vector<64x128xf32> -> vector<64x128xf32>
    %8 = arith.addf %3, %7 : vector<64x128xf32>
    %c2 = arith.constant 2 : index
    %c0_9 = arith.constant 0 : index
    %c0_10 = arith.constant 0 : index
    %9 = vector.load %arg0[%c2, %c0_9, %c0_10] : memref<16x64x32xbf16, #tpu.memory_space<vmem>>, vector<1x64x32xbf16>
    %10 = vector.shape_cast %9 : vector<1x64x32xbf16> to vector<64x32xbf16>
    %c0_11 = arith.constant 0 : index
    %c2_12 = arith.constant 2 : index
    %11 = vector.load %arg1[%c0_11, %c2_12] : memref<32x256xbf16, #tpu.memory_space<vmem>>, vector<32x128xbf16>
    %cst_13 = arith.constant dense<0.000000e+00> : vector<64x128xf32>
    %12 = tpu.matmul %10, %11, %cst_13 {dimension_numbers = #tpu.dot_dimension_numbers<[1], [0], [0], [1], [0, 0, 1, 1], [], []>} : vector<64x32xbf16>, vector<32x128xbf16>, vector<64x128xf32> -> vector<64x128xf32>
    %13 = arith.addf %8, %12 : vector<64x128xf32>
    %c3 = arith.constant 3 : index
    %c0_14 = arith.constant 0 : index
    %c0_15 = arith.constant 0 : index
    %14 = vector.load %arg0[%c3, %c0_14, %c0_15] : memref<16x64x32xbf16, #tpu.memory_space<vmem>>, vector<1x64x32xbf16>
    %15 = vector.shape_cast %14 : vector<1x64x32xbf16> to vector<64x32xbf16>
    %c0_16 = arith.constant 0 : index
    %c3_17 = arith.constant 3 : index
    %16 = vector.load %arg1[%c0_16, %c3_17] : memref<32x256xbf16, #tpu.memory_space<vmem>>, vector<32x128xbf16>
    %cst_18 = arith.constant dense<0.000000e+00> : vector<64x128xf32>
    %17 = tpu.matmul %15, %16, %cst_18 {dimension_numbers = #tpu.dot_dimension_numbers<[1], [0], [0], [1], [0, 0, 1, 1], [], []>} : vector<64x32xbf16>, vector<32x128xbf16>, vector<64x128xf32> -> vector<64x128xf32>
    %18 = arith.addf %13, %17 : vector<64x128xf32>
    %c4 = arith.constant 4 : index
    %c0_19 = arith.constant 0 : index
    %c0_20 = arith.constant 0 : index
    %19 = vector.load %arg0[%c4, %c0_19, %c0_20] : memref<16x64x32xbf16, #tpu.memory_space<vmem>>, vector<1x64x32xbf16>
    %20 = vector.shape_cast %19 : vector<1x64x32xbf16> to vector<64x32xbf16>
    %c0_21 = arith.constant 0 : index
    %c6 = arith.constant 6 : index
    %21 = vector.load %arg1[%c0_21, %c6] : memref<32x256xbf16, #tpu.memory_space<vmem>>, vector<32x128xbf16>
    %cst_22 = arith.constant dense<0.000000e+00> : vector<64x128xf32>
    %22 = tpu.matmul %20, %21, %cst_22 {dimension_numbers = #tpu.dot_dimension_numbers<[1], [0], [0], [1], [0, 0, 1, 1], [], []>} : vector<64x32xbf16>, vector<32x128xbf16>, vector<64x128xf32> -> vector<64x128xf32>
    %23 = arith.addf %18, %22 : vector<64x128xf32>
    %c5 = arith.constant 5 : index
    %c0_23 = arith.constant 0 : index
    %c0_24 = arith.constant 0 : index
    %24 = vector.load %arg0[%c5, %c0_23, %c0_24] : memref<16x64x32xbf16, #tpu.memory_space<vmem>>, vector<1x64x32xbf16>
    %25 = vector.shape_cast %24 : vector<1x64x32xbf16> to vector<64x32xbf16>
    %c0_25 = arith.constant 0 : index
    %c7 = arith.constant 7 : index
    %26 = vector.load %arg1[%c0_25, %c7] : memref<32x256xbf16, #tpu.memory_space<vmem>>, vector<32x128xbf16>
    %cst_26 = arith.constant dense<0.000000e+00> : vector<64x128xf32>
    %27 = tpu.matmul %25, %26, %cst_26 {dimension_numbers = #tpu.dot_dimension_numbers<[1], [0], [0], [1], [0, 0, 1, 1], [], []>} : vector<64x32xbf16>, vector<32x128xbf16>, vector<64x128xf32> -> vector<64x128xf32>
    %28 = arith.addf %23, %27 : vector<64x128xf32>
    %c6_27 = arith.constant 6 : index
    %c0_28 = arith.constant 0 : index
    %c0_29 = arith.constant 0 : index
    %29 = vector.load %arg0[%c6_27, %c0_28, %c0_29] : memref<16x64x32xbf16, #tpu.memory_space<vmem>>, vector<1x64x32xbf16>
    %30 = vector.shape_cast %29 : vector<1x64x32xbf16> to vector<64x32xbf16>
    %c0_30 = arith.constant 0 : index
    %c8 = arith.constant 8 : index
    %31 = vector.load %arg1[%c0_30, %c8] : memref<32x256xbf16, #tpu.memory_space<vmem>>, vector<32x128xbf16>
    %cst_31 = arith.constant dense<0.000000e+00> : vector<64x128xf32>
    %32 = tpu.matmul %30, %31, %cst_31 {dimension_numbers = #tpu.dot_dimension_numbers<[1], [0], [0], [1], [0, 0, 1, 1], [], []>} : vector<64x32xbf16>, vector<32x128xbf16>, vector<64x128xf32> -> vector<64x128xf32>
    %33 = arith.addf %28, %32 : vector<64x128xf32>
    %c7_32 = arith.constant 7 : index
    %c0_33 = arith.constant 0 : index
    %c0_34 = arith.constant 0 : index
    %34 = vector.load %arg0[%c7_32, %c0_33, %c0_34] : memref<16x64x32xbf16, #tpu.memory_space<vmem>>, vector<1x64x32xbf16>
    %35 = vector.shape_cast %34 : vector<1x64x32xbf16> to vector<64x32xbf16>
    %c0_35 = arith.constant 0 : index
    %c9 = arith.constant 9 : index
    %36 = vector.load %arg1[%c0_35, %c9] : memref<32x256xbf16, #tpu.memory_space<vmem>>, vector<32x128xbf16>
    %cst_36 = arith.constant dense<0.000000e+00> : vector<64x128xf32>
    %37 = tpu.matmul %35, %36, %cst_36 {dimension_numbers = #tpu.dot_dimension_numbers<[1], [0], [0], [1], [0, 0, 1, 1], [], []>} : vector<64x32xbf16>, vector<32x128xbf16>, vector<64x128xf32> -> vector<64x128xf32>
    %38 = arith.addf %33, %37 : vector<64x128xf32>
    %c8_37 = arith.constant 8 : index
    %c0_38 = arith.constant 0 : index
    %c0_39 = arith.constant 0 : index
    %39 = vector.load %arg0[%c8_37, %c0_38, %c0_39] : memref<16x64x32xbf16, #tpu.memory_space<vmem>>, vector<1x64x32xbf16>
    %40 = vector.shape_cast %39 : vector<1x64x32xbf16> to vector<64x32xbf16>
    %c0_40 = arith.constant 0 : index
    %c12 = arith.constant 12 : index
    %41 = vector.load %arg1[%c0_40, %c12] : memref<32x256xbf16, #tpu.memory_space<vmem>>, vector<32x128xbf16>
    %cst_41 = arith.constant dense<0.000000e+00> : vector<64x128xf32>
    %42 = tpu.matmul %40, %41, %cst_41 {dimension_numbers = #tpu.dot_dimension_numbers<[1], [0], [0], [1], [0, 0, 1, 1], [], []>} : vector<64x32xbf16>, vector<32x128xbf16>, vector<64x128xf32> -> vector<64x128xf32>
    %43 = arith.addf %38, %42 : vector<64x128xf32>
    %c9_42 = arith.constant 9 : index
    %c0_43 = arith.constant 0 : index
    %c0_44 = arith.constant 0 : index
    %44 = vector.load %arg0[%c9_42, %c0_43, %c0_44] : memref<16x64x32xbf16, #tpu.memory_space<vmem>>, vector<1x64x32xbf16>
    %45 = vector.shape_cast %44 : vector<1x64x32xbf16> to vector<64x32xbf16>
    %c0_45 = arith.constant 0 : index
    %c13 = arith.constant 13 : index
    %46 = vector.load %arg1[%c0_45, %c13] : memref<32x256xbf16, #tpu.memory_space<vmem>>, vector<32x128xbf16>
    %cst_46 = arith.constant dense<0.000000e+00> : vector<64x128xf32>
    %47 = tpu.matmul %45, %46, %cst_46 {dimension_numbers = #tpu.dot_dimension_numbers<[1], [0], [0], [1], [0, 0, 1, 1], [], []>} : vector<64x32xbf16>, vector<32x128xbf16>, vector<64x128xf32> -> vector<64x128xf32>
    %48 = arith.addf %43, %47 : vector<64x128xf32>
    %c10 = arith.constant 10 : index
    %c0_47 = arith.constant 0 : index
    %c0_48 = arith.constant 0 : index
    %49 = vector.load %arg0[%c10, %c0_47, %c0_48] : memref<16x64x32xbf16, #tpu.memory_space<vmem>>, vector<1x64x32xbf16>
    %50 = vector.shape_cast %49 : vector<1x64x32xbf16> to vector<64x32xbf16>
    %c0_49 = arith.constant 0 : index
    %c14 = arith.constant 14 : index
    %51 = vector.load %arg1[%c0_49, %c14] : memref<32x256xbf16, #tpu.memory_space<vmem>>, vector<32x128xbf16>
    %cst_50 = arith.constant dense<0.000000e+00> : vector<64x128xf32>
    %52 = tpu.matmul %50, %51, %cst_50 {dimension_numbers = #tpu.dot_dimension_numbers<[1], [0], [0], [1], [0, 0, 1, 1], [], []>} : vector<64x32xbf16>, vector<32x128xbf16>, vector<64x128xf32> -> vector<64x128xf32>
    %53 = arith.addf %48, %52 : vector<64x128xf32>
    %c11 = arith.constant 11 : index
    %c0_51 = arith.constant 0 : index
    %c0_52 = arith.constant 0 : index
    %54 = vector.load %arg0[%c11, %c0_51, %c0_52] : memref<16x64x32xbf16, #tpu.memory_space<vmem>>, vector<1x64x32xbf16>
    %55 = vector.shape_cast %54 : vector<1x64x32xbf16> to vector<64x32xbf16>
    %c0_53 = arith.constant 0 : index
    %c15 = arith.constant 15 : index
    %56 = vector.load %arg1[%c0_53, %c15] : memref<32x256xbf16, #tpu.memory_space<vmem>>, vector<32x128xbf16>
    %cst_54 = arith.constant dense<0.000000e+00> : vector<64x128xf32>
    %57 = tpu.matmul %55, %56, %cst_54 {dimension_numbers = #tpu.dot_dimension_numbers<[1], [0], [0], [1], [0, 0, 1, 1], [], []>} : vector<64x32xbf16>, vector<32x128xbf16>, vector<64x128xf32> -> vector<64x128xf32>
    %58 = arith.addf %53, %57 : vector<64x128xf32>
    %c12_55 = arith.constant 12 : index
    %c0_56 = arith.constant 0 : index
    %c0_57 = arith.constant 0 : index
    %59 = vector.load %arg0[%c12_55, %c0_56, %c0_57] : memref<16x64x32xbf16, #tpu.memory_space<vmem>>, vector<1x64x32xbf16>
    %60 = vector.shape_cast %59 : vector<1x64x32xbf16> to vector<64x32xbf16>
    %c0_58 = arith.constant 0 : index
    %c18 = arith.constant 18 : index
    %61 = vector.load %arg1[%c0_58, %c18] : memref<32x256xbf16, #tpu.memory_space<vmem>>, vector<32x128xbf16>
    %cst_59 = arith.constant dense<0.000000e+00> : vector<64x128xf32>
    %62 = tpu.matmul %60, %61, %cst_59 {dimension_numbers = #tpu.dot_dimension_numbers<[1], [0], [0], [1], [0, 0, 1, 1], [], []>} : vector<64x32xbf16>, vector<32x128xbf16>, vector<64x128xf32> -> vector<64x128xf32>
    %63 = arith.addf %58, %62 : vector<64x128xf32>
    %c13_60 = arith.constant 13 : index
    %c0_61 = arith.constant 0 : index
    %c0_62 = arith.constant 0 : index
    %64 = vector.load %arg0[%c13_60, %c0_61, %c0_62] : memref<16x64x32xbf16, #tpu.memory_space<vmem>>, vector<1x64x32xbf16>
    %65 = vector.shape_cast %64 : vector<1x64x32xbf16> to vector<64x32xbf16>
    %c0_63 = arith.constant 0 : index
    %c19 = arith.constant 19 : index
    %66 = vector.load %arg1[%c0_63, %c19] : memref<32x256xbf16, #tpu.memory_space<vmem>>, vector<32x128xbf16>
    %cst_64 = arith.constant dense<0.000000e+00> : vector<64x128xf32>
    %67 = tpu.matmul %65, %66, %cst_64 {dimension_numbers = #tpu.dot_dimension_numbers<[1], [0], [0], [1], [0, 0, 1, 1], [], []>} : vector<64x32xbf16>, vector<32x128xbf16>, vector<64x128xf32> -> vector<64x128xf32>
    %68 = arith.addf %63, %67 : vector<64x128xf32>
    %c14_65 = arith.constant 14 : index
    %c0_66 = arith.constant 0 : index
    %c0_67 = arith.constant 0 : index
    %69 = vector.load %arg0[%c14_65, %c0_66, %c0_67] : memref<16x64x32xbf16, #tpu.memory_space<vmem>>, vector<1x64x32xbf16>
    %70 = vector.shape_cast %69 : vector<1x64x32xbf16> to vector<64x32xbf16>
    %c0_68 = arith.constant 0 : index
    %c20 = arith.constant 20 : index
    %71 = vector.load %arg1[%c0_68, %c20] : memref<32x256xbf16, #tpu.memory_space<vmem>>, vector<32x128xbf16>
    %cst_69 = arith.constant dense<0.000000e+00> : vector<64x128xf32>
    %72 = tpu.matmul %70, %71, %cst_69 {dimension_numbers = #tpu.dot_dimension_numbers<[1], [0], [0], [1], [0, 0, 1, 1], [], []>} : vector<64x32xbf16>, vector<32x128xbf16>, vector<64x128xf32> -> vector<64x128xf32>
    %73 = arith.addf %68, %72 : vector<64x128xf32>
    %c15_70 = arith.constant 15 : index
    %c0_71 = arith.constant 0 : index
    %c0_72 = arith.constant 0 : index
    %74 = vector.load %arg0[%c15_70, %c0_71, %c0_72] : memref<16x64x32xbf16, #tpu.memory_space<vmem>>, vector<1x64x32xbf16>
    %75 = vector.shape_cast %74 : vector<1x64x32xbf16> to vector<64x32xbf16>
    %c0_73 = arith.constant 0 : index
    %c21 = arith.constant 21 : index
    %76 = vector.load %arg1[%c0_73, %c21] : memref<32x256xbf16, #tpu.memory_space<vmem>>, vector<32x128xbf16>
    %cst_74 = arith.constant dense<0.000000e+00> : vector<64x128xf32>
    %77 = tpu.matmul %75, %76, %cst_74 {dimension_numbers = #tpu.dot_dimension_numbers<[1], [0], [0], [1], [0, 0, 1, 1], [], []>} : vector<64x32xbf16>, vector<32x128xbf16>, vector<64x128xf32> -> vector<64x128xf32>
    %78 = arith.addf %73, %77 : vector<64x128xf32>
    %c0_75 = arith.constant 0 : index
    %c0_76 = arith.constant 0 : index
    %79 = vector.load %arg3[%c0_75, %c0_76] : memref<64x3xf32, #tpu.memory_space<vmem>>, vector<64x3xf32>
    %c0_77 = arith.constant 0 : index
    %c0_78 = arith.constant 0 : index
    %80 = vector.load %arg2[%c0_77, %c0_78] : memref<1x128xf32, #tpu.memory_space<vmem>>, vector<1x128xf32>
    %81 = vector.broadcast %80 : vector<1x128xf32> to vector<64x128xf32>
    %82 = arith.mulf %78, %81 : vector<64x128xf32>
    %cst_79 = arith.constant dense<0.000000e+00> : vector<64xf32>
    %83 = vector.multi_reduction <add>, %82, %cst_79 [1] : vector<64x128xf32> to vector<64xf32>
    %84 = vector.shape_cast %83 : vector<64xf32> to vector<64x1xf32>
    %cst_80 = arith.constant 0.055555556 : f32
    %85 = vector.broadcast %cst_80 : f32 to vector<64x1xf32>
    %86 = arith.mulf %84, %85 : vector<64x1xf32>
    %87 = arith.mulf %82, %78 : vector<64x128xf32>
    %cst_81 = arith.constant dense<0.000000e+00> : vector<64xf32>
    %88 = vector.multi_reduction <add>, %87, %cst_81 [1] : vector<64x128xf32> to vector<64xf32>
    %89 = vector.shape_cast %88 : vector<64xf32> to vector<64x1xf32>
    %cst_82 = arith.constant 0.055555556 : f32
    %90 = vector.broadcast %cst_82 : f32 to vector<64x1xf32>
    %91 = arith.mulf %89, %90 : vector<64x1xf32>
    %92 = arith.mulf %86, %86 : vector<64x1xf32>
    %93 = arith.subf %91, %92 : vector<64x1xf32>
    %94 = vector.broadcast %86 : vector<64x1xf32> to vector<64x128xf32>
    %95 = arith.subf %78, %94 : vector<64x128xf32>
    %cst_83 = arith.constant 9.99999974E-6 : f32
    %96 = vector.broadcast %cst_83 : f32 to vector<64x1xf32>
    %97 = arith.addf %93, %96 : vector<64x1xf32>
    %98 = math.rsqrt %97 : vector<64x1xf32>
    %99 = vector.broadcast %98 : vector<64x1xf32> to vector<64x128xf32>
    %100 = arith.mulf %95, %99 : vector<64x128xf32>
    %101 = vector.extract_strided_slice %79 {offsets = [0, 1], sizes = [64, 1], strides = [1, 1]} : vector<64x3xf32> to vector<64x1xf32>
    %102 = vector.broadcast %101 : vector<64x1xf32> to vector<64x128xf32>
    %103 = arith.mulf %100, %102 : vector<64x128xf32>
    %104 = vector.extract_strided_slice %79 {offsets = [0, 2], sizes = [64, 1], strides = [1, 1]} : vector<64x3xf32> to vector<64x1xf32>
    %105 = vector.broadcast %104 : vector<64x1xf32> to vector<64x128xf32>
    %106 = arith.addf %103, %105 : vector<64x128xf32>
    %cst_84 = arith.constant 0.000000e+00 : f32
    %107 = vector.broadcast %cst_84 : f32 to vector<64x128xf32>
    %108 = arith.cmpf oge, %106, %107 : vector<64x128xf32>
    %cst_85 = arith.constant 2.000000e-01 : f32
    %109 = vector.broadcast %cst_85 : f32 to vector<64x128xf32>
    %110 = arith.mulf %109, %106 : vector<64x128xf32>
    %111 = arith.select %108, %106, %110 : vector<64x128xi1>, vector<64x128xf32>
    %112 = arith.truncf %111 : vector<64x128xf32> to vector<64x128xbf16>
    %c0_86 = arith.constant 0 : index
    %c0_87 = arith.constant 0 : index
    %113 = vector.load %arg4[%c0_86, %c0_87] : memref<64x128xbf16, #tpu.memory_space<vmem>>, vector<64x128xbf16>
    tpu.vector_store %arg4[%c0_86, %c0_87], %112 {strides = array<i32>} : memref<64x128xbf16, #tpu.memory_space<vmem>>, vector<64x128xbf16>,
    return
  }
}

module attributes {stable_mosaic.version = 11 : i64} {
  func.func @kernel(%arg0: memref<16x1x64xbf16, #tpu.memory_space<vmem>>, %arg1: memref<64x256xbf16, #tpu.memory_space<vmem>>, %arg2: memref<1x128xf32, #tpu.memory_space<vmem>>, %arg3: memref<1x3xf32, #tpu.memory_space<vmem>>, %arg4: memref<1x128xbf16, #tpu.memory_space<vmem>>) attributes {dimension_semantics = [], scalar_prefetch = 0 : i64, scratch_operands = 0 : i64, tpu.core_type = #tpu.core_type<tc>} {
    %c0 = arith.constant 0 : index
    %c0_0 = arith.constant 0 : index
    %c0_1 = arith.constant 0 : index
    %0 = vector.load %arg0[%c0, %c0_0, %c0_1] : memref<16x1x64xbf16, #tpu.memory_space<vmem>>, vector<1x1x64xbf16>
    %1 = vector.shape_cast %0 : vector<1x1x64xbf16> to vector<1x64xbf16>
    %c0_2 = arith.constant 0 : index
    %c0_3 = arith.constant 0 : index
    %2 = vector.load %arg1[%c0_2, %c0_3] : memref<64x256xbf16, #tpu.memory_space<vmem>>, vector<64x128xbf16>
    %cst = arith.constant dense<0.000000e+00> : vector<1x128xf32>
    %3 = tpu.matmul %1, %2, %cst {dimension_numbers = #tpu.dot_dimension_numbers<[1], [0], [0], [1], [0, 0, 1, 1], [], []>} : vector<1x64xbf16>, vector<64x128xbf16>, vector<1x128xf32> -> vector<1x128xf32>
    %c1 = arith.constant 1 : index
    %c0_4 = arith.constant 0 : index
    %c0_5 = arith.constant 0 : index
    %4 = vector.load %arg0[%c1, %c0_4, %c0_5] : memref<16x1x64xbf16, #tpu.memory_space<vmem>>, vector<1x1x64xbf16>
    %5 = vector.shape_cast %4 : vector<1x1x64xbf16> to vector<1x64xbf16>
    %c0_6 = arith.constant 0 : index
    %c1_7 = arith.constant 1 : index
    %6 = vector.load %arg1[%c0_6, %c1_7] : memref<64x256xbf16, #tpu.memory_space<vmem>>, vector<64x128xbf16>
    %cst_8 = arith.constant dense<0.000000e+00> : vector<1x128xf32>
    %7 = tpu.matmul %5, %6, %cst_8 {dimension_numbers = #tpu.dot_dimension_numbers<[1], [0], [0], [1], [0, 0, 1, 1], [], []>} : vector<1x64xbf16>, vector<64x128xbf16>, vector<1x128xf32> -> vector<1x128xf32>
    %8 = arith.addf %3, %7 : vector<1x128xf32>
    %c2 = arith.constant 2 : index
    %c0_9 = arith.constant 0 : index
    %c0_10 = arith.constant 0 : index
    %9 = vector.load %arg0[%c2, %c0_9, %c0_10] : memref<16x1x64xbf16, #tpu.memory_space<vmem>>, vector<1x1x64xbf16>
    %10 = vector.shape_cast %9 : vector<1x1x64xbf16> to vector<1x64xbf16>
    %c0_11 = arith.constant 0 : index
    %c2_12 = arith.constant 2 : index
    %11 = vector.load %arg1[%c0_11, %c2_12] : memref<64x256xbf16, #tpu.memory_space<vmem>>, vector<64x128xbf16>
    %cst_13 = arith.constant dense<0.000000e+00> : vector<1x128xf32>
    %12 = tpu.matmul %10, %11, %cst_13 {dimension_numbers = #tpu.dot_dimension_numbers<[1], [0], [0], [1], [0, 0, 1, 1], [], []>} : vector<1x64xbf16>, vector<64x128xbf16>, vector<1x128xf32> -> vector<1x128xf32>
    %13 = arith.addf %8, %12 : vector<1x128xf32>
    %c3 = arith.constant 3 : index
    %c0_14 = arith.constant 0 : index
    %c0_15 = arith.constant 0 : index
    %14 = vector.load %arg0[%c3, %c0_14, %c0_15] : memref<16x1x64xbf16, #tpu.memory_space<vmem>>, vector<1x1x64xbf16>
    %15 = vector.shape_cast %14 : vector<1x1x64xbf16> to vector<1x64xbf16>
    %c0_16 = arith.constant 0 : index
    %c3_17 = arith.constant 3 : index
    %16 = vector.load %arg1[%c0_16, %c3_17] : memref<64x256xbf16, #tpu.memory_space<vmem>>, vector<64x128xbf16>
    %cst_18 = arith.constant dense<0.000000e+00> : vector<1x128xf32>
    %17 = tpu.matmul %15, %16, %cst_18 {dimension_numbers = #tpu.dot_dimension_numbers<[1], [0], [0], [1], [0, 0, 1, 1], [], []>} : vector<1x64xbf16>, vector<64x128xbf16>, vector<1x128xf32> -> vector<1x128xf32>
    %18 = arith.addf %13, %17 : vector<1x128xf32>
    %c4 = arith.constant 4 : index
    %c0_19 = arith.constant 0 : index
    %c0_20 = arith.constant 0 : index
    %19 = vector.load %arg0[%c4, %c0_19, %c0_20] : memref<16x1x64xbf16, #tpu.memory_space<vmem>>, vector<1x1x64xbf16>
    %20 = vector.shape_cast %19 : vector<1x1x64xbf16> to vector<1x64xbf16>
    %c0_21 = arith.constant 0 : index
    %c5 = arith.constant 5 : index
    %21 = vector.load %arg1[%c0_21, %c5] : memref<64x256xbf16, #tpu.memory_space<vmem>>, vector<64x128xbf16>
    %cst_22 = arith.constant dense<0.000000e+00> : vector<1x128xf32>
    %22 = tpu.matmul %20, %21, %cst_22 {dimension_numbers = #tpu.dot_dimension_numbers<[1], [0], [0], [1], [0, 0, 1, 1], [], []>} : vector<1x64xbf16>, vector<64x128xbf16>, vector<1x128xf32> -> vector<1x128xf32>
    %23 = arith.addf %18, %22 : vector<1x128xf32>
    %c5_23 = arith.constant 5 : index
    %c0_24 = arith.constant 0 : index
    %c0_25 = arith.constant 0 : index
    %24 = vector.load %arg0[%c5_23, %c0_24, %c0_25] : memref<16x1x64xbf16, #tpu.memory_space<vmem>>, vector<1x1x64xbf16>
    %25 = vector.shape_cast %24 : vector<1x1x64xbf16> to vector<1x64xbf16>
    %c0_26 = arith.constant 0 : index
    %c6 = arith.constant 6 : index
    %26 = vector.load %arg1[%c0_26, %c6] : memref<64x256xbf16, #tpu.memory_space<vmem>>, vector<64x128xbf16>
    %cst_27 = arith.constant dense<0.000000e+00> : vector<1x128xf32>
    %27 = tpu.matmul %25, %26, %cst_27 {dimension_numbers = #tpu.dot_dimension_numbers<[1], [0], [0], [1], [0, 0, 1, 1], [], []>} : vector<1x64xbf16>, vector<64x128xbf16>, vector<1x128xf32> -> vector<1x128xf32>
    %28 = arith.addf %23, %27 : vector<1x128xf32>
    %c6_28 = arith.constant 6 : index
    %c0_29 = arith.constant 0 : index
    %c0_30 = arith.constant 0 : index
    %29 = vector.load %arg0[%c6_28, %c0_29, %c0_30] : memref<16x1x64xbf16, #tpu.memory_space<vmem>>, vector<1x1x64xbf16>
    %30 = vector.shape_cast %29 : vector<1x1x64xbf16> to vector<1x64xbf16>
    %c0_31 = arith.constant 0 : index
    %c7 = arith.constant 7 : index
    %31 = vector.load %arg1[%c0_31, %c7] : memref<64x256xbf16, #tpu.memory_space<vmem>>, vector<64x128xbf16>
    %cst_32 = arith.constant dense<0.000000e+00> : vector<1x128xf32>
    %32 = tpu.matmul %30, %31, %cst_32 {dimension_numbers = #tpu.dot_dimension_numbers<[1], [0], [0], [1], [0, 0, 1, 1], [], []>} : vector<1x64xbf16>, vector<64x128xbf16>, vector<1x128xf32> -> vector<1x128xf32>
    %33 = arith.addf %28, %32 : vector<1x128xf32>
    %c7_33 = arith.constant 7 : index
    %c0_34 = arith.constant 0 : index
    %c0_35 = arith.constant 0 : index
    %34 = vector.load %arg0[%c7_33, %c0_34, %c0_35] : memref<16x1x64xbf16, #tpu.memory_space<vmem>>, vector<1x1x64xbf16>
    %35 = vector.shape_cast %34 : vector<1x1x64xbf16> to vector<1x64xbf16>
    %c0_36 = arith.constant 0 : index
    %c8 = arith.constant 8 : index
    %36 = vector.load %arg1[%c0_36, %c8] : memref<64x256xbf16, #tpu.memory_space<vmem>>, vector<64x128xbf16>
    %cst_37 = arith.constant dense<0.000000e+00> : vector<1x128xf32>
    %37 = tpu.matmul %35, %36, %cst_37 {dimension_numbers = #tpu.dot_dimension_numbers<[1], [0], [0], [1], [0, 0, 1, 1], [], []>} : vector<1x64xbf16>, vector<64x128xbf16>, vector<1x128xf32> -> vector<1x128xf32>
    %38 = arith.addf %33, %37 : vector<1x128xf32>
    %c8_38 = arith.constant 8 : index
    %c0_39 = arith.constant 0 : index
    %c0_40 = arith.constant 0 : index
    %39 = vector.load %arg0[%c8_38, %c0_39, %c0_40] : memref<16x1x64xbf16, #tpu.memory_space<vmem>>, vector<1x1x64xbf16>
    %40 = vector.shape_cast %39 : vector<1x1x64xbf16> to vector<1x64xbf16>
    %c0_41 = arith.constant 0 : index
    %c10 = arith.constant 10 : index
    %41 = vector.load %arg1[%c0_41, %c10] : memref<64x256xbf16, #tpu.memory_space<vmem>>, vector<64x128xbf16>
    %cst_42 = arith.constant dense<0.000000e+00> : vector<1x128xf32>
    %42 = tpu.matmul %40, %41, %cst_42 {dimension_numbers = #tpu.dot_dimension_numbers<[1], [0], [0], [1], [0, 0, 1, 1], [], []>} : vector<1x64xbf16>, vector<64x128xbf16>, vector<1x128xf32> -> vector<1x128xf32>
    %43 = arith.addf %38, %42 : vector<1x128xf32>
    %c9 = arith.constant 9 : index
    %c0_43 = arith.constant 0 : index
    %c0_44 = arith.constant 0 : index
    %44 = vector.load %arg0[%c9, %c0_43, %c0_44] : memref<16x1x64xbf16, #tpu.memory_space<vmem>>, vector<1x1x64xbf16>
    %45 = vector.shape_cast %44 : vector<1x1x64xbf16> to vector<1x64xbf16>
    %c0_45 = arith.constant 0 : index
    %c11 = arith.constant 11 : index
    %46 = vector.load %arg1[%c0_45, %c11] : memref<64x256xbf16, #tpu.memory_space<vmem>>, vector<64x128xbf16>
    %cst_46 = arith.constant dense<0.000000e+00> : vector<1x128xf32>
    %47 = tpu.matmul %45, %46, %cst_46 {dimension_numbers = #tpu.dot_dimension_numbers<[1], [0], [0], [1], [0, 0, 1, 1], [], []>} : vector<1x64xbf16>, vector<64x128xbf16>, vector<1x128xf32> -> vector<1x128xf32>
    %48 = arith.addf %43, %47 : vector<1x128xf32>
    %c10_47 = arith.constant 10 : index
    %c0_48 = arith.constant 0 : index
    %c0_49 = arith.constant 0 : index
    %49 = vector.load %arg0[%c10_47, %c0_48, %c0_49] : memref<16x1x64xbf16, #tpu.memory_space<vmem>>, vector<1x1x64xbf16>
    %50 = vector.shape_cast %49 : vector<1x1x64xbf16> to vector<1x64xbf16>
    %c0_50 = arith.constant 0 : index
    %c12 = arith.constant 12 : index
    %51 = vector.load %arg1[%c0_50, %c12] : memref<64x256xbf16, #tpu.memory_space<vmem>>, vector<64x128xbf16>
    %cst_51 = arith.constant dense<0.000000e+00> : vector<1x128xf32>
    %52 = tpu.matmul %50, %51, %cst_51 {dimension_numbers = #tpu.dot_dimension_numbers<[1], [0], [0], [1], [0, 0, 1, 1], [], []>} : vector<1x64xbf16>, vector<64x128xbf16>, vector<1x128xf32> -> vector<1x128xf32>
    %53 = arith.addf %48, %52 : vector<1x128xf32>
    %c11_52 = arith.constant 11 : index
    %c0_53 = arith.constant 0 : index
    %c0_54 = arith.constant 0 : index
    %54 = vector.load %arg0[%c11_52, %c0_53, %c0_54] : memref<16x1x64xbf16, #tpu.memory_space<vmem>>, vector<1x1x64xbf16>
    %55 = vector.shape_cast %54 : vector<1x1x64xbf16> to vector<1x64xbf16>
    %c0_55 = arith.constant 0 : index
    %c13 = arith.constant 13 : index
    %56 = vector.load %arg1[%c0_55, %c13] : memref<64x256xbf16, #tpu.memory_space<vmem>>, vector<64x128xbf16>
    %cst_56 = arith.constant dense<0.000000e+00> : vector<1x128xf32>
    %57 = tpu.matmul %55, %56, %cst_56 {dimension_numbers = #tpu.dot_dimension_numbers<[1], [0], [0], [1], [0, 0, 1, 1], [], []>} : vector<1x64xbf16>, vector<64x128xbf16>, vector<1x128xf32> -> vector<1x128xf32>
    %58 = arith.addf %53, %57 : vector<1x128xf32>
    %c12_57 = arith.constant 12 : index
    %c0_58 = arith.constant 0 : index
    %c0_59 = arith.constant 0 : index
    %59 = vector.load %arg0[%c12_57, %c0_58, %c0_59] : memref<16x1x64xbf16, #tpu.memory_space<vmem>>, vector<1x1x64xbf16>
    %60 = vector.shape_cast %59 : vector<1x1x64xbf16> to vector<1x64xbf16>
    %c0_60 = arith.constant 0 : index
    %c15 = arith.constant 15 : index
    %61 = vector.load %arg1[%c0_60, %c15] : memref<64x256xbf16, #tpu.memory_space<vmem>>, vector<64x128xbf16>
    %cst_61 = arith.constant dense<0.000000e+00> : vector<1x128xf32>
    %62 = tpu.matmul %60, %61, %cst_61 {dimension_numbers = #tpu.dot_dimension_numbers<[1], [0], [0], [1], [0, 0, 1, 1], [], []>} : vector<1x64xbf16>, vector<64x128xbf16>, vector<1x128xf32> -> vector<1x128xf32>
    %63 = arith.addf %58, %62 : vector<1x128xf32>
    %c13_62 = arith.constant 13 : index
    %c0_63 = arith.constant 0 : index
    %c0_64 = arith.constant 0 : index
    %64 = vector.load %arg0[%c13_62, %c0_63, %c0_64] : memref<16x1x64xbf16, #tpu.memory_space<vmem>>, vector<1x1x64xbf16>
    %65 = vector.shape_cast %64 : vector<1x1x64xbf16> to vector<1x64xbf16>
    %c0_65 = arith.constant 0 : index
    %c16 = arith.constant 16 : index
    %66 = vector.load %arg1[%c0_65, %c16] : memref<64x256xbf16, #tpu.memory_space<vmem>>, vector<64x128xbf16>
    %cst_66 = arith.constant dense<0.000000e+00> : vector<1x128xf32>
    %67 = tpu.matmul %65, %66, %cst_66 {dimension_numbers = #tpu.dot_dimension_numbers<[1], [0], [0], [1], [0, 0, 1, 1], [], []>} : vector<1x64xbf16>, vector<64x128xbf16>, vector<1x128xf32> -> vector<1x128xf32>
    %68 = arith.addf %63, %67 : vector<1x128xf32>
    %c14 = arith.constant 14 : index
    %c0_67 = arith.constant 0 : index
    %c0_68 = arith.constant 0 : index
    %69 = vector.load %arg0[%c14, %c0_67, %c0_68] : memref<16x1x64xbf16, #tpu.memory_space<vmem>>, vector<1x1x64xbf16>
    %70 = vector.shape_cast %69 : vector<1x1x64xbf16> to vector<1x64xbf16>
    %c0_69 = arith.constant 0 : index
    %c17 = arith.constant 17 : index
    %71 = vector.load %arg1[%c0_69, %c17] : memref<64x256xbf16, #tpu.memory_space<vmem>>, vector<64x128xbf16>
    %cst_70 = arith.constant dense<0.000000e+00> : vector<1x128xf32>
    %72 = tpu.matmul %70, %71, %cst_70 {dimension_numbers = #tpu.dot_dimension_numbers<[1], [0], [0], [1], [0, 0, 1, 1], [], []>} : vector<1x64xbf16>, vector<64x128xbf16>, vector<1x128xf32> -> vector<1x128xf32>
    %73 = arith.addf %68, %72 : vector<1x128xf32>
    %c15_71 = arith.constant 15 : index
    %c0_72 = arith.constant 0 : index
    %c0_73 = arith.constant 0 : index
    %74 = vector.load %arg0[%c15_71, %c0_72, %c0_73] : memref<16x1x64xbf16, #tpu.memory_space<vmem>>, vector<1x1x64xbf16>
    %75 = vector.shape_cast %74 : vector<1x1x64xbf16> to vector<1x64xbf16>
    %c0_74 = arith.constant 0 : index
    %c18 = arith.constant 18 : index
    %76 = vector.load %arg1[%c0_74, %c18] : memref<64x256xbf16, #tpu.memory_space<vmem>>, vector<64x128xbf16>
    %cst_75 = arith.constant dense<0.000000e+00> : vector<1x128xf32>
    %77 = tpu.matmul %75, %76, %cst_75 {dimension_numbers = #tpu.dot_dimension_numbers<[1], [0], [0], [1], [0, 0, 1, 1], [], []>} : vector<1x64xbf16>, vector<64x128xbf16>, vector<1x128xf32> -> vector<1x128xf32>
    %78 = arith.addf %73, %77 : vector<1x128xf32>
    %c0_76 = arith.constant 0 : index
    %c0_77 = arith.constant 0 : index
    %79 = vector.load %arg3[%c0_76, %c0_77] : memref<1x3xf32, #tpu.memory_space<vmem>>, vector<1x3xf32>
    %80 = vector.extract_strided_slice %79 {offsets = [0, 0], sizes = [1, 1], strides = [1, 1]} : vector<1x3xf32> to vector<1x1xf32>
    %81 = vector.broadcast %80 : vector<1x1xf32> to vector<1x128xf32>
    %82 = arith.addf %78, %81 : vector<1x128xf32>
    %83 = arith.truncf %82 : vector<1x128xf32> to vector<1x128xbf16>
    %c0_78 = arith.constant 0 : index
    %c0_79 = arith.constant 0 : index
    %84 = vector.load %arg4[%c0_78, %c0_79] : memref<1x128xbf16, #tpu.memory_space<vmem>>, vector<1x128xbf16>
    tpu.vector_store %arg4[%c0_78, %c0_79], %83 {strides = array<i32>} : memref<1x128xbf16, #tpu.memory_space<vmem>>, vector<1x128xbf16>,
    return
  }
}

</mosaic_0001>

<llo_original>
// kernel: nlayer_discriminator_forward.5
$region0: #{nlayer_discriminator_forward.5}
  #allocation0 [shape = 'u32[]', space=smem, size = 0x4, offset = 0x4, fixed_abs, tag = 'smem constant byte address 0x4 - core index']
  #allocation1 [shape = 'u32[144,128]{1,0:T(1,128)}', space=vmem, size = 0x12000, scoped, tag = 'internal scratch']
  %s0 = inlined_call_operand.vmem [shape: bf16[4,8,16], index: 0, kind: input, shape index: {}]
  %s1 = inlined_call_operand.vmem [shape: bf16[16,768], index: 1, kind: input, shape index: {}]
  %s2 = inlined_call_operand.vmem [shape: f32[1,640], index: 2, kind: input, shape index: {}]
  %s3 = inlined_call_operand.vmem [shape: f32[8,3], index: 3, kind: input, shape index: {}]
  %s4 = inlined_call_operand.vmem [shape: bf16[8,640], index: 4, kind: output, shape index: {}]
  %s5 = sld [smem:[#allocation0]]
  $region26: #{nlayer_discriminator_forward.5} parent=0
    _
  %s7 = ssub.s32 1, %s5
  %s8 = scalar_select 0, %s7, %s5
  // Predicated region
  $region2: #{nlayer_discriminator_forward.5} parent=0 // pred_check
    _
  $region3: #{nlayer_discriminator_forward.5} parent=0 // pred_check_branch
    %10 = sbr.rel (0) target = $region5
  $region4: #{nlayer_discriminator_forward.5} parent=0 // pred_region
    _
  $region5: #{nlayer_discriminator_forward.5} parent=0 // pred_fallthru
    _
  // Predicated region
  $region6: #{nlayer_discriminator_forward.5} parent=0 // pred_check
    _
  $region7: #{nlayer_discriminator_forward.5} parent=0 // pred_check_branch
    %12 = sbr.rel (0) target = $region9
  $region8: #{nlayer_discriminator_forward.5} parent=0 // pred_region
    _
  $region9: #{nlayer_discriminator_forward.5} parent=0 // pred_fallthru
    _
  // Predicated region
  $region10: #{nlayer_discriminator_forward.5} parent=0 // pred_check
    _
  $region11: #{nlayer_discriminator_forward.5} parent=0 // pred_check_branch
    %14 = sbr.rel (0) target = $region13
  $region12: #{nlayer_discriminator_forward.5} parent=0 // pred_region
    _
  $region13: #{nlayer_discriminator_forward.5} parent=0 // pred_fallthru
    _
  // Predicated region
  $region14: #{nlayer_discriminator_forward.5} parent=0 // pred_check
    _
  $region15: #{nlayer_discriminator_forward.5} parent=0 // pred_check_branch
    %16 = sbr.rel (0) target = $region17
  $region16: #{nlayer_discriminator_forward.5} parent=0 // pred_region
    _
  $region17: #{nlayer_discriminator_forward.5} parent=0 // pred_fallthru
    _
  %v18 = vld [vmem:[%s0] sm:$0xf]
  %v19 = vld [vmem:[%s1] sm:$0xff]
  %v20 = vld [vmem:[%s1 + $0x8] sm:$0xff]
  %v21 = vld [vmem:[%s1 + $0x10] sm:$0xf]
  %v22 = vld [vmem:[%s1 + $0x18] sm:$0xff]
  %v23 = vld [vmem:[%s1 + $0x20] sm:$0xff]
  %v24 = vld [vmem:[%s1 + $0x28] sm:$0xf]
  %s25 = scalar_lea.vmem %s0, 4
  %v26 = vld [vmem:[%s25] sm:$0xf]
  %v27 = vld [vmem:[%s1] sm:$0xff]
  %v28 = vld [vmem:[%s1 + $0x8] sm:$0xff]
  %v29 = vld [vmem:[%s1 + $0x10] sm:$0xff]
  %v30 = vld [vmem:[%s1 + $0x18] sm:$0xff]
  %v31 = vld [vmem:[%s1 + $0x20] sm:$0xff]
  %v32 = vld [vmem:[%s1 + $0x28] sm:$0xff]
  %v39 = vunpack.c.l.b16 %v27
  %v40 = vunpack.c.h.b16 %v27
  %v41 = vunpack.c.l.b16 %v28
  %v42 = vunpack.c.h.b16 %v28
  %v43 = vunpack.c.l.b16 %v29
  %v44 = vunpack.c.h.b16 %v29
  %v45 = vunpack.c.l.b16 %v30
  %v46 = vunpack.c.h.b16 %v30
  %v47 = vunpack.c.l.b16 %v31
  %v48 = vunpack.c.h.b16 %v31
  %v49 = vunpack.c.l.b16 %v32
  %v50 = vunpack.c.h.b16 %v32
  %v51 = vpack.c.b16 %v45, %v39
  %v52 = vpack.c.b16 %v46, %v40
  %v53 = vpack.c.b16 %v47, %v41
  %v54 = vpack.c.b16 %v48, %v42
  %v55 = vpack.c.b16 %v49, %v43
  %v56 = vpack.c.b16 %v50, %v44
  %57 = vrot.lane.b32.xlu0 %v51, 127
  %v58 = vpop.permute.xlu0 %57
  %59 = vrot.lane.b32.xlu0 %v52, 127
  %v60 = vpop.permute.xlu0 %59
  %61 = vrot.lane.b32.xlu0 %v53, 127
  %v62 = vpop.permute.xlu0 %61
  %63 = vrot.lane.b32.xlu0 %v54, 127
  %v64 = vpop.permute.xlu0 %63
  %65 = vrot.lane.b32.xlu0 %v55, 127
  %v66 = vpop.permute.xlu0 %65
  %67 = vrot.lane.b32.xlu0 %v56, 127
  %v68 = vpop.permute.xlu0 %67
  %vm69 = vcmask 1039360
  %v70 = vsel %vm69, %v58, %v60
  %v71 = vsel %vm69, %v60, %v62
  %v72 = vsel %vm69, %v62, %v64
  %v73 = vsel %vm69, %v64, %v66
  %v74 = vsel %vm69, %v66, %v68
  %vm80 = vcmask 130048
  %v82 = vsel %vm80, %v26, 0
  %84 = vmatprep.subr.bf16.mxu0 0
  %85 = vmatpush1.bf16.msra.mxu0 0
  %86 = vmatprep.subr.bf16.mxu0 0
  %87 = vmatpush1.bf16.msra.mxu0 0
  %88 = vmatprep.subr.bf16.mxu0 0
  %89 = vmatpush1.bf16.msra.mxu0 0
  %90 = vmatprep.subr.bf16.mxu0 0
  %91 = vmatpush1.bf16.msra.mxu0 0
  %92 = vmatprep.subr.bf16.mxu0 0
  %93 = vmatpush1.bf16.msra.mxu0 0
  %94 = vmatprep.subr.bf16.mxu0 0
  %95 = vmatpush1.bf16.msra.mxu0 0
  %96 = vmatprep.subr.bf16.mxu0 0
  %97 = vmatpush1.bf16.msra.mxu0 0
  %98 = vmatprep.subr.bf16.mxu0 %v71
  %99 = vmatpush1.bf16.msra.mxu0 %v70
  %100 = vmatprep.subr.bf16.mxu0 0
  %101 = vmatpush2.bf16.msra.mxu0 0
  %102 = vmatprep.subr.bf16.mxu0 0
  %103 = vmatpush2.bf16.msra.mxu0 0
  %104 = vmatprep.subr.bf16.mxu0 0
  %105 = vmatpush2.bf16.msra.mxu0 0
  %106 = vmatprep.subr.bf16.mxu0 0
  %107 = vmatpush2.bf16.msra.mxu0 0
  %108 = vmatprep.subr.bf16.mxu0 0
  %109 = vmatpush2.bf16.msra.mxu0 0
  %110 = vmatprep.subr.bf16.mxu0 0
  %111 = vmatpush2.bf16.msra.mxu0 0
  %112 = vmatprep.subr.bf16.mxu0 0
  %113 = vmatpush2.bf16.msra.mxu0 0
  %114 = vmatprep.subr.bf16.mxu0 0
  %115 = vmatpush2.bf16.msra.mxu0 0
  %116 = vmatprep.mubr.bf16.mxu0 0
  %117 = vmatmul.mubr.bf16.gmra.mxu0 %v82
  %v118 = vpop.f32.mrf.mxu0
  %v119 = vadd.f32 0.0, %v118
  %v120 = vpop.f32.mrf.mxu0
  %v121 = vadd.f32 0.0, %v120
  %v122 = vpop.f32.mrf.mxu0
  %v123 = vpop.f32.mrf.mxu0
  %124 = vdwg.mxu0
  %125 = vmatprep.subr.bf16.mxu0 0
  %126 = vmatpush1.bf16.msra.mxu0 0
  %127 = vmatprep.subr.bf16.mxu0 0
  %128 = vmatpush1.bf16.msra.mxu0 0
  %129 = vmatprep.subr.bf16.mxu0 0
  %130 = vmatpush1.bf16.msra.mxu0 0
  %131 = vmatprep.subr.bf16.mxu0 0
  %132 = vmatpush1.bf16.msra.mxu0 0
  %133 = vmatprep.subr.bf16.mxu0 0
  %134 = vmatpush1.bf16.msra.mxu0 0
  %135 = vmatprep.subr.bf16.mxu0 0
  %136 = vmatpush1.bf16.msra.mxu0 0
  %137 = vmatprep.subr.bf16.mxu0 0
  %138 = vmatpush1.bf16.msra.mxu0 0
  %139 = vmatprep.subr.bf16.mxu0 %v73
  %140 = vmatpush1.bf16.msra.mxu0 %v72
  %141 = vmatprep.subr.bf16.mxu0 0
  %142 = vmatpush2.bf16.msra.mxu0 0
  %143 = vmatprep.subr.bf16.mxu0 0
  %144 = vmatpush2.bf16.msra.mxu0 0
  %145 = vmatprep.subr.bf16.mxu0 0
  %146 = vmatpush2.bf16.msra.mxu0 0
  %147 = vmatprep.subr.bf16.mxu0 0
  %148 = vmatpush2.bf16.msra.mxu0 0
  %149 = vmatprep.subr.bf16.mxu0 0
  %150 = vmatpush2.bf16.msra.mxu0 0
  %151 = vmatprep.subr.bf16.mxu0 0
  %152 = vmatpush2.bf16.msra.mxu0 0
  %153 = vmatprep.subr.bf16.mxu0 0
  %154 = vmatpush2.bf16.msra.mxu0 0
  %155 = vmatprep.subr.bf16.mxu0 0
  %156 = vmatpush2.bf16.msra.mxu0 0
  %157 = vmatprep.mubr.bf16.mxu0 0
  %158 = vmatmul.mubr.bf16.gmra.mxu0 %v82
  %v159 = vpop.f32.mrf.mxu0
  %v160 = vadd.f32 0.0, %v159
  %v161 = vpop.f32.mrf.mxu0
  %v162 = vadd.f32 0.0, %v161
  %v163 = vpop.f32.mrf.mxu0
  %v164 = vpop.f32.mrf.mxu0
  %165 = vdwg.mxu0
  %166 = vmatprep.subr.bf16.mxu0 0
  %167 = vmatpush1.bf16.msra.mxu0 0
  %168 = vmatprep.subr.bf16.mxu0 0
  %169 = vmatpush1.bf16.msra.mxu0 0
  %170 = vmatprep.subr.bf16.mxu0 0
  %171 = vmatpush1.bf16.msra.mxu0 0
  %172 = vmatprep.subr.bf16.mxu0 0
  %173 = vmatpush1.bf16.msra.mxu0 0
  %174 = vmatprep.subr.bf16.mxu0 0
  %175 = vmatpush1.bf16.msra.mxu0 0
  %176 = vmatprep.subr.bf16.mxu0 0
  %177 = vmatpush1.bf16.msra.mxu0 0
  %178 = vmatprep.subr.bf16.mxu0 0
  %179 = vmatpush1.bf16.msra.mxu0 0
  %180 = vmatprep.subr.bf16.mxu0 0
  %181 = vmatpush1.bf16.msra.mxu0 %v74
  %182 = vmatprep.subr.bf16.mxu0 0
  %183 = vmatpush2.bf16.msra.mxu0 0
  %184 = vmatprep.subr.bf16.mxu0 0
  %185 = vmatpush2.bf16.msra.mxu0 0
  %186 = vmatprep.subr.bf16.mxu0 0
  %187 = vmatpush2.bf16.msra.mxu0 0
  %188 = vmatprep.subr.bf16.mxu0 0
  %189 = vmatpush2.bf16.msra.mxu0 0
  %190 = vmatprep.subr.bf16.mxu0 0
  %191 = vmatpush2.bf16.msra.mxu0 0
  %192 = vmatprep.subr.bf16.mxu0 0
  %193 = vmatpush2.bf16.msra.mxu0 0
  %194 = vmatprep.subr.bf16.mxu0 0
  %195 = vmatpush2.bf16.msra.mxu0 0
  %196 = vmatprep.subr.bf16.mxu0 0
  %197 = vmatpush2.bf16.msra.mxu0 0
  %198 = vmatprep.mubr.bf16.mxu0 0
  %199 = vmatmul.mubr.bf16.gmra.mxu0 %v82
  %v200 = vpop.f32.mrf.mxu0
  %v201 = vadd.f32 0.0, %v200
  %v202 = vpop.f32.mrf.mxu0
  %v203 = vpop.f32.mrf.mxu0
  %v204 = vpop.f32.mrf.mxu0
  %205 = vdwg.mxu0
  %v212 = vunpack.c.l.b16 %v19
  %v213 = vunpack.c.h.b16 %v19
  %v214 = vunpack.c.l.b16 %v20
  %v215 = vunpack.c.h.b16 %v20
  %v216 = vunpack.c.l.b16 %v21
  %v217 = vunpack.c.l.b16 %v22
  %v218 = vunpack.c.h.b16 %v22
  %v219 = vunpack.c.l.b16 %v23
  %v220 = vunpack.c.h.b16 %v23
  %v221 = vunpack.c.l.b16 %v24
  %v222 = vpack.c.b16 %v217, %v212
  %v223 = vpack.c.b16 %v218, %v213
  %v224 = vpack.c.b16 %v219, %v214
  %v225 = vpack.c.b16 %v220, %v215
  %v226 = vpack.c.b16 %v221, %v216
  %v233 = vsel %vm80, %v18, 0
  %235 = vmatprep.subr.bf16.mxu0 0
  %236 = vmatpush1.bf16.msra.mxu0 0
  %237 = vmatprep.subr.bf16.mxu0 0
  %238 = vmatpush1.bf16.msra.mxu0 0
  %239 = vmatprep.subr.bf16.mxu0 0
  %240 = vmatpush1.bf16.msra.mxu0 0
  %241 = vmatprep.subr.bf16.mxu0 0
  %242 = vmatpush1.bf16.msra.mxu0 0
  %243 = vmatprep.subr.bf16.mxu0 0
  %244 = vmatpush1.bf16.msra.mxu0 0
  %245 = vmatprep.subr.bf16.mxu0 0
  %246 = vmatpush1.bf16.msra.mxu0 0
  %247 = vmatprep.subr.bf16.mxu0 0
  %248 = vmatpush1.bf16.msra.mxu0 0
  %249 = vmatprep.subr.bf16.mxu0 %v223
  %250 = vmatpush1.bf16.msra.mxu0 %v222
  %251 = vmatprep.subr.bf16.mxu0 0
  %252 = vmatpush2.bf16.msra.mxu0 0
  %253 = vmatprep.subr.bf16.mxu0 0
  %254 = vmatpush2.bf16.msra.mxu0 0
  %255 = vmatprep.subr.bf16.mxu0 0
  %256 = vmatpush2.bf16.msra.mxu0 0
  %257 = vmatprep.subr.bf16.mxu0 0
  %258 = vmatpush2.bf16.msra.mxu0 0
  %259 = vmatprep.subr.bf16.mxu0 0
  %260 = vmatpush2.bf16.msra.mxu0 0
  %261 = vmatprep.subr.bf16.mxu0 0
  %262 = vmatpush2.bf16.msra.mxu0 0
  %263 = vmatprep.subr.bf16.mxu0 0
  %264 = vmatpush2.bf16.msra.mxu0 0
  %265 = vmatprep.subr.bf16.mxu0 0
  %266 = vmatpush2.bf16.msra.mxu0 0
  %267 = vmatprep.mubr.bf16.mxu0 0
  %268 = vmatmul.mubr.bf16.gmra.mxu0 %v233
  %v269 = vpop.f32.mrf.mxu0
  %v270 = vadd.f32 %v119, %v269
  %v271 = vpop.f32.mrf.mxu0
  %v272 = vadd.f32 %v121, %v271
  %v273 = vpop.f32.mrf.mxu0
  %v274 = vpop.f32.mrf.mxu0
  %275 = vdwg.mxu0
  %276 = vmatprep.subr.bf16.mxu0 0
  %277 = vmatpush1.bf16.msra.mxu0 0
  %278 = vmatprep.subr.bf16.mxu0 0
  %279 = vmatpush1.bf16.msra.mxu0 0
  %280 = vmatprep.subr.bf16.mxu0 0
  %281 = vmatpush1.bf16.msra.mxu0 0
  %282 = vmatprep.subr.bf16.mxu0 0
  %283 = vmatpush1.bf16.msra.mxu0 0
  %284 = vmatprep.subr.bf16.mxu0 0
  %285 = vmatpush1.bf16.msra.mxu0 0
  %286 = vmatprep.subr.bf16.mxu0 0
  %287 = vmatpush1.bf16.msra.mxu0 0
  %288 = vmatprep.subr.bf16.mxu0 0
  %289 = vmatpush1.bf16.msra.mxu0 0
  %290 = vmatprep.subr.bf16.mxu0 %v225
  %291 = vmatpush1.bf16.msra.mxu0 %v224
  %292 = vmatprep.subr.bf16.mxu0 0
  %293 = vmatpush2.bf16.msra.mxu0 0
  %294 = vmatprep.subr.bf16.mxu0 0
  %295 = vmatpush2.bf16.msra.mxu0 0
  %296 = vmatprep.subr.bf16.mxu0 0
  %297 = vmatpush2.bf16.msra.mxu0 0
  %298 = vmatprep.subr.bf16.mxu0 0
  %299 = vmatpush2.bf16.msra.mxu0 0
  %300 = vmatprep.subr.bf16.mxu0 0
  %301 = vmatpush2.bf16.msra.mxu0 0
  %302 = vmatprep.subr.bf16.mxu0 0
  %303 = vmatpush2.bf16.msra.mxu0 0
  %304 = vmatprep.subr.bf16.mxu0 0
  %305 = vmatpush2.bf16.msra.mxu0 0
  %306 = vmatprep.subr.bf16.mxu0 0
  %307 = vmatpush2.bf16.msra.mxu0 0
  %308 = vmatprep.mubr.bf16.mxu0 0
  %309 = vmatmul.mubr.bf16.gmra.mxu0 %v233
  %v310 = vpop.f32.mrf.mxu0
  %v311 = vadd.f32 %v160, %v310
  %v312 = vpop.f32.mrf.mxu0
  %v313 = vadd.f32 %v162, %v312
  %v314 = vpop.f32.mrf.mxu0
  %v315 = vpop.f32.mrf.mxu0
  %316 = vdwg.mxu0
  %317 = vmatprep.subr.bf16.mxu0 0
  %318 = vmatpush1.bf16.msra.mxu0 0
  %319 = vmatprep.subr.bf16.mxu0 0
  %320 = vmatpush1.bf16.msra.mxu0 0
  %321 = vmatprep.subr.bf16.mxu0 0
  %322 = vmatpush1.bf16.msra.mxu0 0
  %323 = vmatprep.subr.bf16.mxu0 0
  %324 = vmatpush1.bf16.msra.mxu0 0
  %325 = vmatprep.subr.bf16.mxu0 0
  %326 = vmatpush1.bf16.msra.mxu0 0
  %327 = vmatprep.subr.bf16.mxu0 0
  %328 = vmatpush1.bf16.msra.mxu0 0
  %329 = vmatprep.subr.bf16.mxu0 0
  %330 = vmatpush1.bf16.msra.mxu0 0
  %331 = vmatprep.subr.bf16.mxu0 0
  %332 = vmatpush1.bf16.msra.mxu0 %v226
  %333 = vmatprep.subr.bf16.mxu0 0
  %334 = vmatpush2.bf16.msra.mxu0 0
  %335 = vmatprep.subr.bf16.mxu0 0
  %336 = vmatpush2.bf16.msra.mxu0 0
  %337 = vmatprep.subr.bf16.mxu0 0
  %338 = vmatpush2.bf16.msra.mxu0 0
  %339 = vmatprep.subr.bf16.mxu0 0
  %340 = vmatpush2.bf16.msra.mxu0 0
  %341 = vmatprep.subr.bf16.mxu0 0
  %342 = vmatpush2.bf16.msra.mxu0 0
  %343 = vmatprep.subr.bf16.mxu0 0
  %344 = vmatpush2.bf16.msra.mxu0 0
  %345 = vmatprep.subr.bf16.mxu0 0
  %346 = vmatpush2.bf16.msra.mxu0 0
  %347 = vmatprep.subr.bf16.mxu0 0
  %348 = vmatpush2.bf16.msra.mxu0 0
  %349 = vmatprep.mubr.bf16.mxu0 0
  %350 = vmatmul.mubr.bf16.gmra.mxu0 %v233
  %v351 = vpop.f32.mrf.mxu0
  %v352 = vadd.f32 %v201, %v351
  %v353 = vpop.f32.mrf.mxu0
  %v354 = vpop.f32.mrf.mxu0
  %v355 = vpop.f32.mrf.mxu0
  %356 = vdwg.mxu0
  %s357 = scalar_lea.vmem %s0, 8
  %v358 = vld [vmem:[%s357] sm:$0xf]
  %359 = vrot.lane.b32.xlu0 %v51, 111
  %v360 = vpop.permute.xlu0 %359
  %361 = vrot.lane.b32.xlu0 %v52, 111
  %v362 = vpop.permute.xlu0 %361
  %363 = vrot.lane.b32.xlu0 %v53, 111
  %v364 = vpop.permute.xlu0 %363
  %365 = vrot.lane.b32.xlu0 %v54, 111
  %v366 = vpop.permute.xlu0 %365
  %367 = vrot.lane.b32.xlu0 %v55, 111
  %v368 = vpop.permute.xlu0 %367
  %369 = vrot.lane.b32.xlu0 %v56, 111
  %v370 = vpop.permute.xlu0 %369
  %vm371 = vcmask 908288
  %v372 = vsel %vm371, %v360, %v362
  %v373 = vsel %vm371, %v362, %v364
  %v374 = vsel %vm371, %v364, %v366
  %v375 = vsel %vm371, %v366, %v368
  %v376 = vsel %vm371, %v368, %v370
  %v383 = vsel %vm80, %v358, 0
  %385 = vmatprep.subr.bf16.mxu0 0
  %386 = vmatpush1.bf16.msra.mxu0 0
  %387 = vmatprep.subr.bf16.mxu0 0
  %388 = vmatpush1.bf16.msra.mxu0 0
  %389 = vmatprep.subr.bf16.mxu0 0
  %390 = vmatpush1.bf16.msra.mxu0 0
  %391 = vmatprep.subr.bf16.mxu0 0
  %392 = vmatpush1.bf16.msra.mxu0 0
  %393 = vmatprep.subr.bf16.mxu0 0
  %394 = vmatpush1.bf16.msra.mxu0 0
  %395 = vmatprep.subr.bf16.mxu0 0
  %396 = vmatpush1.bf16.msra.mxu0 0
  %397 = vmatprep.subr.bf16.mxu0 0
  %398 = vmatpush1.bf16.msra.mxu0 0
  %399 = vmatprep.subr.bf16.mxu0 %v373
  %400 = vmatpush1.bf16.msra.mxu0 %v372
  %401 = vmatprep.subr.bf16.mxu0 0
  %402 = vmatpush2.bf16.msra.mxu0 0
  %403 = vmatprep.subr.bf16.mxu0 0
  %404 = vmatpush2.bf16.msra.mxu0 0
  %405 = vmatprep.subr.bf16.mxu0 0
  %406 = vmatpush2.bf16.msra.mxu0 0
  %407 = vmatprep.subr.bf16.mxu0 0
  %408 = vmatpush2.bf16.msra.mxu0 0
  %409 = vmatprep.subr.bf16.mxu0 0
  %410 = vmatpush2.bf16.msra.mxu0 0
  %411 = vmatprep.subr.bf16.mxu0 0
  %412 = vmatpush2.bf16.msra.mxu0 0
  %413 = vmatprep.subr.bf16.mxu0 0
  %414 = vmatpush2.bf16.msra.mxu0 0
  %415 = vmatprep.subr.bf16.mxu0 0
  %416 = vmatpush2.bf16.msra.mxu0 0
  %417 = vmatprep.mubr.bf16.mxu0 0
  %418 = vmatmul.mubr.bf16.gmra.mxu0 %v383
  %v419 = vpop.f32.mrf.mxu0
  %v420 = vadd.f32 0.0, %v419
  %v421 = vpop.f32.mrf.mxu0
  %v422 = vadd.f32 0.0, %v421
  %v423 = vpop.f32.mrf.mxu0
  %v424 = vpop.f32.mrf.mxu0
  %425 = vdwg.mxu0
  %426 = vmatprep.subr.bf16.mxu0 0
  %427 = vmatpush1.bf16.msra.mxu0 0
  %428 = vmatprep.subr.bf16.mxu0 0
  %429 = vmatpush1.bf16.msra.mxu0 0
  %430 = vmatprep.subr.bf16.mxu0 0
  %431 = vmatpush1.bf16.msra.mxu0 0
  %432 = vmatprep.subr.bf16.mxu0 0
  %433 = vmatpush1.bf16.msra.mxu0 0
  %434 = vmatprep.subr.bf16.mxu0 0
  %435 = vmatpush1.bf16.msra.mxu0 0
  %436 = vmatprep.subr.bf16.mxu0 0
  %437 = vmatpush1.bf16.msra.mxu0 0
  %438 = vmatprep.subr.bf16.mxu0 0
  %439 = vmatpush1.bf16.msra.mxu0 0
  %440 = vmatprep.subr.bf16.mxu0 %v375
  %441 = vmatpush1.bf16.msra.mxu0 %v374
  %442 = vmatprep.subr.bf16.mxu0 0
  %443 = vmatpush2.bf16.msra.mxu0 0
  %444 = vmatprep.subr.bf16.mxu0 0
  %445 = vmatpush2.bf16.msra.mxu0 0
  %446 = vmatprep.subr.bf16.mxu0 0
  %447 = vmatpush2.bf16.msra.mxu0 0
  %448 = vmatprep.subr.bf16.mxu0 0
  %449 = vmatpush2.bf16.msra.mxu0 0
  %450 = vmatprep.subr.bf16.mxu0 0
  %451 = vmatpush2.bf16.msra.mxu0 0
  %452 = vmatprep.subr.bf16.mxu0 0
  %453 = vmatpush2.bf16.msra.mxu0 0
  %454 = vmatprep.subr.bf16.mxu0 0
  %455 = vmatpush2.bf16.msra.mxu0 0
  %456 = vmatprep.subr.bf16.mxu0 0
  %457 = vmatpush2.bf16.msra.mxu0 0
  %458 = vmatprep.mubr.bf16.mxu0 0
  %459 = vmatmul.mubr.bf16.gmra.mxu0 %v383
  %v460 = vpop.f32.mrf.mxu0
  %v461 = vadd.f32 0.0, %v460
  %v462 = vpop.f32.mrf.mxu0
  %v463 = vadd.f32 0.0, %v462
  %v464 = vpop.f32.mrf.mxu0
  %v465 = vpop.f32.mrf.mxu0
  %466 = vdwg.mxu0
  %467 = vmatprep.subr.bf16.mxu0 0
  %468 = vmatpush1.bf16.msra.mxu0 0
  %469 = vmatprep.subr.bf16.mxu0 0
  %470 = vmatpush1.bf16.msra.mxu0 0
  %471 = vmatprep.subr.bf16.mxu0 0
  %472 = vmatpush1.bf16.msra.mxu0 0
  %473 = vmatprep.subr.bf16.mxu0 0
  %474 = vmatpush1.bf16.msra.mxu0 0
  %475 = vmatprep.subr.bf16.mxu0 0
  %476 = vmatpush1.bf16.msra.mxu0 0
  %477 = vmatprep.subr.bf16.mxu0 0
  %478 = vmatpush1.bf16.msra.mxu0 0
  %479 = vmatprep.subr.bf16.mxu0 0
  %480 = vmatpush1.bf16.msra.mxu0 0
  %481 = vmatprep.subr.bf16.mxu0 0
  %482 = vmatpush1.bf16.msra.mxu0 %v376
  %483 = vmatprep.subr.bf16.mxu0 0
  %484 = vmatpush2.bf16.msra.mxu0 0
  %485 = vmatprep.subr.bf16.mxu0 0
  %486 = vmatpush2.bf16.msra.mxu0 0
  %487 = vmatprep.subr.bf16.mxu0 0
  %488 = vmatpush2.bf16.msra.mxu0 0
  %489 = vmatprep.subr.bf16.mxu0 0
  %490 = vmatpush2.bf16.msra.mxu0 0
  %491 = vmatprep.subr.bf16.mxu0 0
  %492 = vmatpush2.bf16.msra.mxu0 0
  %493 = vmatprep.subr.bf16.mxu0 0
  %494 = vmatpush2.bf16.msra.mxu0 0
  %495 = vmatprep.subr.bf16.mxu0 0
  %496 = vmatpush2.bf16.msra.mxu0 0
  %497 = vmatprep.subr.bf16.mxu0 0
  %498 = vmatpush2.bf16.msra.mxu0 0
  %499 = vmatprep.mubr.bf16.mxu0 0
  %500 = vmatmul.mubr.bf16.gmra.mxu0 %v383
  %v501 = vpop.f32.mrf.mxu0
  %v502 = vadd.f32 0.0, %v501
  %v503 = vpop.f32.mrf.mxu0
  %v504 = vpop.f32.mrf.mxu0
  %v505 = vpop.f32.mrf.mxu0
  %506 = vdwg.mxu0
  %v507 = vadd.f32 %v270, %v420
  %v508 = vadd.f32 %v272, %v422
  %v509 = vadd.f32 %v311, %v461
  %v510 = vadd.f32 %v313, %v463
  %v511 = vadd.f32 %v352, %v502
  %s512 = scalar_lea.vmem %s0, 12
  %v513 = vld [vmem:[%s512] sm:$0xf]
  %514 = vrot.lane.b32.xlu0 %v51, 110
  %v515 = vpop.permute.xlu0 %514
  %516 = vrot.lane.b32.xlu0 %v52, 110
  %v517 = vpop.permute.xlu0 %516
  %518 = vrot.lane.b32.xlu0 %v53, 110
  %v519 = vpop.permute.xlu0 %518
  %520 = vrot.lane.b32.xlu0 %v54, 110
  %v521 = vpop.permute.xlu0 %520
  %522 = vrot.lane.b32.xlu0 %v55, 110
  %v523 = vpop.permute.xlu0 %522
  %524 = vrot.lane.b32.xlu0 %v56, 110
  %v525 = vpop.permute.xlu0 %524
  %vm526 = vcmask 900096
  %v527 = vsel %vm526, %v515, %v517
  %v528 = vsel %vm526, %v517, %v519
  %v529 = vsel %vm526, %v519, %v521
  %v530 = vsel %vm526, %v521, %v523
  %v531 = vsel %vm526, %v523, %v525
  %v538 = vsel %vm80, %v513, 0
  %540 = vmatprep.subr.bf16.mxu0 0
  %541 = vmatpush1.bf16.msra.mxu0 0
  %542 = vmatprep.subr.bf16.mxu0 0
  %543 = vmatpush1.bf16.msra.mxu0 0
  %544 = vmatprep.subr.bf16.mxu0 0
  %545 = vmatpush1.bf16.msra.mxu0 0
  %546 = vmatprep.subr.bf16.mxu0 0
  %547 = vmatpush1.bf16.msra.mxu0 0
  %548 = vmatprep.subr.bf16.mxu0 0
  %549 = vmatpush1.bf16.msra.mxu0 0
  %550 = vmatprep.subr.bf16.mxu0 0
  %551 = vmatpush1.bf16.msra.mxu0 0
  %552 = vmatprep.subr.bf16.mxu0 0
  %553 = vmatpush1.bf16.msra.mxu0 0
  %554 = vmatprep.subr.bf16.mxu0 %v528
  %555 = vmatpush1.bf16.msra.mxu0 %v527
  %556 = vmatprep.subr.bf16.mxu0 0
  %557 = vmatpush2.bf16.msra.mxu0 0
  %558 = vmatprep.subr.bf16.mxu0 0
  %559 = vmatpush2.bf16.msra.mxu0 0
  %560 = vmatprep.subr.bf16.mxu0 0
  %561 = vmatpush2.bf16.msra.mxu0 0
  %562 = vmatprep.subr.bf16.mxu0 0
  %563 = vmatpush2.bf16.msra.mxu0 0
  %564 = vmatprep.subr.bf16.mxu0 0
  %565 = vmatpush2.bf16.msra.mxu0 0
  %566 = vmatprep.subr.bf16.mxu0 0
  %567 = vmatpush2.bf16.msra.mxu0 0
  %568 = vmatprep.subr.bf16.mxu0 0
  %569 = vmatpush2.bf16.msra.mxu0 0
  %570 = vmatprep.subr.bf16.mxu0 0
  %571 = vmatpush2.bf16.msra.mxu0 0
  %572 = vmatprep.mubr.bf16.mxu0 0
  %573 = vmatmul.mubr.bf16.gmra.mxu0 %v538
  %v574 = vpop.f32.mrf.mxu0
  %v575 = vadd.f32 0.0, %v574
  %v576 = vpop.f32.mrf.mxu0
  %v577 = vadd.f32 0.0, %v576
  %v578 = vpop.f32.mrf.mxu0
  %v579 = vpop.f32.mrf.mxu0
  %580 = vdwg.mxu0
  %581 = vmatprep.subr.bf16.mxu0 0
  %582 = vmatpush1.bf16.msra.mxu0 0
  %583 = vmatprep.subr.bf16.mxu0 0
  %584 = vmatpush1.bf16.msra.mxu0 0
  %585 = vmatprep.subr.bf16.mxu0 0
  %586 = vmatpush1.bf16.msra.mxu0 0
  %587 = vmatprep.subr.bf16.mxu0 0
  %588 = vmatpush1.bf16.msra.mxu0 0
  %589 = vmatprep.subr.bf16.mxu0 0
  %590 = vmatpush1.bf16.msra.mxu0 0
  %591 = vmatprep.subr.bf16.mxu0 0
  %592 = vmatpush1.bf16.msra.mxu0 0
  %593 = vmatprep.subr.bf16.mxu0 0
  %594 = vmatpush1.bf16.msra.mxu0 0
  %595 = vmatprep.subr.bf16.mxu0 %v530
  %596 = vmatpush1.bf16.msra.mxu0 %v529
  %597 = vmatprep.subr.bf16.mxu0 0
  %598 = vmatpush2.bf16.msra.mxu0 0
  %599 = vmatprep.subr.bf16.mxu0 0
  %600 = vmatpush2.bf16.msra.mxu0 0
  %601 = vmatprep.subr.bf16.mxu0 0
  %602 = vmatpush2.bf16.msra.mxu0 0
  %603 = vmatprep.subr.bf16.mxu0 0
  %604 = vmatpush2.bf16.msra.mxu0 0
  %605 = vmatprep.subr.bf16.mxu0 0
  %606 = vmatpush2.bf16.msra.mxu0 0
  %607 = vmatprep.subr.bf16.mxu0 0
  %608 = vmatpush2.bf16.msra.mxu0 0
  %609 = vmatprep.subr.bf16.mxu0 0
  %610 = vmatpush2.bf16.msra.mxu0 0
  %611 = vmatprep.subr.bf16.mxu0 0
  %612 = vmatpush2.bf16.msra.mxu0 0
  %613 = vmatprep.mubr.bf16.mxu0 0
  %614 = vmatmul.mubr.bf16.gmra.mxu0 %v538
  %v615 = vpop.f32.mrf.mxu0
  %v616 = vadd.f32 0.0, %v615
  %v617 = vpop.f32.mrf.mxu0
  %v618 = vadd.f32 0.0, %v617
  %v619 = vpop.f32.mrf.mxu0
  %v620 = vpop.f32.mrf.mxu0
  %621 = vdwg.mxu0
  %622 = vmatprep.subr.bf16.mxu0 0
  %623 = vmatpush1.bf16.msra.mxu0 0
  %624 = vmatprep.subr.bf16.mxu0 0
  %625 = vmatpush1.bf16.msra.mxu0 0
  %626 = vmatprep.subr.bf16.mxu0 0
  %627 = vmatpush1.bf16.msra.mxu0 0
  %628 = vmatprep.subr.bf16.mxu0 0
  %629 = vmatpush1.bf16.msra.mxu0 0
  %630 = vmatprep.subr.bf16.mxu0 0
  %631 = vmatpush1.bf16.msra.mxu0 0
  %632 = vmatprep.subr.bf16.mxu0 0
  %633 = vmatpush1.bf16.msra.mxu0 0
  %634 = vmatprep.subr.bf16.mxu0 0
  %635 = vmatpush1.bf16.msra.mxu0 0
  %636 = vmatprep.subr.bf16.mxu0 0
  %637 = vmatpush1.bf16.msra.mxu0 %v531
  %638 = vmatprep.subr.bf16.mxu0 0
  %639 = vmatpush2.bf16.msra.mxu0 0
  %640 = vmatprep.subr.bf16.mxu0 0
  %641 = vmatpush2.bf16.msra.mxu0 0
  %642 = vmatprep.subr.bf16.mxu0 0
  %643 = vmatpush2.bf16.msra.mxu0 0
  %644 = vmatprep.subr.bf16.mxu0 0
  %645 = vmatpush2.bf16.msra.mxu0 0
  %646 = vmatprep.subr.bf16.mxu0 0
  %647 = vmatpush2.bf16.msra.mxu0 0
  %648 = vmatprep.subr.bf16.mxu0 0
  %649 = vmatpush2.bf16.msra.mxu0 0
  %650 = vmatprep.subr.bf16.mxu0 0
  %651 = vmatpush2.bf16.msra.mxu0 0
  %652 = vmatprep.subr.bf16.mxu0 0
  %653 = vmatpush2.bf16.msra.mxu0 0
  %654 = vmatprep.mubr.bf16.mxu0 0
  %655 = vmatmul.mubr.bf16.gmra.mxu0 %v538
  %v656 = vpop.f32.mrf.mxu0
  %v657 = vadd.f32 0.0, %v656
  %v658 = vpop.f32.mrf.mxu0
  %v659 = vpop.f32.mrf.mxu0
  %v660 = vpop.f32.mrf.mxu0
  %661 = vdwg.mxu0
  %v662 = vadd.f32 %v507, %v575
  %v663 = vadd.f32 %v508, %v577
  %v664 = vadd.f32 %v509, %v616
  %v665 = vadd.f32 %v510, %v618
  %v666 = vadd.f32 %v511, %v657
  %v667 = vld [vmem:[%s3] sm:$0xff]
  %669 = vset.pattern.permute.xlu0 0
  %670 = vperm.xlu0 %669, %v667
  %v671 = vpop.permute.xlu0 %670
  %v673 = vadd.f32 %v662, %v671
  %v674 = vadd.f32 %v663, %v671
  %v675 = vadd.f32 %v664, %v671
  %v676 = vadd.f32 %v665, %v671
  %v677 = vadd.f32 %v666, %v671
  %vm678 = vcmp.ge.f32.partialorder %v673, 0.0
  %vm679 = vcmp.ge.f32.partialorder %v674, 0.0
  %vm680 = vcmp.ge.f32.partialorder %v675, 0.0
  %vm681 = vcmp.ge.f32.partialorder %v676, 0.0
  %vm682 = vcmp.ge.f32.partialorder %v677, 0.0
  %v683 = vmul.f32 %v673, 0.2
  %v684 = vmul.f32 %v674, 0.2
  %v685 = vmul.f32 %v675, 0.2
  %v686 = vmul.f32 %v676, 0.2
  %v687 = vmul.f32 %v677, 0.2
  %v688 = vsel %vm678, %v673, %v683
  %v689 = vsel %vm679, %v674, %v684
  %v690 = vsel %vm680, %v675, %v685
  %v691 = vsel %vm681, %v676, %v686
  %v692 = vsel %vm682, %v677, %v687
  %v693 = vpack.c.bf16 %v688, %v688
  %v694 = vpack.c.bf16 %v689, %v689
  %v695 = vpack.c.bf16 %v690, %v690
  %v696 = vpack.c.bf16 %v691, %v691
  %v697 = vpack.c.bf16 %v692, %v692
  %v703 = vunpack.c.l.b16 %v693
  %v704 = vunpack.c.l.b16 %v694
  %v705 = vunpack.c.l.b16 %v695
  %v706 = vunpack.c.l.b16 %v696
  %v707 = vunpack.c.l.b16 %v697
  %v708 = vpack.c.b16 %v704, %v703
  %v709 = vpack.c.b16 %v706, %v705
  %v710 = vpack.c.b16 %v707, %v707
  %714 = vst [vmem:[%s4] sm:$0xff] %v708
  %715 = vst [vmem:[%s4 + $0x8] sm:$0xff] %v709
  %716 = vst [vmem:[%s4 + $0x10] sm:$0xf] %v710
  // Predicated region
  $region18: #{nlayer_discriminator_forward.5} parent=0 // pred_check
    _
  $region19: #{nlayer_discriminator_forward.5} parent=0 // pred_check_branch
    %718 = sbr.rel (0) target = $region21
  $region20: #{nlayer_discriminator_forward.5} parent=0 // pred_region
    _
  $region21: #{nlayer_discriminator_forward.5} parent=0 // pred_fallthru
    _
  // Predicated region
  $region22: #{nlayer_discriminator_forward.5} parent=0 // pred_check
    _
  $region23: #{nlayer_discriminator_forward.5} parent=0 // pred_check_branch
    %720 = sbr.rel (0) target = $region25
  $region24: #{nlayer_discriminator_forward.5} parent=0 // pred_region
    _
  $region25: #{nlayer_discriminator_forward.5} parent=0 // pred_fallthru
    _

// kernel: nlayer_discriminator_forward.6
$region0: #{nlayer_discriminator_forward.6}
  #allocation0 [shape = 'u32[]', space=smem, size = 0x4, offset = 0x4, fixed_abs, tag = 'smem constant byte address 0x4 - core index']
  #allocation1 [shape = 'u32[144,128]{1,0:T(1,128)}', space=vmem, size = 0x12000, scoped, tag = 'internal scratch']
  %s0 = inlined_call_operand.vmem [shape: bf16[4,16,32], index: 0, kind: input, shape index: {}]
  %s1 = inlined_call_operand.vmem [shape: bf16[32,384], index: 1, kind: input, shape index: {}]
  %s2 = inlined_call_operand.vmem [shape: f32[1,256], index: 2, kind: input, shape index: {}]
  %s3 = inlined_call_operand.vmem [shape: f32[16,3], index: 3, kind: input, shape index: {}]
  %s4 = inlined_call_operand.vmem [shape: bf16[16,256], index: 4, kind: output, shape index: {}]
  %s5 = sld [smem:[#allocation0]]
  $region26: #{nlayer_discriminator_forward.6} parent=0
    _
  %s7 = ssub.s32 1, %s5
  %s8 = scalar_select 0, %s7, %s5
  // Predicated region
  $region2: #{nlayer_discriminator_forward.6} parent=0 // pred_check
    _
  $region3: #{nlayer_discriminator_forward.6} parent=0 // pred_check_branch
    %10 = sbr.rel (0) target = $region5
  $region4: #{nlayer_discriminator_forward.6} parent=0 // pred_region
    _
  $region5: #{nlayer_discriminator_forward.6} parent=0 // pred_fallthru
    _
  // Predicated region
  $region6: #{nlayer_discriminator_forward.6} parent=0 // pred_check
    _
  $region7: #{nlayer_discriminator_forward.6} parent=0 // pred_check_branch
    %12 = sbr.rel (0) target = $region9
  $region8: #{nlayer_discriminator_forward.6} parent=0 // pred_region
    _
  $region9: #{nlayer_discriminator_forward.6} parent=0 // pred_fallthru
    _
  // Predicated region
  $region10: #{nlayer_discriminator_forward.6} parent=0 // pred_check
    _
  $region11: #{nlayer_discriminator_forward.6} parent=0 // pred_check_branch
    %14 = sbr.rel (0) target = $region13
  $region12: #{nlayer_discriminator_forward.6} parent=0 // pred_region
    _
  $region13: #{nlayer_discriminator_forward.6} parent=0 // pred_fallthru
    _
  // Predicated region
  $region14: #{nlayer_discriminator_forward.6} parent=0 // pred_check
    _
  $region15: #{nlayer_discriminator_forward.6} parent=0 // pred_check_branch
    %16 = sbr.rel (0) target = $region17
  $region16: #{nlayer_discriminator_forward.6} parent=0 // pred_region
    _
  $region17: #{nlayer_discriminator_forward.6} parent=0 // pred_fallthru
    _
  %v18 = vld [vmem:[%s0] sm:$0xf]
  %v19 = vld [vmem:[%s0 + $0x4] sm:$0xf]
  %v20 = vld [vmem:[%s1] sm:$0xff]
  %v21 = vld [vmem:[%s1 + $0xc] sm:$0xff]
  %v22 = vld [vmem:[%s1 + $0x18] sm:$0xff]
  %v23 = vld [vmem:[%s1 + $0x24] sm:$0xff]
  %s24 = scalar_lea.vmem %s0, 8
  %v25 = vld [vmem:[%s24] sm:$0xf]
  %v26 = vld [vmem:[%s24 + $0x4] sm:$0xf]
  %v27 = vld [vmem:[%s1] sm:$0xff]
  %v28 = vld [vmem:[%s1 + $0x8] sm:$0xf]
  %v29 = vld [vmem:[%s1 + $0xc] sm:$0xff]
  %v30 = vld [vmem:[%s1 + $0x14] sm:$0xf]
  %v31 = vld [vmem:[%s1 + $0x18] sm:$0xff]
  %v32 = vld [vmem:[%s1 + $0x20] sm:$0xf]
  %v33 = vld [vmem:[%s1 + $0x24] sm:$0xff]
  %v34 = vld [vmem:[%s1 + $0x2c] sm:$0xf]
  %v37 = vunpack.c.l.b16 %v25
  %v38 = vunpack.c.l.b16 %v26
  %v39 = vpack.c.b16 %v38, %v37
  %v48 = vunpack.c.l.b16 %v27
  %v49 = vunpack.c.h.b16 %v27
  %v50 = vunpack.c.l.b16 %v28
  %v51 = vunpack.c.l.b16 %v29
  %v52 = vunpack.c.h.b16 %v29
  %v53 = vunpack.c.l.b16 %v30
  %v54 = vunpack.c.l.b16 %v31
  %v55 = vunpack.c.h.b16 %v31
  %v56 = vunpack.c.l.b16 %v32
  %v57 = vunpack.c.l.b16 %v33
  %v58 = vunpack.c.h.b16 %v33
  %v59 = vunpack.c.l.b16 %v34
  %v60 = vpack.c.b16 %v51, %v48
  %v61 = vpack.c.b16 %v52, %v49
  %v62 = vpack.c.b16 %v53, %v50
  %v63 = vpack.c.b16 %v57, %v54
  %v64 = vpack.c.b16 %v58, %v55
  %v65 = vpack.c.b16 %v59, %v56
  %66 = vrot.lane.b32.xlu0 %v60, 127
  %v67 = vpop.permute.xlu0 %66
  %68 = vrot.lane.b32.xlu0 %v61, 127
  %v69 = vpop.permute.xlu0 %68
  %70 = vrot.lane.b32.xlu0 %v62, 127
  %v71 = vpop.permute.xlu0 %70
  %72 = vrot.lane.b32.xlu0 %v63, 127
  %v73 = vpop.permute.xlu0 %72
  %74 = vrot.lane.b32.xlu0 %v64, 127
  %v75 = vpop.permute.xlu0 %74
  %76 = vrot.lane.b32.xlu0 %v65, 127
  %v77 = vpop.permute.xlu0 %76
  %vm78 = vcmask 1039360
  %v79 = vsel %vm78, %v67, %v69
  %v80 = vsel %vm78, %v69, %v71
  %v81 = vsel %vm78, %v73, %v75
  %v82 = vsel %vm78, %v75, %v77
  %vm87 = vcmask 261120
  %v89 = vsel %vm87, %v39, 0
  %91 = vmatprep.subr.bf16.mxu0 0
  %92 = vmatpush1.bf16.msra.mxu0 0
  %93 = vmatprep.subr.bf16.mxu0 0
  %94 = vmatpush1.bf16.msra.mxu0 0
  %95 = vmatprep.subr.bf16.mxu0 0
  %96 = vmatpush1.bf16.msra.mxu0 0
  %97 = vmatprep.subr.bf16.mxu0 0
  %98 = vmatpush1.bf16.msra.mxu0 0
  %99 = vmatprep.subr.bf16.mxu0 0
  %100 = vmatpush1.bf16.msra.mxu0 0
  %101 = vmatprep.subr.bf16.mxu0 0
  %102 = vmatpush1.bf16.msra.mxu0 0
  %103 = vmatprep.subr.bf16.mxu0 %v82
  %104 = vmatpush1.bf16.msra.mxu0 %v81
  %105 = vmatprep.subr.bf16.mxu0 %v80
  %106 = vmatpush1.bf16.msra.mxu0 %v79
  %107 = vmatprep.subr.bf16.mxu0 0
  %108 = vmatpush2.bf16.msra.mxu0 0
  %109 = vmatprep.subr.bf16.mxu0 0
  %110 = vmatpush2.bf16.msra.mxu0 0
  %111 = vmatprep.subr.bf16.mxu0 0
  %112 = vmatpush2.bf16.msra.mxu0 0
  %113 = vmatprep.subr.bf16.mxu0 0
  %114 = vmatpush2.bf16.msra.mxu0 0
  %115 = vmatprep.subr.bf16.mxu0 0
  %116 = vmatpush2.bf16.msra.mxu0 0
  %117 = vmatprep.subr.bf16.mxu0 0
  %118 = vmatpush2.bf16.msra.mxu0 0
  %119 = vmatprep.subr.bf16.mxu0 0
  %120 = vmatpush2.bf16.msra.mxu0 0
  %121 = vmatprep.subr.bf16.mxu0 0
  %122 = vmatpush2.bf16.msra.mxu0 0
  %123 = vmatprep.mubr.bf16.mxu0 0
  %124 = vmatmul.mubr.bf16.gmra.mxu0 %v89
  %v125 = vpop.f32.mrf.mxu0
  %v126 = vadd.f32 0.0, %v125
  %v127 = vpop.f32.mrf.mxu0
  %v128 = vadd.f32 0.0, %v127
  %v129 = vpop.f32.mrf.mxu0
  %v130 = vadd.f32 0.0, %v129
  %v131 = vpop.f32.mrf.mxu0
  %v132 = vadd.f32 0.0, %v131
  %133 = vdwg.mxu0
  %v136 = vunpack.c.l.b16 %v18
  %v137 = vunpack.c.l.b16 %v19
  %v138 = vpack.c.b16 %v137, %v136
  %v143 = vunpack.c.l.b16 %v20
  %v144 = vunpack.c.h.b16 %v20
  %v145 = vunpack.c.l.b16 %v21
  %v146 = vunpack.c.h.b16 %v21
  %v147 = vunpack.c.l.b16 %v22
  %v148 = vunpack.c.h.b16 %v22
  %v149 = vunpack.c.l.b16 %v23
  %v150 = vunpack.c.h.b16 %v23
  %v151 = vpack.c.b16 %v145, %v143
  %v152 = vpack.c.b16 %v146, %v144
  %v153 = vpack.c.b16 %v149, %v147
  %v154 = vpack.c.b16 %v150, %v148
  %v160 = vsel %vm87, %v138, 0
  %162 = vmatprep.subr.bf16.mxu0 0
  %163 = vmatpush1.bf16.msra.mxu0 0
  %164 = vmatprep.subr.bf16.mxu0 0
  %165 = vmatpush1.bf16.msra.mxu0 0
  %166 = vmatprep.subr.bf16.mxu0 0
  %167 = vmatpush1.bf16.msra.mxu0 0
  %168 = vmatprep.subr.bf16.mxu0 0
  %169 = vmatpush1.bf16.msra.mxu0 0
  %170 = vmatprep.subr.bf16.mxu0 0
  %171 = vmatpush1.bf16.msra.mxu0 0
  %172 = vmatprep.subr.bf16.mxu0 0
  %173 = vmatpush1.bf16.msra.mxu0 0
  %174 = vmatprep.subr.bf16.mxu0 %v154
  %175 = vmatpush1.bf16.msra.mxu0 %v153
  %176 = vmatprep.subr.bf16.mxu0 %v152
  %177 = vmatpush1.bf16.msra.mxu0 %v151
  %178 = vmatprep.subr.bf16.mxu0 0
  %179 = vmatpush2.bf16.msra.mxu0 0
  %180 = vmatprep.subr.bf16.mxu0 0
  %181 = vmatpush2.bf16.msra.mxu0 0
  %182 = vmatprep.subr.bf16.mxu0 0
  %183 = vmatpush2.bf16.msra.mxu0 0
  %184 = vmatprep.subr.bf16.mxu0 0
  %185 = vmatpush2.bf16.msra.mxu0 0
  %186 = vmatprep.subr.bf16.mxu0 0
  %187 = vmatpush2.bf16.msra.mxu0 0
  %188 = vmatprep.subr.bf16.mxu0 0
  %189 = vmatpush2.bf16.msra.mxu0 0
  %190 = vmatprep.subr.bf16.mxu0 0
  %191 = vmatpush2.bf16.msra.mxu0 0
  %192 = vmatprep.subr.bf16.mxu0 0
  %193 = vmatpush2.bf16.msra.mxu0 0
  %194 = vmatprep.mubr.bf16.mxu0 0
  %195 = vmatmul.mubr.bf16.gmra.mxu0 %v160
  %v196 = vpop.f32.mrf.mxu0
  %v197 = vadd.f32 %v126, %v196
  %v198 = vpop.f32.mrf.mxu0
  %v199 = vadd.f32 %v128, %v198
  %v200 = vpop.f32.mrf.mxu0
  %v201 = vadd.f32 %v130, %v200
  %v202 = vpop.f32.mrf.mxu0
  %v203 = vadd.f32 %v132, %v202
  %204 = vdwg.mxu0
  %s205 = scalar_lea.vmem %s0, 16
  %v206 = vld [vmem:[%s205] sm:$0xf]
  %v207 = vld [vmem:[%s205 + $0x4] sm:$0xf]
  %v210 = vunpack.c.l.b16 %v206
  %v211 = vunpack.c.l.b16 %v207
  %v212 = vpack.c.b16 %v211, %v210
  %213 = vrot.lane.b32.xlu0 %v60, 119
  %v214 = vpop.permute.xlu0 %213
  %215 = vrot.lane.b32.xlu0 %v61, 119
  %v216 = vpop.permute.xlu0 %215
  %217 = vrot.lane.b32.xlu0 %v62, 119
  %v218 = vpop.permute.xlu0 %217
  %219 = vrot.lane.b32.xlu0 %v63, 119
  %v220 = vpop.permute.xlu0 %219
  %221 = vrot.lane.b32.xlu0 %v64, 119
  %v222 = vpop.permute.xlu0 %221
  %223 = vrot.lane.b32.xlu0 %v65, 119
  %v224 = vpop.permute.xlu0 %223
  %vm225 = vcmask 973824
  %v226 = vsel %vm225, %v214, %v216
  %v227 = vsel %vm225, %v216, %v218
  %v228 = vsel %vm225, %v220, %v222
  %v229 = vsel %vm225, %v222, %v224
  %v235 = vsel %vm87, %v212, 0
  %237 = vmatprep.subr.bf16.mxu0 0
  %238 = vmatpush1.bf16.msra.mxu0 0
  %239 = vmatprep.subr.bf16.mxu0 0
  %240 = vmatpush1.bf16.msra.mxu0 0
  %241 = vmatprep.subr.bf16.mxu0 0
  %242 = vmatpush1.bf16.msra.mxu0 0
  %243 = vmatprep.subr.bf16.mxu0 0
  %244 = vmatpush1.bf16.msra.mxu0 0
  %245 = vmatprep.subr.bf16.mxu0 0
  %246 = vmatpush1.bf16.msra.mxu0 0
  %247 = vmatprep.subr.bf16.mxu0 0
  %248 = vmatpush1.bf16.msra.mxu0 0
  %249 = vmatprep.subr.bf16.mxu0 %v229
  %250 = vmatpush1.bf16.msra.mxu0 %v228
  %251 = vmatprep.subr.bf16.mxu0 %v227
  %252 = vmatpush1.bf16.msra.mxu0 %v226
  %253 = vmatprep.subr.bf16.mxu0 0
  %254 = vmatpush2.bf16.msra.mxu0 0
  %255 = vmatprep.subr.bf16.mxu0 0
  %256 = vmatpush2.bf16.msra.mxu0 0
  %257 = vmatprep.subr.bf16.mxu0 0
  %258 = vmatpush2.bf16.msra.mxu0 0
  %259 = vmatprep.subr.bf16.mxu0 0
  %260 = vmatpush2.bf16.msra.mxu0 0
  %261 = vmatprep.subr.bf16.mxu0 0
  %262 = vmatpush2.bf16.msra.mxu0 0
  %263 = vmatprep.subr.bf16.mxu0 0
  %264 = vmatpush2.bf16.msra.mxu0 0
  %265 = vmatprep.subr.bf16.mxu0 0
  %266 = vmatpush2.bf16.msra.mxu0 0
  %267 = vmatprep.subr.bf16.mxu0 0
  %268 = vmatpush2.bf16.msra.mxu0 0
  %269 = vmatprep.mubr.bf16.mxu0 0
  %270 = vmatmul.mubr.bf16.gmra.mxu0 %v235
  %v271 = vpop.f32.mrf.mxu0
  %v272 = vadd.f32 0.0, %v271
  %v273 = vpop.f32.mrf.mxu0
  %v274 = vadd.f32 0.0, %v273
  %v275 = vpop.f32.mrf.mxu0
  %v276 = vadd.f32 0.0, %v275
  %v277 = vpop.f32.mrf.mxu0
  %v278 = vadd.f32 0.0, %v277
  %279 = vdwg.mxu0
  %v280 = vadd.f32 %v197, %v272
  %v281 = vadd.f32 %v199, %v274
  %v282 = vadd.f32 %v201, %v276
  %v283 = vadd.f32 %v203, %v278
  %s284 = scalar_lea.vmem %s0, 24
  %v285 = vld [vmem:[%s284] sm:$0xf]
  %v286 = vld [vmem:[%s284 + $0x4] sm:$0xf]
  %v289 = vunpack.c.l.b16 %v285
  %v290 = vunpack.c.l.b16 %v286
  %v291 = vpack.c.b16 %v290, %v289
  %292 = vrot.lane.b32.xlu0 %v60, 118
  %v293 = vpop.permute.xlu0 %292
  %294 = vrot.lane.b32.xlu0 %v61, 118
  %v295 = vpop.permute.xlu0 %294
  %296 = vrot.lane.b32.xlu0 %v62, 118
  %v297 = vpop.permute.xlu0 %296
  %298 = vrot.lane.b32.xlu0 %v63, 118
  %v299 = vpop.permute.xlu0 %298
  %300 = vrot.lane.b32.xlu0 %v64, 118
  %v301 = vpop.permute.xlu0 %300
  %302 = vrot.lane.b32.xlu0 %v65, 118
  %v303 = vpop.permute.xlu0 %302
  %vm304 = vcmask 965632
  %v305 = vsel %vm304, %v293, %v295
  %v306 = vsel %vm304, %v295, %v297
  %v307 = vsel %vm304, %v299, %v301
  %v308 = vsel %vm304, %v301, %v303
  %v314 = vsel %vm87, %v291, 0
  %316 = vmatprep.subr.bf16.mxu0 0
  %317 = vmatpush1.bf16.msra.mxu0 0
  %318 = vmatprep.subr.bf16.mxu0 0
  %319 = vmatpush1.bf16.msra.mxu0 0
  %320 = vmatprep.subr.bf16.mxu0 0
  %321 = vmatpush1.bf16.msra.mxu0 0
  %322 = vmatprep.subr.bf16.mxu0 0
  %323 = vmatpush1.bf16.msra.mxu0 0
  %324 = vmatprep.subr.bf16.mxu0 0
  %325 = vmatpush1.bf16.msra.mxu0 0
  %326 = vmatprep.subr.bf16.mxu0 0
  %327 = vmatpush1.bf16.msra.mxu0 0
  %328 = vmatprep.subr.bf16.mxu0 %v308
  %329 = vmatpush1.bf16.msra.mxu0 %v307
  %330 = vmatprep.subr.bf16.mxu0 %v306
  %331 = vmatpush1.bf16.msra.mxu0 %v305
  %332 = vmatprep.subr.bf16.mxu0 0
  %333 = vmatpush2.bf16.msra.mxu0 0
  %334 = vmatprep.subr.bf16.mxu0 0
  %335 = vmatpush2.bf16.msra.mxu0 0
  %336 = vmatprep.subr.bf16.mxu0 0
  %337 = vmatpush2.bf16.msra.mxu0 0
  %338 = vmatprep.subr.bf16.mxu0 0
  %339 = vmatpush2.bf16.msra.mxu0 0
  %340 = vmatprep.subr.bf16.mxu0 0
  %341 = vmatpush2.bf16.msra.mxu0 0
  %342 = vmatprep.subr.bf16.mxu0 0
  %343 = vmatpush2.bf16.msra.mxu0 0
  %344 = vmatprep.subr.bf16.mxu0 0
  %345 = vmatpush2.bf16.msra.mxu0 0
  %346 = vmatprep.subr.bf16.mxu0 0
  %347 = vmatpush2.bf16.msra.mxu0 0
  %348 = vmatprep.mubr.bf16.mxu0 0
  %349 = vmatmul.mubr.bf16.gmra.mxu0 %v314
  %v350 = vpop.f32.mrf.mxu0
  %v351 = vadd.f32 0.0, %v350
  %v352 = vpop.f32.mrf.mxu0
  %v353 = vadd.f32 0.0, %v352
  %v354 = vpop.f32.mrf.mxu0
  %v355 = vadd.f32 0.0, %v354
  %v356 = vpop.f32.mrf.mxu0
  %v357 = vadd.f32 0.0, %v356
  %358 = vdwg.mxu0
  %v359 = vadd.f32 %v280, %v351
  %v360 = vadd.f32 %v281, %v353
  %v361 = vadd.f32 %v282, %v355
  %v362 = vadd.f32 %v283, %v357
  %v363 = vld [vmem:[%s3] sm:$0xff]
  %v364 = vld [vmem:[%s3 + $0x8] sm:$0xff]
  %v365 = vld [vmem:[%s2] sm:$0x3]
  %v367 = vlaneseq
  %v368 = vshrl.u32 %v367, 7
  %v369 = vsub.s32 0, %v368
  %v370 = vrot.slane %v365, %v369
  %v371 = vlaneseq
  %v372 = vshrl.u32 %v371, 7
  %v373 = vsub.s32 1, %v372
  %v374 = vrot.slane %v365, %v373
  %v377 = vmul.f32 %v359, %v370
  %v378 = vmul.f32 %v360, %v374
  %v379 = vmul.f32 %v361, %v370
  %v380 = vmul.f32 %v362, %v374
  %v381 = vadd.f32 %v377, %v378
  %382 = vadd.xlane.f32.xlu0 %v381
  %v383 = vpop.xlane.xlu0 %382
  %v384 = vadd.f32 %v379, %v380
  %385 = vadd.xlane.f32.xlu0 %v384
  %v386 = vpop.xlane.xlu0 %385
  %v387 = vmul.f32 %v383, 0.0078125
  %v388 = vmul.f32 %v386, 0.0078125
  %v389 = vmul.f32 %v377, %v359
  %v390 = vmul.f32 %v378, %v360
  %v391 = vmul.f32 %v379, %v361
  %v392 = vmul.f32 %v380, %v362
  %v393 = vadd.f32 %v389, %v390
  %394 = vadd.xlane.f32.xlu0 %v393
  %v395 = vpop.xlane.xlu0 %394
  %v396 = vadd.f32 %v391, %v392
  %397 = vadd.xlane.f32.xlu0 %v396
  %v398 = vpop.xlane.xlu0 %397
  %v399 = vmul.f32 %v395, 0.0078125
  %v400 = vmul.f32 %v398, 0.0078125
  %v401 = vmul.f32 %v387, %v387
  %v402 = vmul.f32 %v388, %v388
  %v403 = vsub.f32 %v399, %v401
  %v404 = vsub.f32 %v400, %v402
  %v405 = vsub.f32 %v359, %v387
  %v406 = vsub.f32 %v360, %v387
  %v407 = vsub.f32 %v361, %v388
  %v408 = vsub.f32 %v362, %v388
  %v409 = vadd.f32 %v403, 1e-05
  %v410 = vadd.f32 %v404, 1e-05
  %v411 = vrsqrt.pop %v409
  %v412 = vrsqrt.pop %v410
  %v413 = vmul.f32 %v405, %v411
  %v414 = vmul.f32 %v406, %v411
  %v415 = vmul.f32 %v407, %v412
  %v416 = vmul.f32 %v408, %v412
  %418 = vset.pattern.permute.xlu0 1
  %419 = vperm.xlu0 %418, %v363
  %v420 = vpop.permute.xlu0 %419
  %423 = vset.pattern.permute.xlu0 1
  %424 = vperm.xlu0 %423, %v364
  %v425 = vpop.permute.xlu0 %424
  %v427 = vmul.f32 %v413, %v420
  %v428 = vmul.f32 %v414, %v420
  %v429 = vmul.f32 %v415, %v425
  %v430 = vmul.f32 %v416, %v425
  %431 = vset.pattern.permute.xlu0 2
  %432 = vperm.xlu0 %431, %v363
  %v433 = vpop.permute.xlu0 %432
  %435 = vset.pattern.permute.xlu0 2
  %436 = vperm.xlu0 %435, %v364
  %v437 = vpop.permute.xlu0 %436
  %v439 = vadd.f32 %v427, %v433
  %v440 = vadd.f32 %v428, %v433
  %v441 = vadd.f32 %v429, %v437
  %v442 = vadd.f32 %v430, %v437
  %vm443 = vcmp.ge.f32.partialorder %v439, 0.0
  %vm444 = vcmp.ge.f32.partialorder %v440, 0.0
  %vm445 = vcmp.ge.f32.partialorder %v441, 0.0
  %vm446 = vcmp.ge.f32.partialorder %v442, 0.0
  %v447 = vmul.f32 %v439, 0.2
  %v448 = vmul.f32 %v440, 0.2
  %v449 = vmul.f32 %v441, 0.2
  %v450 = vmul.f32 %v442, 0.2
  %v451 = vsel %vm443, %v439, %v447
  %v452 = vsel %vm444, %v440, %v448
  %v453 = vsel %vm445, %v441, %v449
  %v454 = vsel %vm446, %v442, %v450
  %v455 = vpack.c.bf16 %v453, %v451
  %v456 = vpack.c.bf16 %v454, %v452
  %v459 = vunpack.c.l.b16 %v455
  %v460 = vunpack.c.l.b16 %v456
  %v461 = vunpack.c.h.b16 %v455
  %v462 = vunpack.c.h.b16 %v456
  %v463 = vpack.c.b16 %v460, %v459
  %v464 = vpack.c.b16 %v462, %v461
  %467 = vst [vmem:[%s4] sm:$0xff] %v463
  %468 = vst [vmem:[%s4 + $0x8] sm:$0xff] %v464
  // Predicated region
  $region18: #{nlayer_discriminator_forward.6} parent=0 // pred_check
    _
  $region19: #{nlayer_discriminator_forward.6} parent=0 // pred_check_branch
    %470 = sbr.rel (0) target = $region21
  $region20: #{nlayer_discriminator_forward.6} parent=0 // pred_region
    _
  $region21: #{nlayer_discriminator_forward.6} parent=0 // pred_fallthru
    _
  // Predicated region
  $region22: #{nlayer_discriminator_forward.6} parent=0 // pred_check
    _
  $region23: #{nlayer_discriminator_forward.6} parent=0 // pred_check_branch
    %472 = sbr.rel (0) target = $region25
  $region24: #{nlayer_discriminator_forward.6} parent=0 // pred_region
    _
  $region25: #{nlayer_discriminator_forward.6} parent=0 // pred_fallthru
    _

// kernel: nlayer_discriminator_forward.7
$region0: #{nlayer_discriminator_forward.7}
  #allocation0 [shape = 'u32[]', space=smem, size = 0x4, offset = 0x4, fixed_abs, tag = 'smem constant byte address 0x4 - core index']
  #allocation1 [shape = 'u32[144,128]{1,0:T(1,128)}', space=vmem, size = 0x12000, scoped, tag = 'internal scratch']
  %s0 = inlined_call_operand.vmem [shape: bf16[4,32,64], index: 0, kind: input, shape index: {}]
  %s1 = inlined_call_operand.vmem [shape: bf16[64,256], index: 1, kind: input, shape index: {}]
  %s2 = inlined_call_operand.vmem [shape: f32[1,128], index: 2, kind: input, shape index: {}]
  %s3 = inlined_call_operand.vmem [shape: f32[32,3], index: 3, kind: input, shape index: {}]
  %s4 = inlined_call_operand.vmem [shape: bf16[32,128], index: 4, kind: output, shape index: {}]
  %s5 = sld [smem:[#allocation0]]
  $region26: #{nlayer_discriminator_forward.7} parent=0
    _
  %s7 = ssub.s32 1, %s5
  %s8 = scalar_select 0, %s7, %s5
  // Predicated region
  $region2: #{nlayer_discriminator_forward.7} parent=0 // pred_check
    _
  $region3: #{nlayer_discriminator_forward.7} parent=0 // pred_check_branch
    %10 = sbr.rel (0) target = $region5
  $region4: #{nlayer_discriminator_forward.7} parent=0 // pred_region
    _
  $region5: #{nlayer_discriminator_forward.7} parent=0 // pred_fallthru
    _
  // Predicated region
  $region6: #{nlayer_discriminator_forward.7} parent=0 // pred_check
    _
  $region7: #{nlayer_discriminator_forward.7} parent=0 // pred_check_branch
    %12 = sbr.rel (0) target = $region9
  $region8: #{nlayer_discriminator_forward.7} parent=0 // pred_region
    _
  $region9: #{nlayer_discriminator_forward.7} parent=0 // pred_fallthru
    _
  // Predicated region
  $region10: #{nlayer_discriminator_forward.7} parent=0 // pred_check
    _
  $region11: #{nlayer_discriminator_forward.7} parent=0 // pred_check_branch
    %14 = sbr.rel (0) target = $region13
  $region12: #{nlayer_discriminator_forward.7} parent=0 // pred_region
    _
  $region13: #{nlayer_discriminator_forward.7} parent=0 // pred_fallthru
    _
  // Predicated region
  $region14: #{nlayer_discriminator_forward.7} parent=0 // pred_check
    _
  $region15: #{nlayer_discriminator_forward.7} parent=0 // pred_check_branch
    %16 = sbr.rel (0) target = $region17
  $region16: #{nlayer_discriminator_forward.7} parent=0 // pred_region
    _
  $region17: #{nlayer_discriminator_forward.7} parent=0 // pred_fallthru
    _
  %v18 = vld [vmem:[%s0] sm:$0xf]
  %v19 = vld [vmem:[%s0 + $0x4] sm:$0xf]
  %v20 = vld [vmem:[%s0 + $0x8] sm:$0xf]
  %v21 = vld [vmem:[%s0 + $0xc] sm:$0xf]
  %v22 = vld [vmem:[%s1] sm:$0xf]
  %v23 = vld [vmem:[%s1 + $0x8] sm:$0xf]
  %v24 = vld [vmem:[%s1 + $0x10] sm:$0xf]
  %v25 = vld [vmem:[%s1 + $0x18] sm:$0xf]
  %v26 = vld [vmem:[%s1 + $0x20] sm:$0xf]
  %v27 = vld [vmem:[%s1 + $0x28] sm:$0xf]
  %v28 = vld [vmem:[%s1 + $0x30] sm:$0xf]
  %v29 = vld [vmem:[%s1 + $0x38] sm:$0xf]
  %s30 = scalar_lea.vmem %s0, 16
  %v31 = vld [vmem:[%s30] sm:$0xf]
  %v32 = vld [vmem:[%s30 + $0x4] sm:$0xf]
  %v33 = vld [vmem:[%s30 + $0x8] sm:$0xf]
  %v34 = vld [vmem:[%s30 + $0xc] sm:$0xf]
  %v35 = vld [vmem:[%s1] sm:$0xff]
  %v36 = vld [vmem:[%s1 + $0x8] sm:$0xff]
  %v37 = vld [vmem:[%s1 + $0x10] sm:$0xff]
  %v38 = vld [vmem:[%s1 + $0x18] sm:$0xff]
  %v39 = vld [vmem:[%s1 + $0x20] sm:$0xff]
  %v40 = vld [vmem:[%s1 + $0x28] sm:$0xff]
  %v41 = vld [vmem:[%s1 + $0x30] sm:$0xff]
  %v42 = vld [vmem:[%s1 + $0x38] sm:$0xff]
  %v47 = vunpack.c.l.b16 %v31
  %v48 = vunpack.c.l.b16 %v32
  %v49 = vunpack.c.l.b16 %v33
  %v50 = vunpack.c.l.b16 %v34
  %v51 = vpack.c.b16 %v48, %v47
  %v52 = vpack.c.b16 %v50, %v49
  %v61 = vunpack.c.l.b16 %v35
  %v62 = vunpack.c.h.b16 %v35
  %v63 = vunpack.c.l.b16 %v36
  %v64 = vunpack.c.h.b16 %v36
  %v65 = vunpack.c.l.b16 %v37
  %v66 = vunpack.c.h.b16 %v37
  %v67 = vunpack.c.l.b16 %v38
  %v68 = vunpack.c.h.b16 %v38
  %v69 = vunpack.c.l.b16 %v39
  %v70 = vunpack.c.h.b16 %v39
  %v71 = vunpack.c.l.b16 %v40
  %v72 = vunpack.c.h.b16 %v40
  %v73 = vunpack.c.l.b16 %v41
  %v74 = vunpack.c.h.b16 %v41
  %v75 = vunpack.c.l.b16 %v42
  %v76 = vunpack.c.h.b16 %v42
  %v77 = vpack.c.b16 %v63, %v61
  %v78 = vpack.c.b16 %v64, %v62
  %v79 = vpack.c.b16 %v67, %v65
  %v80 = vpack.c.b16 %v68, %v66
  %v81 = vpack.c.b16 %v71, %v69
  %v82 = vpack.c.b16 %v72, %v70
  %v83 = vpack.c.b16 %v75, %v73
  %v84 = vpack.c.b16 %v76, %v74
  %85 = vrot.lane.b32.xlu0 %v77, 127
  %v86 = vpop.permute.xlu0 %85
  %87 = vrot.lane.b32.xlu0 %v78, 127
  %v88 = vpop.permute.xlu0 %87
  %89 = vrot.lane.b32.xlu0 %v79, 127
  %v90 = vpop.permute.xlu0 %89
  %91 = vrot.lane.b32.xlu0 %v80, 127
  %v92 = vpop.permute.xlu0 %91
  %93 = vrot.lane.b32.xlu0 %v81, 127
  %v94 = vpop.permute.xlu0 %93
  %95 = vrot.lane.b32.xlu0 %v82, 127
  %v96 = vpop.permute.xlu0 %95
  %97 = vrot.lane.b32.xlu0 %v83, 127
  %v98 = vpop.permute.xlu0 %97
  %99 = vrot.lane.b32.xlu0 %v84, 127
  %v100 = vpop.permute.xlu0 %99
  %vm101 = vcmask 1039360
  %v102 = vsel %vm101, %v86, %v88
  %v103 = vsel %vm101, %v90, %v92
  %v104 = vsel %vm101, %v94, %v96
  %v105 = vsel %vm101, %v98, %v100
  %vm110 = vcmask 523264
  %v112 = vsel %vm110, %v51, 0
  %v115 = vsel %vm110, %v52, 0
  %117 = vmatprep.subr.bf16.mxu0 0
  %118 = vmatpush1.bf16.msra.mxu0 0
  %119 = vmatprep.subr.bf16.mxu0 0
  %120 = vmatpush1.bf16.msra.mxu0 0
  %121 = vmatprep.subr.bf16.mxu0 0
  %122 = vmatpush1.bf16.msra.mxu0 0
  %123 = vmatprep.subr.bf16.mxu0 0
  %124 = vmatpush1.bf16.msra.mxu0 0
  %125 = vmatprep.subr.bf16.mxu0 0
  %126 = vmatpush1.bf16.msra.mxu0 %v105
  %127 = vmatprep.subr.bf16.mxu0 0
  %128 = vmatpush1.bf16.msra.mxu0 %v104
  %129 = vmatprep.subr.bf16.mxu0 0
  %130 = vmatpush1.bf16.msra.mxu0 %v103
  %131 = vmatprep.subr.bf16.mxu0 0
  %132 = vmatpush1.bf16.msra.mxu0 %v102
  %133 = vmatprep.subr.bf16.mxu0 0
  %134 = vmatpush2.bf16.msra.mxu0 0
  %135 = vmatprep.subr.bf16.mxu0 0
  %136 = vmatpush2.bf16.msra.mxu0 0
  %137 = vmatprep.subr.bf16.mxu0 0
  %138 = vmatpush2.bf16.msra.mxu0 0
  %139 = vmatprep.subr.bf16.mxu0 0
  %140 = vmatpush2.bf16.msra.mxu0 0
  %141 = vmatprep.subr.bf16.mxu0 0
  %142 = vmatpush2.bf16.msra.mxu0 0
  %143 = vmatprep.subr.bf16.mxu0 0
  %144 = vmatpush2.bf16.msra.mxu0 0
  %145 = vmatprep.subr.bf16.mxu0 0
  %146 = vmatpush2.bf16.msra.mxu0 0
  %147 = vmatprep.subr.bf16.mxu0 0
  %148 = vmatpush2.bf16.msra.mxu0 0
  %149 = vmatprep.mubr.bf16.mxu0 0
  %150 = vmatmul.mubr.bf16.gmra.mxu0 %v112
  %v151 = vpop.f32.mrf.mxu0
  %v152 = vadd.f32 0.0, %v151
  %v153 = vpop.f32.mrf.mxu0
  %v154 = vpop.f32.mrf.mxu0
  %v155 = vadd.f32 0.0, %v154
  %v156 = vpop.f32.mrf.mxu0
  %157 = vmatprep.mubr.bf16.mxu0 0
  %158 = vmatmul.mubr.bf16.gmra.mxu0 %v115
  %v159 = vpop.f32.mrf.mxu0
  %v160 = vadd.f32 0.0, %v159
  %v161 = vpop.f32.mrf.mxu0
  %v162 = vpop.f32.mrf.mxu0
  %v163 = vadd.f32 0.0, %v162
  %v164 = vpop.f32.mrf.mxu0
  %165 = vdwg.mxu0
  %v170 = vunpack.c.l.b16 %v18
  %v171 = vunpack.c.l.b16 %v19
  %v172 = vunpack.c.l.b16 %v20
  %v173 = vunpack.c.l.b16 %v21
  %v174 = vpack.c.b16 %v171, %v170
  %v175 = vpack.c.b16 %v173, %v172
  %v184 = vunpack.c.l.b16 %v22
  %v185 = vunpack.c.l.b16 %v23
  %v186 = vunpack.c.l.b16 %v24
  %v187 = vunpack.c.l.b16 %v25
  %v188 = vunpack.c.l.b16 %v26
  %v189 = vunpack.c.l.b16 %v27
  %v190 = vunpack.c.l.b16 %v28
  %v191 = vunpack.c.l.b16 %v29
  %v192 = vpack.c.b16 %v185, %v184
  %v193 = vpack.c.b16 %v187, %v186
  %v194 = vpack.c.b16 %v189, %v188
  %v195 = vpack.c.b16 %v191, %v190
  %v201 = vsel %vm110, %v174, 0
  %v204 = vsel %vm110, %v175, 0
  %206 = vmatprep.subr.bf16.mxu0 0
  %207 = vmatpush1.bf16.msra.mxu0 0
  %208 = vmatprep.subr.bf16.mxu0 0
  %209 = vmatpush1.bf16.msra.mxu0 0
  %210 = vmatprep.subr.bf16.mxu0 0
  %211 = vmatpush1.bf16.msra.mxu0 0
  %212 = vmatprep.subr.bf16.mxu0 0
  %213 = vmatpush1.bf16.msra.mxu0 0
  %214 = vmatprep.subr.bf16.mxu0 0
  %215 = vmatpush1.bf16.msra.mxu0 %v195
  %216 = vmatprep.subr.bf16.mxu0 0
  %217 = vmatpush1.bf16.msra.mxu0 %v194
  %218 = vmatprep.subr.bf16.mxu0 0
  %219 = vmatpush1.bf16.msra.mxu0 %v193
  %220 = vmatprep.subr.bf16.mxu0 0
  %221 = vmatpush1.bf16.msra.mxu0 %v192
  %222 = vmatprep.subr.bf16.mxu0 0
  %223 = vmatpush2.bf16.msra.mxu0 0
  %224 = vmatprep.subr.bf16.mxu0 0
  %225 = vmatpush2.bf16.msra.mxu0 0
  %226 = vmatprep.subr.bf16.mxu0 0
  %227 = vmatpush2.bf16.msra.mxu0 0
  %228 = vmatprep.subr.bf16.mxu0 0
  %229 = vmatpush2.bf16.msra.mxu0 0
  %230 = vmatprep.subr.bf16.mxu0 0
  %231 = vmatpush2.bf16.msra.mxu0 0
  %232 = vmatprep.subr.bf16.mxu0 0
  %233 = vmatpush2.bf16.msra.mxu0 0
  %234 = vmatprep.subr.bf16.mxu0 0
  %235 = vmatpush2.bf16.msra.mxu0 0
  %236 = vmatprep.subr.bf16.mxu0 0
  %237 = vmatpush2.bf16.msra.mxu0 0
  %238 = vmatprep.mubr.bf16.mxu0 0
  %239 = vmatmul.mubr.bf16.gmra.mxu0 %v201
  %v240 = vpop.f32.mrf.mxu0
  %v241 = vadd.f32 %v152, %v240
  %v242 = vpop.f32.mrf.mxu0
  %v243 = vpop.f32.mrf.mxu0
  %v244 = vadd.f32 %v155, %v243
  %v245 = vpop.f32.mrf.mxu0
  %246 = vmatprep.mubr.bf16.mxu0 0
  %247 = vmatmul.mubr.bf16.gmra.mxu0 %v204
  %v248 = vpop.f32.mrf.mxu0
  %v249 = vadd.f32 %v160, %v248
  %v250 = vpop.f32.mrf.mxu0
  %v251 = vpop.f32.mrf.mxu0
  %v252 = vadd.f32 %v163, %v251
  %v253 = vpop.f32.mrf.mxu0
  %254 = vdwg.mxu0
  %s255 = scalar_lea.vmem %s0, 32
  %v256 = vld [vmem:[%s255] sm:$0xf]
  %v257 = vld [vmem:[%s255 + $0x4] sm:$0xf]
  %v258 = vld [vmem:[%s255 + $0x8] sm:$0xf]
  %v259 = vld [vmem:[%s255 + $0xc] sm:$0xf]
  %v264 = vunpack.c.l.b16 %v256
  %v265 = vunpack.c.l.b16 %v257
  %v266 = vunpack.c.l.b16 %v258
  %v267 = vunpack.c.l.b16 %v259
  %v268 = vpack.c.b16 %v265, %v264
  %v269 = vpack.c.b16 %v267, %v266
  %270 = vrot.lane.b32.xlu0 %v77, 123
  %v271 = vpop.permute.xlu0 %270
  %272 = vrot.lane.b32.xlu0 %v78, 123
  %v273 = vpop.permute.xlu0 %272
  %274 = vrot.lane.b32.xlu0 %v79, 123
  %v275 = vpop.permute.xlu0 %274
  %276 = vrot.lane.b32.xlu0 %v80, 123
  %v277 = vpop.permute.xlu0 %276
  %278 = vrot.lane.b32.xlu0 %v81, 123
  %v279 = vpop.permute.xlu0 %278
  %280 = vrot.lane.b32.xlu0 %v82, 123
  %v281 = vpop.permute.xlu0 %280
  %282 = vrot.lane.b32.xlu0 %v83, 123
  %v283 = vpop.permute.xlu0 %282
  %284 = vrot.lane.b32.xlu0 %v84, 123
  %v285 = vpop.permute.xlu0 %284
  %vm286 = vcmask 1006592
  %v287 = vsel %vm286, %v271, %v273
  %v288 = vsel %vm286, %v275, %v277
  %v289 = vsel %vm286, %v279, %v281
  %v290 = vsel %vm286, %v283, %v285
  %v296 = vsel %vm110, %v268, 0
  %v299 = vsel %vm110, %v269, 0
  %301 = vmatprep.subr.bf16.mxu0 0
  %302 = vmatpush1.bf16.msra.mxu0 0
  %303 = vmatprep.subr.bf16.mxu0 0
  %304 = vmatpush1.bf16.msra.mxu0 0
  %305 = vmatprep.subr.bf16.mxu0 0
  %306 = vmatpush1.bf16.msra.mxu0 0
  %307 = vmatprep.subr.bf16.mxu0 0
  %308 = vmatpush1.bf16.msra.mxu0 0
  %309 = vmatprep.subr.bf16.mxu0 0
  %310 = vmatpush1.bf16.msra.mxu0 %v290
  %311 = vmatprep.subr.bf16.mxu0 0
  %312 = vmatpush1.bf16.msra.mxu0 %v289
  %313 = vmatprep.subr.bf16.mxu0 0
  %314 = vmatpush1.bf16.msra.mxu0 %v288
  %315 = vmatprep.subr.bf16.mxu0 0
  %316 = vmatpush1.bf16.msra.mxu0 %v287
  %317 = vmatprep.subr.bf16.mxu0 0
  %318 = vmatpush2.bf16.msra.mxu0 0
  %319 = vmatprep.subr.bf16.mxu0 0
  %320 = vmatpush2.bf16.msra.mxu0 0
  %321 = vmatprep.subr.bf16.mxu0 0
  %322 = vmatpush2.bf16.msra.mxu0 0
  %323 = vmatprep.subr.bf16.mxu0 0
  %324 = vmatpush2.bf16.msra.mxu0 0
  %325 = vmatprep.subr.bf16.mxu0 0
  %326 = vmatpush2.bf16.msra.mxu0 0
  %327 = vmatprep.subr.bf16.mxu0 0
  %328 = vmatpush2.bf16.msra.mxu0 0
  %329 = vmatprep.subr.bf16.mxu0 0
  %330 = vmatpush2.bf16.msra.mxu0 0
  %331 = vmatprep.subr.bf16.mxu0 0
  %332 = vmatpush2.bf16.msra.mxu0 0
  %333 = vmatprep.mubr.bf16.mxu0 0
  %334 = vmatmul.mubr.bf16.gmra.mxu0 %v296
  %v335 = vpop.f32.mrf.mxu0
  %v336 = vadd.f32 0.0, %v335
  %v337 = vpop.f32.mrf.mxu0
  %v338 = vpop.f32.mrf.mxu0
  %v339 = vadd.f32 0.0, %v338
  %v340 = vpop.f32.mrf.mxu0
  %341 = vmatprep.mubr.bf16.mxu0 0
  %342 = vmatmul.mubr.bf16.gmra.mxu0 %v299
  %v343 = vpop.f32.mrf.mxu0
  %v344 = vadd.f32 0.0, %v343
  %v345 = vpop.f32.mrf.mxu0
  %v346 = vpop.f32.mrf.mxu0
  %v347 = vadd.f32 0.0, %v346
  %v348 = vpop.f32.mrf.mxu0
  %349 = vdwg.mxu0
  %v350 = vadd.f32 %v241, %v336
  %v351 = vadd.f32 %v244, %v339
  %v352 = vadd.f32 %v249, %v344
  %v353 = vadd.f32 %v252, %v347
  %s354 = scalar_lea.vmem %s0, 48
  %v355 = vld [vmem:[%s354] sm:$0xf]
  %v356 = vld [vmem:[%s354 + $0x4] sm:$0xf]
  %v357 = vld [vmem:[%s354 + $0x8] sm:$0xf]
  %v358 = vld [vmem:[%s354 + $0xc] sm:$0xf]
  %v363 = vunpack.c.l.b16 %v355
  %v364 = vunpack.c.l.b16 %v356
  %v365 = vunpack.c.l.b16 %v357
  %v366 = vunpack.c.l.b16 %v358
  %v367 = vpack.c.b16 %v364, %v363
  %v368 = vpack.c.b16 %v366, %v365
  %369 = vrot.lane.b32.xlu0 %v77, 122
  %v370 = vpop.permute.xlu0 %369
  %371 = vrot.lane.b32.xlu0 %v78, 122
  %v372 = vpop.permute.xlu0 %371
  %373 = vrot.lane.b32.xlu0 %v79, 122
  %v374 = vpop.permute.xlu0 %373
  %375 = vrot.lane.b32.xlu0 %v80, 122
  %v376 = vpop.permute.xlu0 %375
  %377 = vrot.lane.b32.xlu0 %v81, 122
  %v378 = vpop.permute.xlu0 %377
  %379 = vrot.lane.b32.xlu0 %v82, 122
  %v380 = vpop.permute.xlu0 %379
  %381 = vrot.lane.b32.xlu0 %v83, 122
  %v382 = vpop.permute.xlu0 %381
  %383 = vrot.lane.b32.xlu0 %v84, 122
  %v384 = vpop.permute.xlu0 %383
  %vm385 = vcmask 998400
  %v386 = vsel %vm385, %v370, %v372
  %v387 = vsel %vm385, %v374, %v376
  %v388 = vsel %vm385, %v378, %v380
  %v389 = vsel %vm385, %v382, %v384
  %v395 = vsel %vm110, %v367, 0
  %v398 = vsel %vm110, %v368, 0
  %400 = vmatprep.subr.bf16.mxu0 0
  %401 = vmatpush1.bf16.msra.mxu0 0
  %402 = vmatprep.subr.bf16.mxu0 0
  %403 = vmatpush1.bf16.msra.mxu0 0
  %404 = vmatprep.subr.bf16.mxu0 0
  %405 = vmatpush1.bf16.msra.mxu0 0
  %406 = vmatprep.subr.bf16.mxu0 0
  %407 = vmatpush1.bf16.msra.mxu0 0
  %408 = vmatprep.subr.bf16.mxu0 0
  %409 = vmatpush1.bf16.msra.mxu0 %v389
  %410 = vmatprep.subr.bf16.mxu0 0
  %411 = vmatpush1.bf16.msra.mxu0 %v388
  %412 = vmatprep.subr.bf16.mxu0 0
  %413 = vmatpush1.bf16.msra.mxu0 %v387
  %414 = vmatprep.subr.bf16.mxu0 0
  %415 = vmatpush1.bf16.msra.mxu0 %v386
  %416 = vmatprep.subr.bf16.mxu0 0
  %417 = vmatpush2.bf16.msra.mxu0 0
  %418 = vmatprep.subr.bf16.mxu0 0
  %419 = vmatpush2.bf16.msra.mxu0 0
  %420 = vmatprep.subr.bf16.mxu0 0
  %421 = vmatpush2.bf16.msra.mxu0 0
  %422 = vmatprep.subr.bf16.mxu0 0
  %423 = vmatpush2.bf16.msra.mxu0 0
  %424 = vmatprep.subr.bf16.mxu0 0
  %425 = vmatpush2.bf16.msra.mxu0 0
  %426 = vmatprep.subr.bf16.mxu0 0
  %427 = vmatpush2.bf16.msra.mxu0 0
  %428 = vmatprep.subr.bf16.mxu0 0
  %429 = vmatpush2.bf16.msra.mxu0 0
  %430 = vmatprep.subr.bf16.mxu0 0
  %431 = vmatpush2.bf16.msra.mxu0 0
  %432 = vmatprep.mubr.bf16.mxu0 0
  %433 = vmatmul.mubr.bf16.gmra.mxu0 %v395
  %v434 = vpop.f32.mrf.mxu0
  %v435 = vadd.f32 0.0, %v434
  %v436 = vpop.f32.mrf.mxu0
  %v437 = vpop.f32.mrf.mxu0
  %v438 = vadd.f32 0.0, %v437
  %v439 = vpop.f32.mrf.mxu0
  %440 = vmatprep.mubr.bf16.mxu0 0
  %441 = vmatmul.mubr.bf16.gmra.mxu0 %v398
  %v442 = vpop.f32.mrf.mxu0
  %v443 = vadd.f32 0.0, %v442
  %v444 = vpop.f32.mrf.mxu0
  %v445 = vpop.f32.mrf.mxu0
  %v446 = vadd.f32 0.0, %v445
  %v447 = vpop.f32.mrf.mxu0
  %448 = vdwg.mxu0
  %v449 = vadd.f32 %v350, %v435
  %v450 = vadd.f32 %v351, %v438
  %v451 = vadd.f32 %v352, %v443
  %v452 = vadd.f32 %v353, %v446
  %v453 = vld [vmem:[%s3] sm:$0xff]
  %v454 = vld [vmem:[%s3 + $0x8] sm:$0xff]
  %v455 = vld [vmem:[%s3 + $0x10] sm:$0xff]
  %v456 = vld [vmem:[%s3 + $0x18] sm:$0xff]
  %v457 = vld [vmem:[%s2] sm:$0x1]
  %v459 = vlaneseq
  %v460 = vshrl.u32 %v459, 7
  %v461 = vsub.s32 0, %v460
  %v462 = vrot.slane %v457, %v461
  %v464 = vmul.f32 %v449, %v462
  %v465 = vmul.f32 %v450, %v462
  %v466 = vmul.f32 %v451, %v462
  %v467 = vmul.f32 %v452, %v462
  %468 = vadd.xlane.f32.xlu0 %v464
  %v469 = vpop.xlane.xlu0 %468
  %470 = vadd.xlane.f32.xlu0 %v465
  %v471 = vpop.xlane.xlu0 %470
  %472 = vadd.xlane.f32.xlu0 %v466
  %v473 = vpop.xlane.xlu0 %472
  %474 = vadd.xlane.f32.xlu0 %v467
  %v475 = vpop.xlane.xlu0 %474
  %v476 = vmul.f32 %v469, 0.03125
  %v477 = vmul.f32 %v471, 0.03125
  %v478 = vmul.f32 %v473, 0.03125
  %v479 = vmul.f32 %v475, 0.03125
  %v480 = vmul.f32 %v464, %v449
  %v481 = vmul.f32 %v465, %v450
  %v482 = vmul.f32 %v466, %v451
  %v483 = vmul.f32 %v467, %v452
  %484 = vadd.xlane.f32.xlu0 %v480
  %v485 = vpop.xlane.xlu0 %484
  %486 = vadd.xlane.f32.xlu0 %v481
  %v487 = vpop.xlane.xlu0 %486
  %488 = vadd.xlane.f32.xlu0 %v482
  %v489 = vpop.xlane.xlu0 %488
  %490 = vadd.xlane.f32.xlu0 %v483
  %v491 = vpop.xlane.xlu0 %490
  %v492 = vmul.f32 %v485, 0.03125
  %v493 = vmul.f32 %v487, 0.03125
  %v494 = vmul.f32 %v489, 0.03125
  %v495 = vmul.f32 %v491, 0.03125
  %v496 = vmul.f32 %v476, %v476
  %v497 = vmul.f32 %v477, %v477
  %v498 = vmul.f32 %v478, %v478
  %v499 = vmul.f32 %v479, %v479
  %v500 = vsub.f32 %v492, %v496
  %v501 = vsub.f32 %v493, %v497
  %v502 = vsub.f32 %v494, %v498
  %v503 = vsub.f32 %v495, %v499
  %v504 = vsub.f32 %v449, %v476
  %v505 = vsub.f32 %v450, %v477
  %v506 = vsub.f32 %v451, %v478
  %v507 = vsub.f32 %v452, %v479
  %v508 = vadd.f32 %v500, 1e-05
  %v509 = vadd.f32 %v501, 1e-05
  %v510 = vadd.f32 %v502, 1e-05
  %v511 = vadd.f32 %v503, 1e-05
  %v512 = vrsqrt.pop %v508
  %v513 = vrsqrt.pop %v509
  %v514 = vrsqrt.pop %v510
  %v515 = vrsqrt.pop %v511
  %v516 = vmul.f32 %v504, %v512
  %v517 = vmul.f32 %v505, %v513
  %v518 = vmul.f32 %v506, %v514
  %v519 = vmul.f32 %v507, %v515
  %521 = vset.pattern.permute.xlu0 1
  %522 = vperm.xlu0 %521, %v453
  %v523 = vpop.permute.xlu0 %522
  %526 = vset.pattern.permute.xlu0 1
  %527 = vperm.xlu0 %526, %v454
  %v528 = vpop.permute.xlu0 %527
  %531 = vset.pattern.permute.xlu0 1
  %532 = vperm.xlu0 %531, %v455
  %v533 = vpop.permute.xlu0 %532
  %536 = vset.pattern.permute.xlu0 1
  %537 = vperm.xlu0 %536, %v456
  %v538 = vpop.permute.xlu0 %537
  %v540 = vmul.f32 %v516, %v523
  %v541 = vmul.f32 %v517, %v528
  %v542 = vmul.f32 %v518, %v533
  %v543 = vmul.f32 %v519, %v538
  %544 = vset.pattern.permute.xlu0 2
  %545 = vperm.xlu0 %544, %v453
  %v546 = vpop.permute.xlu0 %545
  %548 = vset.pattern.permute.xlu0 2
  %549 = vperm.xlu0 %548, %v454
  %v550 = vpop.permute.xlu0 %549
  %552 = vset.pattern.permute.xlu0 2
  %553 = vperm.xlu0 %552, %v455
  %v554 = vpop.permute.xlu0 %553
  %556 = vset.pattern.permute.xlu0 2
  %557 = vperm.xlu0 %556, %v456
  %v558 = vpop.permute.xlu0 %557
  %v560 = vadd.f32 %v540, %v546
  %v561 = vadd.f32 %v541, %v550
  %v562 = vadd.f32 %v542, %v554
  %v563 = vadd.f32 %v543, %v558
  %vm564 = vcmp.ge.f32.partialorder %v560, 0.0
  %vm565 = vcmp.ge.f32.partialorder %v561, 0.0
  %vm566 = vcmp.ge.f32.partialorder %v562, 0.0
  %vm567 = vcmp.ge.f32.partialorder %v563, 0.0
  %v568 = vmul.f32 %v560, 0.2
  %v569 = vmul.f32 %v561, 0.2
  %v570 = vmul.f32 %v562, 0.2
  %v571 = vmul.f32 %v563, 0.2
  %v572 = vsel %vm564, %v560, %v568
  %v573 = vsel %vm565, %v561, %v569
  %v574 = vsel %vm566, %v562, %v570
  %v575 = vsel %vm567, %v563, %v571
  %v576 = vpack.c.bf16 %v573, %v572
  %v577 = vpack.c.bf16 %v575, %v574
  %v580 = vunpack.c.l.b16 %v576
  %v581 = vunpack.c.h.b16 %v576
  %v582 = vunpack.c.l.b16 %v577
  %v583 = vunpack.c.h.b16 %v577
  %v584 = vpack.c.b16 %v580, %v580
  %v585 = vpack.c.b16 %v581, %v581
  %v586 = vpack.c.b16 %v582, %v582
  %v587 = vpack.c.b16 %v583, %v583
  %592 = vst [vmem:[%s4] sm:$0xf] %v584
  %593 = vst [vmem:[%s4 + $0x4] sm:$0xf] %v585
  %594 = vst [vmem:[%s4 + $0x8] sm:$0xf] %v586
  %595 = vst [vmem:[%s4 + $0xc] sm:$0xf] %v587
  // Predicated region
  $region18: #{nlayer_discriminator_forward.7} parent=0 // pred_check
    _
  $region19: #{nlayer_discriminator_forward.7} parent=0 // pred_check_branch
    %597 = sbr.rel (0) target = $region21
  $region20: #{nlayer_discriminator_forward.7} parent=0 // pred_region
    _
  $region21: #{nlayer_discriminator_forward.7} parent=0 // pred_fallthru
    _
  // Predicated region
  $region22: #{nlayer_discriminator_forward.7} parent=0 // pred_check
    _
  $region23: #{nlayer_discriminator_forward.7} parent=0 // pred_check_branch
    %599 = sbr.rel (0) target = $region25
  $region24: #{nlayer_discriminator_forward.7} parent=0 // pred_region
    _
  $region25: #{nlayer_discriminator_forward.7} parent=0 // pred_fallthru
    _

// kernel: nlayer_discriminator_forward.9
$region0: #{nlayer_discriminator_forward.9}
  #allocation0 [shape = 'u32[]', space=smem, size = 0x4, offset = 0x4, fixed_abs, tag = 'smem constant byte address 0x4 - core index']
  #allocation1 [shape = 'u32[144,128]{1,0:T(1,128)}', space=vmem, size = 0x12000, scoped, tag = 'internal scratch']
  %s0 = inlined_call_operand.vmem [shape: bf16[16,1,64], index: 0, kind: input, shape index: {}]
  %s1 = inlined_call_operand.vmem [shape: bf16[64,256], index: 1, kind: input, shape index: {}]
  %s2 = inlined_call_operand.vmem [shape: f32[1,128], index: 2, kind: input, shape index: {}]
  %s3 = inlined_call_operand.vmem [shape: f32[1,3], index: 3, kind: input, shape index: {}]
  %s4 = inlined_call_operand.vmem [shape: bf16[1,128], index: 4, kind: output, shape index: {}]
  %s5 = sld [smem:[#allocation0]]
  $region26: #{nlayer_discriminator_forward.9} parent=0
    _
  %s7 = ssub.s32 1, %s5
  %s8 = scalar_select 0, %s7, %s5
  // Predicated region
  $region2: #{nlayer_discriminator_forward.9} parent=0 // pred_check
    _
  $region3: #{nlayer_discriminator_forward.9} parent=0 // pred_check_branch
    %10 = sbr.rel (0) target = $region5
  $region4: #{nlayer_discriminator_forward.9} parent=0 // pred_region
    _
  $region5: #{nlayer_discriminator_forward.9} parent=0 // pred_fallthru
    _
  // Predicated region
  $region6: #{nlayer_discriminator_forward.9} parent=0 // pred_check
    _
  $region7: #{nlayer_discriminator_forward.9} parent=0 // pred_check_branch
    %12 = sbr.rel (0) target = $region9
  $region8: #{nlayer_discriminator_forward.9} parent=0 // pred_region
    _
  $region9: #{nlayer_discriminator_forward.9} parent=0 // pred_fallthru
    _
  // Predicated region
  $region10: #{nlayer_discriminator_forward.9} parent=0 // pred_check
    _
  $region11: #{nlayer_discriminator_forward.9} parent=0 // pred_check_branch
    %14 = sbr.rel (0) target = $region13
  $region12: #{nlayer_discriminator_forward.9} parent=0 // pred_region
    _
  $region13: #{nlayer_discriminator_forward.9} parent=0 // pred_fallthru
    _
  // Predicated region
  $region14: #{nlayer_discriminator_forward.9} parent=0 // pred_check
    _
  $region15: #{nlayer_discriminator_forward.9} parent=0 // pred_check_branch
    %16 = sbr.rel (0) target = $region17
  $region16: #{nlayer_discriminator_forward.9} parent=0 // pred_region
    _
  $region17: #{nlayer_discriminator_forward.9} parent=0 // pred_fallthru
    _
  %v18 = vld [vmem:[%s0] sm:$0x1]
  %v19 = vld [vmem:[%s1] sm:$0xf]
  %v20 = vld [vmem:[%s1 + $0x8] sm:$0xf]
  %v21 = vld [vmem:[%s1 + $0x10] sm:$0xf]
  %v22 = vld [vmem:[%s1 + $0x18] sm:$0xf]
  %v23 = vld [vmem:[%s1 + $0x20] sm:$0xf]
  %v24 = vld [vmem:[%s1 + $0x28] sm:$0xf]
  %v25 = vld [vmem:[%s1 + $0x30] sm:$0xf]
  %v26 = vld [vmem:[%s1 + $0x38] sm:$0xf]
  %s27 = scalar_lea.vmem %s0, 1
  %v28 = vld [vmem:[%s27] sm:$0x1]
  %v29 = vld [vmem:[%s1] sm:$0xff]
  %v30 = vld [vmem:[%s1 + $0x8] sm:$0xff]
  %v31 = vld [vmem:[%s1 + $0x10] sm:$0xff]
  %v32 = vld [vmem:[%s1 + $0x18] sm:$0xff]
  %v33 = vld [vmem:[%s1 + $0x20] sm:$0xff]
  %v34 = vld [vmem:[%s1 + $0x28] sm:$0xff]
  %v35 = vld [vmem:[%s1 + $0x30] sm:$0xff]
  %v36 = vld [vmem:[%s1 + $0x38] sm:$0xff]
  %v45 = vunpack.c.l.b16 %v29
  %v46 = vunpack.c.h.b16 %v29
  %v47 = vunpack.c.l.b16 %v30
  %v48 = vunpack.c.h.b16 %v30
  %v49 = vunpack.c.l.b16 %v31
  %v50 = vunpack.c.h.b16 %v31
  %v51 = vunpack.c.l.b16 %v32
  %v52 = vunpack.c.h.b16 %v32
  %v53 = vunpack.c.l.b16 %v33
  %v54 = vunpack.c.h.b16 %v33
  %v55 = vunpack.c.l.b16 %v34
  %v56 = vunpack.c.h.b16 %v34
  %v57 = vunpack.c.l.b16 %v35
  %v58 = vunpack.c.h.b16 %v35
  %v59 = vunpack.c.l.b16 %v36
  %v60 = vunpack.c.h.b16 %v36
  %v61 = vpack.c.b16 %v47, %v45
  %v62 = vpack.c.b16 %v48, %v46
  %v63 = vpack.c.b16 %v51, %v49
  %v64 = vpack.c.b16 %v52, %v50
  %v65 = vpack.c.b16 %v55, %v53
  %v66 = vpack.c.b16 %v56, %v54
  %v67 = vpack.c.b16 %v59, %v57
  %v68 = vpack.c.b16 %v60, %v58
  %69 = vrot.lane.b32.xlu0 %v61, 127
  %v70 = vpop.permute.xlu0 %69
  %71 = vrot.lane.b32.xlu0 %v62, 127
  %v72 = vpop.permute.xlu0 %71
  %73 = vrot.lane.b32.xlu0 %v63, 127
  %v74 = vpop.permute.xlu0 %73
  %75 = vrot.lane.b32.xlu0 %v64, 127
  %v76 = vpop.permute.xlu0 %75
  %77 = vrot.lane.b32.xlu0 %v65, 127
  %v78 = vpop.permute.xlu0 %77
  %79 = vrot.lane.b32.xlu0 %v66, 127
  %v80 = vpop.permute.xlu0 %79
  %81 = vrot.lane.b32.xlu0 %v67, 127
  %v82 = vpop.permute.xlu0 %81
  %83 = vrot.lane.b32.xlu0 %v68, 127
  %v84 = vpop.permute.xlu0 %83
  %vm85 = vcmask 1039360
  %v86 = vsel %vm85, %v70, %v72
  %v87 = vsel %vm85, %v74, %v76
  %v88 = vsel %vm85, %v78, %v80
  %v89 = vsel %vm85, %v82, %v84
  %vm94 = vcmask 523264
  %v96 = vsel %vm94, %v28, 0
  %98 = vmatprep.subr.bf16.mxu0 0
  %99 = vmatpush1.bf16.msra.mxu0 0
  %100 = vmatprep.subr.bf16.mxu0 0
  %101 = vmatpush1.bf16.msra.mxu0 0
  %102 = vmatprep.subr.bf16.mxu0 0
  %103 = vmatpush1.bf16.msra.mxu0 0
  %104 = vmatprep.subr.bf16.mxu0 0
  %105 = vmatpush1.bf16.msra.mxu0 0
  %106 = vmatprep.subr.bf16.mxu0 0
  %107 = vmatpush1.bf16.msra.mxu0 %v89
  %108 = vmatprep.subr.bf16.mxu0 0
  %109 = vmatpush1.bf16.msra.mxu0 %v88
  %110 = vmatprep.subr.bf16.mxu0 0
  %111 = vmatpush1.bf16.msra.mxu0 %v87
  %112 = vmatprep.subr.bf16.mxu0 0
  %113 = vmatpush1.bf16.msra.mxu0 %v86
  %114 = vmatprep.subr.bf16.mxu0 0
  %115 = vmatpush2.bf16.msra.mxu0 0
  %116 = vmatprep.subr.bf16.mxu0 0
  %117 = vmatpush2.bf16.msra.mxu0 0
  %118 = vmatprep.subr.bf16.mxu0 0
  %119 = vmatpush2.bf16.msra.mxu0 0
  %120 = vmatprep.subr.bf16.mxu0 0
  %121 = vmatpush2.bf16.msra.mxu0 0
  %122 = vmatprep.subr.bf16.mxu0 0
  %123 = vmatpush2.bf16.msra.mxu0 0
  %124 = vmatprep.subr.bf16.mxu0 0
  %125 = vmatpush2.bf16.msra.mxu0 0
  %126 = vmatprep.subr.bf16.mxu0 0
  %127 = vmatpush2.bf16.msra.mxu0 0
  %128 = vmatprep.subr.bf16.mxu0 0
  %129 = vmatpush2.bf16.msra.mxu0 0
  %130 = vmatprep.mubr.bf16.mxu0 0
  %131 = vmatmul.mubr.bf16.gmra.mxu0 %v96
  %v132 = vpop.f32.mrf.mxu0
  %v133 = vadd.f32 0.0, %v132
  %v134 = vpop.f32.mrf.mxu0
  %v135 = vpop.f32.mrf.mxu0
  %v136 = vpop.f32.mrf.mxu0
  %137 = vdwg.mxu0
  %v146 = vunpack.c.l.b16 %v19
  %v147 = vunpack.c.l.b16 %v20
  %v148 = vunpack.c.l.b16 %v21
  %v149 = vunpack.c.l.b16 %v22
  %v150 = vunpack.c.l.b16 %v23
  %v151 = vunpack.c.l.b16 %v24
  %v152 = vunpack.c.l.b16 %v25
  %v153 = vunpack.c.l.b16 %v26
  %v154 = vpack.c.b16 %v147, %v146
  %v155 = vpack.c.b16 %v149, %v148
  %v156 = vpack.c.b16 %v151, %v150
  %v157 = vpack.c.b16 %v153, %v152
  %v163 = vsel %vm94, %v18, 0
  %165 = vmatprep.subr.bf16.mxu0 0
  %166 = vmatpush1.bf16.msra.mxu0 0
  %167 = vmatprep.subr.bf16.mxu0 0
  %168 = vmatpush1.bf16.msra.mxu0 0
  %169 = vmatprep.subr.bf16.mxu0 0
  %170 = vmatpush1.bf16.msra.mxu0 0
  %171 = vmatprep.subr.bf16.mxu0 0
  %172 = vmatpush1.bf16.msra.mxu0 0
  %173 = vmatprep.subr.bf16.mxu0 0
  %174 = vmatpush1.bf16.msra.mxu0 %v157
  %175 = vmatprep.subr.bf16.mxu0 0
  %176 = vmatpush1.bf16.msra.mxu0 %v156
  %177 = vmatprep.subr.bf16.mxu0 0
  %178 = vmatpush1.bf16.msra.mxu0 %v155
  %179 = vmatprep.subr.bf16.mxu0 0
  %180 = vmatpush1.bf16.msra.mxu0 %v154
  %181 = vmatprep.subr.bf16.mxu0 0
  %182 = vmatpush2.bf16.msra.mxu0 0
  %183 = vmatprep.subr.bf16.mxu0 0
  %184 = vmatpush2.bf16.msra.mxu0 0
  %185 = vmatprep.subr.bf16.mxu0 0
  %186 = vmatpush2.bf16.msra.mxu0 0
  %187 = vmatprep.subr.bf16.mxu0 0
  %188 = vmatpush2.bf16.msra.mxu0 0
  %189 = vmatprep.subr.bf16.mxu0 0
  %190 = vmatpush2.bf16.msra.mxu0 0
  %191 = vmatprep.subr.bf16.mxu0 0
  %192 = vmatpush2.bf16.msra.mxu0 0
  %193 = vmatprep.subr.bf16.mxu0 0
  %194 = vmatpush2.bf16.msra.mxu0 0
  %195 = vmatprep.subr.bf16.mxu0 0
  %196 = vmatpush2.bf16.msra.mxu0 0
  %197 = vmatprep.mubr.bf16.mxu0 0
  %198 = vmatmul.mubr.bf16.gmra.mxu0 %v163
  %v199 = vpop.f32.mrf.mxu0
  %v200 = vadd.f32 %v133, %v199
  %v201 = vpop.f32.mrf.mxu0
  %v202 = vpop.f32.mrf.mxu0
  %v203 = vpop.f32.mrf.mxu0
  %204 = vdwg.mxu0
  %s205 = scalar_lea.vmem %s0, 2
  %v206 = vld [vmem:[%s205] sm:$0x1]
  %207 = vrot.lane.b32.xlu0 %v61, 126
  %v208 = vpop.permute.xlu0 %207
  %209 = vrot.lane.b32.xlu0 %v62, 126
  %v210 = vpop.permute.xlu0 %209
  %211 = vrot.lane.b32.xlu0 %v63, 126
  %v212 = vpop.permute.xlu0 %211
  %213 = vrot.lane.b32.xlu0 %v64, 126
  %v214 = vpop.permute.xlu0 %213
  %215 = vrot.lane.b32.xlu0 %v65, 126
  %v216 = vpop.permute.xlu0 %215
  %217 = vrot.lane.b32.xlu0 %v66, 126
  %v218 = vpop.permute.xlu0 %217
  %219 = vrot.lane.b32.xlu0 %v67, 126
  %v220 = vpop.permute.xlu0 %219
  %221 = vrot.lane.b32.xlu0 %v68, 126
  %v222 = vpop.permute.xlu0 %221
  %vm223 = vcmask 1031168
  %v224 = vsel %vm223, %v208, %v210
  %v225 = vsel %vm223, %v212, %v214
  %v226 = vsel %vm223, %v216, %v218
  %v227 = vsel %vm223, %v220, %v222
  %v233 = vsel %vm94, %v206, 0
  %235 = vmatprep.subr.bf16.mxu0 0
  %236 = vmatpush1.bf16.msra.mxu0 0
  %237 = vmatprep.subr.bf16.mxu0 0
  %238 = vmatpush1.bf16.msra.mxu0 0
  %239 = vmatprep.subr.bf16.mxu0 0
  %240 = vmatpush1.bf16.msra.mxu0 0
  %241 = vmatprep.subr.bf16.mxu0 0
  %242 = vmatpush1.bf16.msra.mxu0 0
  %243 = vmatprep.subr.bf16.mxu0 0
  %244 = vmatpush1.bf16.msra.mxu0 %v227
  %245 = vmatprep.subr.bf16.mxu0 0
  %246 = vmatpush1.bf16.msra.mxu0 %v226
  %247 = vmatprep.subr.bf16.mxu0 0
  %248 = vmatpush1.bf16.msra.mxu0 %v225
  %249 = vmatprep.subr.bf16.mxu0 0
  %250 = vmatpush1.bf16.msra.mxu0 %v224
  %251 = vmatprep.subr.bf16.mxu0 0
  %252 = vmatpush2.bf16.msra.mxu0 0
  %253 = vmatprep.subr.bf16.mxu0 0
  %254 = vmatpush2.bf16.msra.mxu0 0
  %255 = vmatprep.subr.bf16.mxu0 0
  %256 = vmatpush2.bf16.msra.mxu0 0
  %257 = vmatprep.subr.bf16.mxu0 0
  %258 = vmatpush2.bf16.msra.mxu0 0
  %259 = vmatprep.subr.bf16.mxu0 0
  %260 = vmatpush2.bf16.msra.mxu0 0
  %261 = vmatprep.subr.bf16.mxu0 0
  %262 = vmatpush2.bf16.msra.mxu0 0
  %263 = vmatprep.subr.bf16.mxu0 0
  %264 = vmatpush2.bf16.msra.mxu0 0
  %265 = vmatprep.subr.bf16.mxu0 0
  %266 = vmatpush2.bf16.msra.mxu0 0
  %267 = vmatprep.mubr.bf16.mxu0 0
  %268 = vmatmul.mubr.bf16.gmra.mxu0 %v233
  %v269 = vpop.f32.mrf.mxu0
  %v270 = vadd.f32 0.0, %v269
  %v271 = vpop.f32.mrf.mxu0
  %v272 = vpop.f32.mrf.mxu0
  %v273 = vpop.f32.mrf.mxu0
  %274 = vdwg.mxu0
  %v275 = vadd.f32 %v200, %v270
  %s276 = scalar_lea.vmem %s0, 3
  %v277 = vld [vmem:[%s276] sm:$0x1]
  %278 = vrot.lane.b32.xlu0 %v61, 125
  %v279 = vpop.permute.xlu0 %278
  %280 = vrot.lane.b32.xlu0 %v62, 125
  %v281 = vpop.permute.xlu0 %280
  %282 = vrot.lane.b32.xlu0 %v63, 125
  %v283 = vpop.permute.xlu0 %282
  %284 = vrot.lane.b32.xlu0 %v64, 125
  %v285 = vpop.permute.xlu0 %284
  %286 = vrot.lane.b32.xlu0 %v65, 125
  %v287 = vpop.permute.xlu0 %286
  %288 = vrot.lane.b32.xlu0 %v66, 125
  %v289 = vpop.permute.xlu0 %288
  %290 = vrot.lane.b32.xlu0 %v67, 125
  %v291 = vpop.permute.xlu0 %290
  %292 = vrot.lane.b32.xlu0 %v68, 125
  %v293 = vpop.permute.xlu0 %292
  %vm294 = vcmask 1022976
  %v295 = vsel %vm294, %v279, %v281
  %v296 = vsel %vm294, %v283, %v285
  %v297 = vsel %vm294, %v287, %v289
  %v298 = vsel %vm294, %v291, %v293
  %v304 = vsel %vm94, %v277, 0
  %306 = vmatprep.subr.bf16.mxu0 0
  %307 = vmatpush1.bf16.msra.mxu0 0
  %308 = vmatprep.subr.bf16.mxu0 0
  %309 = vmatpush1.bf16.msra.mxu0 0
  %310 = vmatprep.subr.bf16.mxu0 0
  %311 = vmatpush1.bf16.msra.mxu0 0
  %312 = vmatprep.subr.bf16.mxu0 0
  %313 = vmatpush1.bf16.msra.mxu0 0
  %314 = vmatprep.subr.bf16.mxu0 0
  %315 = vmatpush1.bf16.msra.mxu0 %v298
  %316 = vmatprep.subr.bf16.mxu0 0
  %317 = vmatpush1.bf16.msra.mxu0 %v297
  %318 = vmatprep.subr.bf16.mxu0 0
  %319 = vmatpush1.bf16.msra.mxu0 %v296
  %320 = vmatprep.subr.bf16.mxu0 0
  %321 = vmatpush1.bf16.msra.mxu0 %v295
  %322 = vmatprep.subr.bf16.mxu0 0
  %323 = vmatpush2.bf16.msra.mxu0 0
  %324 = vmatprep.subr.bf16.mxu0 0
  %325 = vmatpush2.bf16.msra.mxu0 0
  %326 = vmatprep.subr.bf16.mxu0 0
  %327 = vmatpush2.bf16.msra.mxu0 0
  %328 = vmatprep.subr.bf16.mxu0 0
  %329 = vmatpush2.bf16.msra.mxu0 0
  %330 = vmatprep.subr.bf16.mxu0 0
  %331 = vmatpush2.bf16.msra.mxu0 0
  %332 = vmatprep.subr.bf16.mxu0 0
  %333 = vmatpush2.bf16.msra.mxu0 0
  %334 = vmatprep.subr.bf16.mxu0 0
  %335 = vmatpush2.bf16.msra.mxu0 0
  %336 = vmatprep.subr.bf16.mxu0 0
  %337 = vmatpush2.bf16.msra.mxu0 0
  %338 = vmatprep.mubr.bf16.mxu0 0
  %339 = vmatmul.mubr.bf16.gmra.mxu0 %v304
  %v340 = vpop.f32.mrf.mxu0
  %v341 = vadd.f32 0.0, %v340
  %v342 = vpop.f32.mrf.mxu0
  %v343 = vpop.f32.mrf.mxu0
  %v344 = vpop.f32.mrf.mxu0
  %345 = vdwg.mxu0
  %v346 = vadd.f32 %v275, %v341
  %s347 = scalar_lea.vmem %s0, 4
  %v348 = vld [vmem:[%s347] sm:$0x1]
  %349 = vrot.lane.b32.xlu0 %v61, 123
  %v350 = vpop.permute.xlu0 %349
  %351 = vrot.lane.b32.xlu0 %v62, 123
  %v352 = vpop.permute.xlu0 %351
  %353 = vrot.lane.b32.xlu0 %v63, 123
  %v354 = vpop.permute.xlu0 %353
  %355 = vrot.lane.b32.xlu0 %v64, 123
  %v356 = vpop.permute.xlu0 %355
  %357 = vrot.lane.b32.xlu0 %v65, 123
  %v358 = vpop.permute.xlu0 %357
  %359 = vrot.lane.b32.xlu0 %v66, 123
  %v360 = vpop.permute.xlu0 %359
  %361 = vrot.lane.b32.xlu0 %v67, 123
  %v362 = vpop.permute.xlu0 %361
  %363 = vrot.lane.b32.xlu0 %v68, 123
  %v364 = vpop.permute.xlu0 %363
  %vm365 = vcmask 1006592
  %v366 = vsel %vm365, %v350, %v352
  %v367 = vsel %vm365, %v354, %v356
  %v368 = vsel %vm365, %v358, %v360
  %v369 = vsel %vm365, %v362, %v364
  %v375 = vsel %vm94, %v348, 0
  %377 = vmatprep.subr.bf16.mxu0 0
  %378 = vmatpush1.bf16.msra.mxu0 0
  %379 = vmatprep.subr.bf16.mxu0 0
  %380 = vmatpush1.bf16.msra.mxu0 0
  %381 = vmatprep.subr.bf16.mxu0 0
  %382 = vmatpush1.bf16.msra.mxu0 0
  %383 = vmatprep.subr.bf16.mxu0 0
  %384 = vmatpush1.bf16.msra.mxu0 0
  %385 = vmatprep.subr.bf16.mxu0 0
  %386 = vmatpush1.bf16.msra.mxu0 %v369
  %387 = vmatprep.subr.bf16.mxu0 0
  %388 = vmatpush1.bf16.msra.mxu0 %v368
  %389 = vmatprep.subr.bf16.mxu0 0
  %390 = vmatpush1.bf16.msra.mxu0 %v367
  %391 = vmatprep.subr.bf16.mxu0 0
  %392 = vmatpush1.bf16.msra.mxu0 %v366
  %393 = vmatprep.subr.bf16.mxu0 0
  %394 = vmatpush2.bf16.msra.mxu0 0
  %395 = vmatprep.subr.bf16.mxu0 0
  %396 = vmatpush2.bf16.msra.mxu0 0
  %397 = vmatprep.subr.bf16.mxu0 0
  %398 = vmatpush2.bf16.msra.mxu0 0
  %399 = vmatprep.subr.bf16.mxu0 0
  %400 = vmatpush2.bf16.msra.mxu0 0
  %401 = vmatprep.subr.bf16.mxu0 0
  %402 = vmatpush2.bf16.msra.mxu0 0
  %403 = vmatprep.subr.bf16.mxu0 0
  %404 = vmatpush2.bf16.msra.mxu0 0
  %405 = vmatprep.subr.bf16.mxu0 0
  %406 = vmatpush2.bf16.msra.mxu0 0
  %407 = vmatprep.subr.bf16.mxu0 0
  %408 = vmatpush2.bf16.msra.mxu0 0
  %409 = vmatprep.mubr.bf16.mxu0 0
  %410 = vmatmul.mubr.bf16.gmra.mxu0 %v375
  %v411 = vpop.f32.mrf.mxu0
  %v412 = vadd.f32 0.0, %v411
  %v413 = vpop.f32.mrf.mxu0
  %v414 = vpop.f32.mrf.mxu0
  %v415 = vpop.f32.mrf.mxu0
  %416 = vdwg.mxu0
  %v417 = vadd.f32 %v346, %v412
  %s418 = scalar_lea.vmem %s0, 5
  %v419 = vld [vmem:[%s418] sm:$0x1]
  %420 = vrot.lane.b32.xlu0 %v61, 122
  %v421 = vpop.permute.xlu0 %420
  %422 = vrot.lane.b32.xlu0 %v62, 122
  %v423 = vpop.permute.xlu0 %422
  %424 = vrot.lane.b32.xlu0 %v63, 122
  %v425 = vpop.permute.xlu0 %424
  %426 = vrot.lane.b32.xlu0 %v64, 122
  %v427 = vpop.permute.xlu0 %426
  %428 = vrot.lane.b32.xlu0 %v65, 122
  %v429 = vpop.permute.xlu0 %428
  %430 = vrot.lane.b32.xlu0 %v66, 122
  %v431 = vpop.permute.xlu0 %430
  %432 = vrot.lane.b32.xlu0 %v67, 122
  %v433 = vpop.permute.xlu0 %432
  %434 = vrot.lane.b32.xlu0 %v68, 122
  %v435 = vpop.permute.xlu0 %434
  %vm436 = vcmask 998400
  %v437 = vsel %vm436, %v421, %v423
  %v438 = vsel %vm436, %v425, %v427
  %v439 = vsel %vm436, %v429, %v431
  %v440 = vsel %vm436, %v433, %v435
  %v446 = vsel %vm94, %v419, 0
  %448 = vmatprep.subr.bf16.mxu0 0
  %449 = vmatpush1.bf16.msra.mxu0 0
  %450 = vmatprep.subr.bf16.mxu0 0
  %451 = vmatpush1.bf16.msra.mxu0 0
  %452 = vmatprep.subr.bf16.mxu0 0
  %453 = vmatpush1.bf16.msra.mxu0 0
  %454 = vmatprep.subr.bf16.mxu0 0
  %455 = vmatpush1.bf16.msra.mxu0 0
  %456 = vmatprep.subr.bf16.mxu0 0
  %457 = vmatpush1.bf16.msra.mxu0 %v440
  %458 = vmatprep.subr.bf16.mxu0 0
  %459 = vmatpush1.bf16.msra.mxu0 %v439
  %460 = vmatprep.subr.bf16.mxu0 0
  %461 = vmatpush1.bf16.msra.mxu0 %v438
  %462 = vmatprep.subr.bf16.mxu0 0
  %463 = vmatpush1.bf16.msra.mxu0 %v437
  %464 = vmatprep.subr.bf16.mxu0 0
  %465 = vmatpush2.bf16.msra.mxu0 0
  %466 = vmatprep.subr.bf16.mxu0 0
  %467 = vmatpush2.bf16.msra.mxu0 0
  %468 = vmatprep.subr.bf16.mxu0 0
  %469 = vmatpush2.bf16.msra.mxu0 0
  %470 = vmatprep.subr.bf16.mxu0 0
  %471 = vmatpush2.bf16.msra.mxu0 0
  %472 = vmatprep.subr.bf16.mxu0 0
  %473 = vmatpush2.bf16.msra.mxu0 0
  %474 = vmatprep.subr.bf16.mxu0 0
  %475 = vmatpush2.bf16.msra.mxu0 0
  %476 = vmatprep.subr.bf16.mxu0 0
  %477 = vmatpush2.bf16.msra.mxu0 0
  %478 = vmatprep.subr.bf16.mxu0 0
  %479 = vmatpush2.bf16.msra.mxu0 0
  %480 = vmatprep.mubr.bf16.mxu0 0
  %481 = vmatmul.mubr.bf16.gmra.mxu0 %v446
  %v482 = vpop.f32.mrf.mxu0
  %v483 = vadd.f32 0.0, %v482
  %v484 = vpop.f32.mrf.mxu0
  %v485 = vpop.f32.mrf.mxu0
  %v486 = vpop.f32.mrf.mxu0
  %487 = vdwg.mxu0
  %v488 = vadd.f32 %v417, %v483
  %s489 = scalar_lea.vmem %s0, 6
  %v490 = vld [vmem:[%s489] sm:$0x1]
  %491 = vrot.lane.b32.xlu0 %v61, 121
  %v492 = vpop.permute.xlu0 %491
  %493 = vrot.lane.b32.xlu0 %v62, 121
  %v494 = vpop.permute.xlu0 %493
  %495 = vrot.lane.b32.xlu0 %v63, 121
  %v496 = vpop.permute.xlu0 %495
  %497 = vrot.lane.b32.xlu0 %v64, 121
  %v498 = vpop.permute.xlu0 %497
  %499 = vrot.lane.b32.xlu0 %v65, 121
  %v500 = vpop.permute.xlu0 %499
  %501 = vrot.lane.b32.xlu0 %v66, 121
  %v502 = vpop.permute.xlu0 %501
  %503 = vrot.lane.b32.xlu0 %v67, 121
  %v504 = vpop.permute.xlu0 %503
  %505 = vrot.lane.b32.xlu0 %v68, 121
  %v506 = vpop.permute.xlu0 %505
  %vm507 = vcmask 990208
  %v508 = vsel %vm507, %v492, %v494
  %v509 = vsel %vm507, %v496, %v498
  %v510 = vsel %vm507, %v500, %v502
  %v511 = vsel %vm507, %v504, %v506
  %v517 = vsel %vm94, %v490, 0
  %519 = vmatprep.subr.bf16.mxu0 0
  %520 = vmatpush1.bf16.msra.mxu0 0
  %521 = vmatprep.subr.bf16.mxu0 0
  %522 = vmatpush1.bf16.msra.mxu0 0
  %523 = vmatprep.subr.bf16.mxu0 0
  %524 = vmatpush1.bf16.msra.mxu0 0
  %525 = vmatprep.subr.bf16.mxu0 0
  %526 = vmatpush1.bf16.msra.mxu0 0
  %527 = vmatprep.subr.bf16.mxu0 0
  %528 = vmatpush1.bf16.msra.mxu0 %v511
  %529 = vmatprep.subr.bf16.mxu0 0
  %530 = vmatpush1.bf16.msra.mxu0 %v510
  %531 = vmatprep.subr.bf16.mxu0 0
  %532 = vmatpush1.bf16.msra.mxu0 %v509
  %533 = vmatprep.subr.bf16.mxu0 0
  %534 = vmatpush1.bf16.msra.mxu0 %v508
  %535 = vmatprep.subr.bf16.mxu0 0
  %536 = vmatpush2.bf16.msra.mxu0 0
  %537 = vmatprep.subr.bf16.mxu0 0
  %538 = vmatpush2.bf16.msra.mxu0 0
  %539 = vmatprep.subr.bf16.mxu0 0
  %540 = vmatpush2.bf16.msra.mxu0 0
  %541 = vmatprep.subr.bf16.mxu0 0
  %542 = vmatpush2.bf16.msra.mxu0 0
  %543 = vmatprep.subr.bf16.mxu0 0
  %544 = vmatpush2.bf16.msra.mxu0 0
  %545 = vmatprep.subr.bf16.mxu0 0
  %546 = vmatpush2.bf16.msra.mxu0 0
  %547 = vmatprep.subr.bf16.mxu0 0
  %548 = vmatpush2.bf16.msra.mxu0 0
  %549 = vmatprep.subr.bf16.mxu0 0
  %550 = vmatpush2.bf16.msra.mxu0 0
  %551 = vmatprep.mubr.bf16.mxu0 0
  %552 = vmatmul.mubr.bf16.gmra.mxu0 %v517
  %v553 = vpop.f32.mrf.mxu0
  %v554 = vadd.f32 0.0, %v553
  %v555 = vpop.f32.mrf.mxu0
  %v556 = vpop.f32.mrf.mxu0
  %v557 = vpop.f32.mrf.mxu0
  %558 = vdwg.mxu0
  %v559 = vadd.f32 %v488, %v554
  %s560 = scalar_lea.vmem %s0, 7
  %v561 = vld [vmem:[%s560] sm:$0x1]
  %562 = vrot.lane.b32.xlu0 %v61, 120
  %v563 = vpop.permute.xlu0 %562
  %564 = vrot.lane.b32.xlu0 %v62, 120
  %v565 = vpop.permute.xlu0 %564
  %566 = vrot.lane.b32.xlu0 %v63, 120
  %v567 = vpop.permute.xlu0 %566
  %568 = vrot.lane.b32.xlu0 %v64, 120
  %v569 = vpop.permute.xlu0 %568
  %570 = vrot.lane.b32.xlu0 %v65, 120
  %v571 = vpop.permute.xlu0 %570
  %572 = vrot.lane.b32.xlu0 %v66, 120
  %v573 = vpop.permute.xlu0 %572
  %574 = vrot.lane.b32.xlu0 %v67, 120
  %v575 = vpop.permute.xlu0 %574
  %576 = vrot.lane.b32.xlu0 %v68, 120
  %v577 = vpop.permute.xlu0 %576
  %vm578 = vcmask 982016
  %v579 = vsel %vm578, %v563, %v565
  %v580 = vsel %vm578, %v567, %v569
  %v581 = vsel %vm578, %v571, %v573
  %v582 = vsel %vm578, %v575, %v577
  %v588 = vsel %vm94, %v561, 0
  %590 = vmatprep.subr.bf16.mxu0 0
  %591 = vmatpush1.bf16.msra.mxu0 0
  %592 = vmatprep.subr.bf16.mxu0 0
  %593 = vmatpush1.bf16.msra.mxu0 0
  %594 = vmatprep.subr.bf16.mxu0 0
  %595 = vmatpush1.bf16.msra.mxu0 0
  %596 = vmatprep.subr.bf16.mxu0 0
  %597 = vmatpush1.bf16.msra.mxu0 0
  %598 = vmatprep.subr.bf16.mxu0 0
  %599 = vmatpush1.bf16.msra.mxu0 %v582
  %600 = vmatprep.subr.bf16.mxu0 0
  %601 = vmatpush1.bf16.msra.mxu0 %v581
  %602 = vmatprep.subr.bf16.mxu0 0
  %603 = vmatpush1.bf16.msra.mxu0 %v580
  %604 = vmatprep.subr.bf16.mxu0 0
  %605 = vmatpush1.bf16.msra.mxu0 %v579
  %606 = vmatprep.subr.bf16.mxu0 0
  %607 = vmatpush2.bf16.msra.mxu0 0
  %608 = vmatprep.subr.bf16.mxu0 0
  %609 = vmatpush2.bf16.msra.mxu0 0
  %610 = vmatprep.subr.bf16.mxu0 0
  %611 = vmatpush2.bf16.msra.mxu0 0
  %612 = vmatprep.subr.bf16.mxu0 0
  %613 = vmatpush2.bf16.msra.mxu0 0
  %614 = vmatprep.subr.bf16.mxu0 0
  %615 = vmatpush2.bf16.msra.mxu0 0
  %616 = vmatprep.subr.bf16.mxu0 0
  %617 = vmatpush2.bf16.msra.mxu0 0
  %618 = vmatprep.subr.bf16.mxu0 0
  %619 = vmatpush2.bf16.msra.mxu0 0
  %620 = vmatprep.subr.bf16.mxu0 0
  %621 = vmatpush2.bf16.msra.mxu0 0
  %622 = vmatprep.mubr.bf16.mxu0 0
  %623 = vmatmul.mubr.bf16.gmra.mxu0 %v588
  %v624 = vpop.f32.mrf.mxu0
  %v625 = vadd.f32 0.0, %v624
  %v626 = vpop.f32.mrf.mxu0
  %v627 = vpop.f32.mrf.mxu0
  %v628 = vpop.f32.mrf.mxu0
  %629 = vdwg.mxu0
  %v630 = vadd.f32 %v559, %v625
  %s631 = scalar_lea.vmem %s0, 8
  %v632 = vld [vmem:[%s631] sm:$0x1]
  %633 = vrot.lane.b32.xlu0 %v61, 118
  %v634 = vpop.permute.xlu0 %633
  %635 = vrot.lane.b32.xlu0 %v62, 118
  %v636 = vpop.permute.xlu0 %635
  %637 = vrot.lane.b32.xlu0 %v63, 118
  %v638 = vpop.permute.xlu0 %637
  %639 = vrot.lane.b32.xlu0 %v64, 118
  %v640 = vpop.permute.xlu0 %639
  %641 = vrot.lane.b32.xlu0 %v65, 118
  %v642 = vpop.permute.xlu0 %641
  %643 = vrot.lane.b32.xlu0 %v66, 118
  %v644 = vpop.permute.xlu0 %643
  %645 = vrot.lane.b32.xlu0 %v67, 118
  %v646 = vpop.permute.xlu0 %645
  %647 = vrot.lane.b32.xlu0 %v68, 118
  %v648 = vpop.permute.xlu0 %647
  %vm649 = vcmask 965632
  %v650 = vsel %vm649, %v634, %v636
  %v651 = vsel %vm649, %v638, %v640
  %v652 = vsel %vm649, %v642, %v644
  %v653 = vsel %vm649, %v646, %v648
  %v659 = vsel %vm94, %v632, 0
  %661 = vmatprep.subr.bf16.mxu0 0
  %662 = vmatpush1.bf16.msra.mxu0 0
  %663 = vmatprep.subr.bf16.mxu0 0
  %664 = vmatpush1.bf16.msra.mxu0 0
  %665 = vmatprep.subr.bf16.mxu0 0
  %666 = vmatpush1.bf16.msra.mxu0 0
  %667 = vmatprep.subr.bf16.mxu0 0
  %668 = vmatpush1.bf16.msra.mxu0 0
  %669 = vmatprep.subr.bf16.mxu0 0
  %670 = vmatpush1.bf16.msra.mxu0 %v653
  %671 = vmatprep.subr.bf16.mxu0 0
  %672 = vmatpush1.bf16.msra.mxu0 %v652
  %673 = vmatprep.subr.bf16.mxu0 0
  %674 = vmatpush1.bf16.msra.mxu0 %v651
  %675 = vmatprep.subr.bf16.mxu0 0
  %676 = vmatpush1.bf16.msra.mxu0 %v650
  %677 = vmatprep.subr.bf16.mxu0 0
  %678 = vmatpush2.bf16.msra.mxu0 0
  %679 = vmatprep.subr.bf16.mxu0 0
  %680 = vmatpush2.bf16.msra.mxu0 0
  %681 = vmatprep.subr.bf16.mxu0 0
  %682 = vmatpush2.bf16.msra.mxu0 0
  %683 = vmatprep.subr.bf16.mxu0 0
  %684 = vmatpush2.bf16.msra.mxu0 0
  %685 = vmatprep.subr.bf16.mxu0 0
  %686 = vmatpush2.bf16.msra.mxu0 0
  %687 = vmatprep.subr.bf16.mxu0 0
  %688 = vmatpush2.bf16.msra.mxu0 0
  %689 = vmatprep.subr.bf16.mxu0 0
  %690 = vmatpush2.bf16.msra.mxu0 0
  %691 = vmatprep.subr.bf16.mxu0 0
  %692 = vmatpush2.bf16.msra.mxu0 0
  %693 = vmatprep.mubr.bf16.mxu0 0
  %694 = vmatmul.mubr.bf16.gmra.mxu0 %v659
  %v695 = vpop.f32.mrf.mxu0
  %v696 = vadd.f32 0.0, %v695
  %v697 = vpop.f32.mrf.mxu0
  %v698 = vpop.f32.mrf.mxu0
  %v699 = vpop.f32.mrf.mxu0
  %700 = vdwg.mxu0
  %v701 = vadd.f32 %v630, %v696
  %s702 = scalar_lea.vmem %s0, 9
  %v703 = vld [vmem:[%s702] sm:$0x1]
  %704 = vrot.lane.b32.xlu0 %v61, 117
  %v705 = vpop.permute.xlu0 %704
  %706 = vrot.lane.b32.xlu0 %v62, 117
  %v707 = vpop.permute.xlu0 %706
  %708 = vrot.lane.b32.xlu0 %v63, 117
  %v709 = vpop.permute.xlu0 %708
  %710 = vrot.lane.b32.xlu0 %v64, 117
  %v711 = vpop.permute.xlu0 %710
  %712 = vrot.lane.b32.xlu0 %v65, 117
  %v713 = vpop.permute.xlu0 %712
  %714 = vrot.lane.b32.xlu0 %v66, 117
  %v715 = vpop.permute.xlu0 %714
  %716 = vrot.lane.b32.xlu0 %v67, 117
  %v717 = vpop.permute.xlu0 %716
  %718 = vrot.lane.b32.xlu0 %v68, 117
  %v719 = vpop.permute.xlu0 %718
  %vm720 = vcmask 957440
  %v721 = vsel %vm720, %v705, %v707
  %v722 = vsel %vm720, %v709, %v711
  %v723 = vsel %vm720, %v713, %v715
  %v724 = vsel %vm720, %v717, %v719
  %v730 = vsel %vm94, %v703, 0
  %732 = vmatprep.subr.bf16.mxu0 0
  %733 = vmatpush1.bf16.msra.mxu0 0
  %734 = vmatprep.subr.bf16.mxu0 0
  %735 = vmatpush1.bf16.msra.mxu0 0
  %736 = vmatprep.subr.bf16.mxu0 0
  %737 = vmatpush1.bf16.msra.mxu0 0
  %738 = vmatprep.subr.bf16.mxu0 0
  %739 = vmatpush1.bf16.msra.mxu0 0
  %740 = vmatprep.subr.bf16.mxu0 0
  %741 = vmatpush1.bf16.msra.mxu0 %v724
  %742 = vmatprep.subr.bf16.mxu0 0
  %743 = vmatpush1.bf16.msra.mxu0 %v723
  %744 = vmatprep.subr.bf16.mxu0 0
  %745 = vmatpush1.bf16.msra.mxu0 %v722
  %746 = vmatprep.subr.bf16.mxu0 0
  %747 = vmatpush1.bf16.msra.mxu0 %v721
  %748 = vmatprep.subr.bf16.mxu0 0
  %749 = vmatpush2.bf16.msra.mxu0 0
  %750 = vmatprep.subr.bf16.mxu0 0
  %751 = vmatpush2.bf16.msra.mxu0 0
  %752 = vmatprep.subr.bf16.mxu0 0
  %753 = vmatpush2.bf16.msra.mxu0 0
  %754 = vmatprep.subr.bf16.mxu0 0
  %755 = vmatpush2.bf16.msra.mxu0 0
  %756 = vmatprep.subr.bf16.mxu0 0
  %757 = vmatpush2.bf16.msra.mxu0 0
  %758 = vmatprep.subr.bf16.mxu0 0
  %759 = vmatpush2.bf16.msra.mxu0 0
  %760 = vmatprep.subr.bf16.mxu0 0
  %761 = vmatpush2.bf16.msra.mxu0 0
  %762 = vmatprep.subr.bf16.mxu0 0
  %763 = vmatpush2.bf16.msra.mxu0 0
  %764 = vmatprep.mubr.bf16.mxu0 0
  %765 = vmatmul.mubr.bf16.gmra.mxu0 %v730
  %v766 = vpop.f32.mrf.mxu0
  %v767 = vadd.f32 0.0, %v766
  %v768 = vpop.f32.mrf.mxu0
  %v769 = vpop.f32.mrf.mxu0
  %v770 = vpop.f32.mrf.mxu0
  %771 = vdwg.mxu0
  %v772 = vadd.f32 %v701, %v767
  %s773 = scalar_lea.vmem %s0, 10
  %v774 = vld [vmem:[%s773] sm:$0x1]
  %775 = vrot.lane.b32.xlu0 %v61, 116
  %v776 = vpop.permute.xlu0 %775
  %777 = vrot.lane.b32.xlu0 %v62, 116
  %v778 = vpop.permute.xlu0 %777
  %779 = vrot.lane.b32.xlu0 %v63, 116
  %v780 = vpop.permute.xlu0 %779
  %781 = vrot.lane.b32.xlu0 %v64, 116
  %v782 = vpop.permute.xlu0 %781
  %783 = vrot.lane.b32.xlu0 %v65, 116
  %v784 = vpop.permute.xlu0 %783
  %785 = vrot.lane.b32.xlu0 %v66, 116
  %v786 = vpop.permute.xlu0 %785
  %787 = vrot.lane.b32.xlu0 %v67, 116
  %v788 = vpop.permute.xlu0 %787
  %789 = vrot.lane.b32.xlu0 %v68, 116
  %v790 = vpop.permute.xlu0 %789
  %vm791 = vcmask 949248
  %v792 = vsel %vm791, %v776, %v778
  %v793 = vsel %vm791, %v780, %v782
  %v794 = vsel %vm791, %v784, %v786
  %v795 = vsel %vm791, %v788, %v790
  %v801 = vsel %vm94, %v774, 0
  %803 = vmatprep.subr.bf16.mxu0 0
  %804 = vmatpush1.bf16.msra.mxu0 0
  %805 = vmatprep.subr.bf16.mxu0 0
  %806 = vmatpush1.bf16.msra.mxu0 0
  %807 = vmatprep.subr.bf16.mxu0 0
  %808 = vmatpush1.bf16.msra.mxu0 0
  %809 = vmatprep.subr.bf16.mxu0 0
  %810 = vmatpush1.bf16.msra.mxu0 0
  %811 = vmatprep.subr.bf16.mxu0 0
  %812 = vmatpush1.bf16.msra.mxu0 %v795
  %813 = vmatprep.subr.bf16.mxu0 0
  %814 = vmatpush1.bf16.msra.mxu0 %v794
  %815 = vmatprep.subr.bf16.mxu0 0
  %816 = vmatpush1.bf16.msra.mxu0 %v793
  %817 = vmatprep.subr.bf16.mxu0 0
  %818 = vmatpush1.bf16.msra.mxu0 %v792
  %819 = vmatprep.subr.bf16.mxu0 0
  %820 = vmatpush2.bf16.msra.mxu0 0
  %821 = vmatprep.subr.bf16.mxu0 0
  %822 = vmatpush2.bf16.msra.mxu0 0
  %823 = vmatprep.subr.bf16.mxu0 0
  %824 = vmatpush2.bf16.msra.mxu0 0
  %825 = vmatprep.subr.bf16.mxu0 0
  %826 = vmatpush2.bf16.msra.mxu0 0
  %827 = vmatprep.subr.bf16.mxu0 0
  %828 = vmatpush2.bf16.msra.mxu0 0
  %829 = vmatprep.subr.bf16.mxu0 0
  %830 = vmatpush2.bf16.msra.mxu0 0
  %831 = vmatprep.subr.bf16.mxu0 0
  %832 = vmatpush2.bf16.msra.mxu0 0
  %833 = vmatprep.subr.bf16.mxu0 0
  %834 = vmatpush2.bf16.msra.mxu0 0
  %835 = vmatprep.mubr.bf16.mxu0 0
  %836 = vmatmul.mubr.bf16.gmra.mxu0 %v801
  %v837 = vpop.f32.mrf.mxu0
  %v838 = vadd.f32 0.0, %v837
  %v839 = vpop.f32.mrf.mxu0
  %v840 = vpop.f32.mrf.mxu0
  %v841 = vpop.f32.mrf.mxu0
  %842 = vdwg.mxu0
  %v843 = vadd.f32 %v772, %v838
  %s844 = scalar_lea.vmem %s0, 11
  %v845 = vld [vmem:[%s844] sm:$0x1]
  %846 = vrot.lane.b32.xlu0 %v61, 115
  %v847 = vpop.permute.xlu0 %846
  %848 = vrot.lane.b32.xlu0 %v62, 115
  %v849 = vpop.permute.xlu0 %848
  %850 = vrot.lane.b32.xlu0 %v63, 115
  %v851 = vpop.permute.xlu0 %850
  %852 = vrot.lane.b32.xlu0 %v64, 115
  %v853 = vpop.permute.xlu0 %852
  %854 = vrot.lane.b32.xlu0 %v65, 115
  %v855 = vpop.permute.xlu0 %854
  %856 = vrot.lane.b32.xlu0 %v66, 115
  %v857 = vpop.permute.xlu0 %856
  %858 = vrot.lane.b32.xlu0 %v67, 115
  %v859 = vpop.permute.xlu0 %858
  %860 = vrot.lane.b32.xlu0 %v68, 115
  %v861 = vpop.permute.xlu0 %860
  %vm862 = vcmask 941056
  %v863 = vsel %vm862, %v847, %v849
  %v864 = vsel %vm862, %v851, %v853
  %v865 = vsel %vm862, %v855, %v857
  %v866 = vsel %vm862, %v859, %v861
  %v872 = vsel %vm94, %v845, 0
  %874 = vmatprep.subr.bf16.mxu0 0
  %875 = vmatpush1.bf16.msra.mxu0 0
  %876 = vmatprep.subr.bf16.mxu0 0
  %877 = vmatpush1.bf16.msra.mxu0 0
  %878 = vmatprep.subr.bf16.mxu0 0
  %879 = vmatpush1.bf16.msra.mxu0 0
  %880 = vmatprep.subr.bf16.mxu0 0
  %881 = vmatpush1.bf16.msra.mxu0 0
  %882 = vmatprep.subr.bf16.mxu0 0
  %883 = vmatpush1.bf16.msra.mxu0 %v866
  %884 = vmatprep.subr.bf16.mxu0 0
  %885 = vmatpush1.bf16.msra.mxu0 %v865
  %886 = vmatprep.subr.bf16.mxu0 0
  %887 = vmatpush1.bf16.msra.mxu0 %v864
  %888 = vmatprep.subr.bf16.mxu0 0
  %889 = vmatpush1.bf16.msra.mxu0 %v863
  %890 = vmatprep.subr.bf16.mxu0 0
  %891 = vmatpush2.bf16.msra.mxu0 0
  %892 = vmatprep.subr.bf16.mxu0 0
  %893 = vmatpush2.bf16.msra.mxu0 0
  %894 = vmatprep.subr.bf16.mxu0 0
  %895 = vmatpush2.bf16.msra.mxu0 0
  %896 = vmatprep.subr.bf16.mxu0 0
  %897 = vmatpush2.bf16.msra.mxu0 0
  %898 = vmatprep.subr.bf16.mxu0 0
  %899 = vmatpush2.bf16.msra.mxu0 0
  %900 = vmatprep.subr.bf16.mxu0 0
  %901 = vmatpush2.bf16.msra.mxu0 0
  %902 = vmatprep.subr.bf16.mxu0 0
  %903 = vmatpush2.bf16.msra.mxu0 0
  %904 = vmatprep.subr.bf16.mxu0 0
  %905 = vmatpush2.bf16.msra.mxu0 0
  %906 = vmatprep.mubr.bf16.mxu0 0
  %907 = vmatmul.mubr.bf16.gmra.mxu0 %v872
  %v908 = vpop.f32.mrf.mxu0
  %v909 = vadd.f32 0.0, %v908
  %v910 = vpop.f32.mrf.mxu0
  %v911 = vpop.f32.mrf.mxu0
  %v912 = vpop.f32.mrf.mxu0
  %913 = vdwg.mxu0
  %v914 = vadd.f32 %v843, %v909
  %s915 = scalar_lea.vmem %s0, 12
  %v916 = vld [vmem:[%s915] sm:$0x1]
  %917 = vrot.lane.b32.xlu0 %v61, 113
  %v918 = vpop.permute.xlu0 %917
  %919 = vrot.lane.b32.xlu0 %v62, 113
  %v920 = vpop.permute.xlu0 %919
  %921 = vrot.lane.b32.xlu0 %v63, 113
  %v922 = vpop.permute.xlu0 %921
  %923 = vrot.lane.b32.xlu0 %v64, 113
  %v924 = vpop.permute.xlu0 %923
  %925 = vrot.lane.b32.xlu0 %v65, 113
  %v926 = vpop.permute.xlu0 %925
  %927 = vrot.lane.b32.xlu0 %v66, 113
  %v928 = vpop.permute.xlu0 %927
  %929 = vrot.lane.b32.xlu0 %v67, 113
  %v930 = vpop.permute.xlu0 %929
  %931 = vrot.lane.b32.xlu0 %v68, 113
  %v932 = vpop.permute.xlu0 %931
  %vm933 = vcmask 924672
  %v934 = vsel %vm933, %v918, %v920
  %v935 = vsel %vm933, %v922, %v924
  %v936 = vsel %vm933, %v926, %v928
  %v937 = vsel %vm933, %v930, %v932
  %v943 = vsel %vm94, %v916, 0
  %945 = vmatprep.subr.bf16.mxu0 0
  %946 = vmatpush1.bf16.msra.mxu0 0
  %947 = vmatprep.subr.bf16.mxu0 0
  %948 = vmatpush1.bf16.msra.mxu0 0
  %949 = vmatprep.subr.bf16.mxu0 0
  %950 = vmatpush1.bf16.msra.mxu0 0
  %951 = vmatprep.subr.bf16.mxu0 0
  %952 = vmatpush1.bf16.msra.mxu0 0
  %953 = vmatprep.subr.bf16.mxu0 0
  %954 = vmatpush1.bf16.msra.mxu0 %v937
  %955 = vmatprep.subr.bf16.mxu0 0
  %956 = vmatpush1.bf16.msra.mxu0 %v936
  %957 = vmatprep.subr.bf16.mxu0 0
  %958 = vmatpush1.bf16.msra.mxu0 %v935
  %959 = vmatprep.subr.bf16.mxu0 0
  %960 = vmatpush1.bf16.msra.mxu0 %v934
  %961 = vmatprep.subr.bf16.mxu0 0
  %962 = vmatpush2.bf16.msra.mxu0 0
  %963 = vmatprep.subr.bf16.mxu0 0
  %964 = vmatpush2.bf16.msra.mxu0 0
  %965 = vmatprep.subr.bf16.mxu0 0
  %966 = vmatpush2.bf16.msra.mxu0 0
  %967 = vmatprep.subr.bf16.mxu0 0
  %968 = vmatpush2.bf16.msra.mxu0 0
  %969 = vmatprep.subr.bf16.mxu0 0
  %970 = vmatpush2.bf16.msra.mxu0 0
  %971 = vmatprep.subr.bf16.mxu0 0
  %972 = vmatpush2.bf16.msra.mxu0 0
  %973 = vmatprep.subr.bf16.mxu0 0
  %974 = vmatpush2.bf16.msra.mxu0 0
  %975 = vmatprep.subr.bf16.mxu0 0
  %976 = vmatpush2.bf16.msra.mxu0 0
  %977 = vmatprep.mubr.bf16.mxu0 0
  %978 = vmatmul.mubr.bf16.gmra.mxu0 %v943
  %v979 = vpop.f32.mrf.mxu0
  %v980 = vadd.f32 0.0, %v979
  %v981 = vpop.f32.mrf.mxu0
  %v982 = vpop.f32.mrf.mxu0
  %v983 = vpop.f32.mrf.mxu0
  %984 = vdwg.mxu0
  %v985 = vadd.f32 %v914, %v980
  %s986 = scalar_lea.vmem %s0, 13
  %v987 = vld [vmem:[%s986] sm:$0x1]
  %988 = vrot.lane.b32.xlu0 %v61, 112
  %v989 = vpop.permute.xlu0 %988
  %990 = vrot.lane.b32.xlu0 %v62, 112
  %v991 = vpop.permute.xlu0 %990
  %992 = vrot.lane.b32.xlu0 %v63, 112
  %v993 = vpop.permute.xlu0 %992
  %994 = vrot.lane.b32.xlu0 %v64, 112
  %v995 = vpop.permute.xlu0 %994
  %996 = vrot.lane.b32.xlu0 %v65, 112
  %v997 = vpop.permute.xlu0 %996
  %998 = vrot.lane.b32.xlu0 %v66, 112
  %v999 = vpop.permute.xlu0 %998
  %1000 = vrot.lane.b32.xlu0 %v67, 112
  %v1001 = vpop.permute.xlu0 %1000
  %1002 = vrot.lane.b32.xlu0 %v68, 112
  %v1003 = vpop.permute.xlu0 %1002
  %vm1004 = vcmask 916480
  %v1005 = vsel %vm1004, %v989, %v991
  %v1006 = vsel %vm1004, %v993, %v995
  %v1007 = vsel %vm1004, %v997, %v999
  %v1008 = vsel %vm1004, %v1001, %v1003
  %v1014 = vsel %vm94, %v987, 0
  %1016 = vmatprep.subr.bf16.mxu0 0
  %1017 = vmatpush1.bf16.msra.mxu0 0
  %1018 = vmatprep.subr.bf16.mxu0 0
  %1019 = vmatpush1.bf16.msra.mxu0 0
  %1020 = vmatprep.subr.bf16.mxu0 0
  %1021 = vmatpush1.bf16.msra.mxu0 0
  %1022 = vmatprep.subr.bf16.mxu0 0
  %1023 = vmatpush1.bf16.msra.mxu0 0
  %1024 = vmatprep.subr.bf16.mxu0 0
  %1025 = vmatpush1.bf16.msra.mxu0 %v1008
  %1026 = vmatprep.subr.bf16.mxu0 0
  %1027 = vmatpush1.bf16.msra.mxu0 %v1007
  %1028 = vmatprep.subr.bf16.mxu0 0
  %1029 = vmatpush1.bf16.msra.mxu0 %v1006
  %1030 = vmatprep.subr.bf16.mxu0 0
  %1031 = vmatpush1.bf16.msra.mxu0 %v1005
  %1032 = vmatprep.subr.bf16.mxu0 0
  %1033 = vmatpush2.bf16.msra.mxu0 0
  %1034 = vmatprep.subr.bf16.mxu0 0
  %1035 = vmatpush2.bf16.msra.mxu0 0
  %1036 = vmatprep.subr.bf16.mxu0 0
  %1037 = vmatpush2.bf16.msra.mxu0 0
  %1038 = vmatprep.subr.bf16.mxu0 0
  %1039 = vmatpush2.bf16.msra.mxu0 0
  %1040 = vmatprep.subr.bf16.mxu0 0
  %1041 = vmatpush2.bf16.msra.mxu0 0
  %1042 = vmatprep.subr.bf16.mxu0 0
  %1043 = vmatpush2.bf16.msra.mxu0 0
  %1044 = vmatprep.subr.bf16.mxu0 0
  %1045 = vmatpush2.bf16.msra.mxu0 0
  %1046 = vmatprep.subr.bf16.mxu0 0
  %1047 = vmatpush2.bf16.msra.mxu0 0
  %1048 = vmatprep.mubr.bf16.mxu0 0
  %1049 = vmatmul.mubr.bf16.gmra.mxu0 %v1014
  %v1050 = vpop.f32.mrf.mxu0
  %v1051 = vadd.f32 0.0, %v1050
  %v1052 = vpop.f32.mrf.mxu0
  %v1053 = vpop.f32.mrf.mxu0
  %v1054 = vpop.f32.mrf.mxu0
  %1055 = vdwg.mxu0
  %v1056 = vadd.f32 %v985, %v1051
  %s1057 = scalar_lea.vmem %s0, 14
  %v1058 = vld [vmem:[%s1057] sm:$0x1]
  %1059 = vrot.lane.b32.xlu0 %v61, 111
  %v1060 = vpop.permute.xlu0 %1059
  %1061 = vrot.lane.b32.xlu0 %v62, 111
  %v1062 = vpop.permute.xlu0 %1061
  %1063 = vrot.lane.b32.xlu0 %v63, 111
  %v1064 = vpop.permute.xlu0 %1063
  %1065 = vrot.lane.b32.xlu0 %v64, 111
  %v1066 = vpop.permute.xlu0 %1065
  %1067 = vrot.lane.b32.xlu0 %v65, 111
  %v1068 = vpop.permute.xlu0 %1067
  %1069 = vrot.lane.b32.xlu0 %v66, 111
  %v1070 = vpop.permute.xlu0 %1069
  %1071 = vrot.lane.b32.xlu0 %v67, 111
  %v1072 = vpop.permute.xlu0 %1071
  %1073 = vrot.lane.b32.xlu0 %v68, 111
  %v1074 = vpop.permute.xlu0 %1073
  %vm1075 = vcmask 908288
  %v1076 = vsel %vm1075, %v1060, %v1062
  %v1077 = vsel %vm1075, %v1064, %v1066
  %v1078 = vsel %vm1075, %v1068, %v1070
  %v1079 = vsel %vm1075, %v1072, %v1074
  %v1085 = vsel %vm94, %v1058, 0
  %1087 = vmatprep.subr.bf16.mxu0 0
  %1088 = vmatpush1.bf16.msra.mxu0 0
  %1089 = vmatprep.subr.bf16.mxu0 0
  %1090 = vmatpush1.bf16.msra.mxu0 0
  %1091 = vmatprep.subr.bf16.mxu0 0
  %1092 = vmatpush1.bf16.msra.mxu0 0
  %1093 = vmatprep.subr.bf16.mxu0 0
  %1094 = vmatpush1.bf16.msra.mxu0 0
  %1095 = vmatprep.subr.bf16.mxu0 0
  %1096 = vmatpush1.bf16.msra.mxu0 %v1079
  %1097 = vmatprep.subr.bf16.mxu0 0
  %1098 = vmatpush1.bf16.msra.mxu0 %v1078
  %1099 = vmatprep.subr.bf16.mxu0 0
  %1100 = vmatpush1.bf16.msra.mxu0 %v1077
  %1101 = vmatprep.subr.bf16.mxu0 0
  %1102 = vmatpush1.bf16.msra.mxu0 %v1076
  %1103 = vmatprep.subr.bf16.mxu0 0
  %1104 = vmatpush2.bf16.msra.mxu0 0
  %1105 = vmatprep.subr.bf16.mxu0 0
  %1106 = vmatpush2.bf16.msra.mxu0 0
  %1107 = vmatprep.subr.bf16.mxu0 0
  %1108 = vmatpush2.bf16.msra.mxu0 0
  %1109 = vmatprep.subr.bf16.mxu0 0
  %1110 = vmatpush2.bf16.msra.mxu0 0
  %1111 = vmatprep.subr.bf16.mxu0 0
  %1112 = vmatpush2.bf16.msra.mxu0 0
  %1113 = vmatprep.subr.bf16.mxu0 0
  %1114 = vmatpush2.bf16.msra.mxu0 0
  %1115 = vmatprep.subr.bf16.mxu0 0
  %1116 = vmatpush2.bf16.msra.mxu0 0
  %1117 = vmatprep.subr.bf16.mxu0 0
  %1118 = vmatpush2.bf16.msra.mxu0 0
  %1119 = vmatprep.mubr.bf16.mxu0 0
  %1120 = vmatmul.mubr.bf16.gmra.mxu0 %v1085
  %v1121 = vpop.f32.mrf.mxu0
  %v1122 = vadd.f32 0.0, %v1121
  %v1123 = vpop.f32.mrf.mxu0
  %v1124 = vpop.f32.mrf.mxu0
  %v1125 = vpop.f32.mrf.mxu0
  %1126 = vdwg.mxu0
  %v1127 = vadd.f32 %v1056, %v1122
  %s1128 = scalar_lea.vmem %s0, 15
  %v1129 = vld [vmem:[%s1128] sm:$0x1]
  %1130 = vrot.lane.b32.xlu0 %v61, 110
  %v1131 = vpop.permute.xlu0 %1130
  %1132 = vrot.lane.b32.xlu0 %v62, 110
  %v1133 = vpop.permute.xlu0 %1132
  %1134 = vrot.lane.b32.xlu0 %v63, 110
  %v1135 = vpop.permute.xlu0 %1134
  %1136 = vrot.lane.b32.xlu0 %v64, 110
  %v1137 = vpop.permute.xlu0 %1136
  %1138 = vrot.lane.b32.xlu0 %v65, 110
  %v1139 = vpop.permute.xlu0 %1138
  %1140 = vrot.lane.b32.xlu0 %v66, 110
  %v1141 = vpop.permute.xlu0 %1140
  %1142 = vrot.lane.b32.xlu0 %v67, 110
  %v1143 = vpop.permute.xlu0 %1142
  %1144 = vrot.lane.b32.xlu0 %v68, 110
  %v1145 = vpop.permute.xlu0 %1144
  %vm1146 = vcmask 900096
  %v1147 = vsel %vm1146, %v1131, %v1133
  %v1148 = vsel %vm1146, %v1135, %v1137
  %v1149 = vsel %vm1146, %v1139, %v1141
  %v1150 = vsel %vm1146, %v1143, %v1145
  %v1156 = vsel %vm94, %v1129, 0
  %1158 = vmatprep.subr.bf16.mxu0 0
  %1159 = vmatpush1.bf16.msra.mxu0 0
  %1160 = vmatprep.subr.bf16.mxu0 0
  %1161 = vmatpush1.bf16.msra.mxu0 0
  %1162 = vmatprep.subr.bf16.mxu0 0
  %1163 = vmatpush1.bf16.msra.mxu0 0
  %1164 = vmatprep.subr.bf16.mxu0 0
  %1165 = vmatpush1.bf16.msra.mxu0 0
  %1166 = vmatprep.subr.bf16.mxu0 0
  %1167 = vmatpush1.bf16.msra.mxu0 %v1150
  %1168 = vmatprep.subr.bf16.mxu0 0
  %1169 = vmatpush1.bf16.msra.mxu0 %v1149
  %1170 = vmatprep.subr.bf16.mxu0 0
  %1171 = vmatpush1.bf16.msra.mxu0 %v1148
  %1172 = vmatprep.subr.bf16.mxu0 0
  %1173 = vmatpush1.bf16.msra.mxu0 %v1147
  %1174 = vmatprep.subr.bf16.mxu0 0
  %1175 = vmatpush2.bf16.msra.mxu0 0
  %1176 = vmatprep.subr.bf16.mxu0 0
  %1177 = vmatpush2.bf16.msra.mxu0 0
  %1178 = vmatprep.subr.bf16.mxu0 0
  %1179 = vmatpush2.bf16.msra.mxu0 0
  %1180 = vmatprep.subr.bf16.mxu0 0
  %1181 = vmatpush2.bf16.msra.mxu0 0
  %1182 = vmatprep.subr.bf16.mxu0 0
  %1183 = vmatpush2.bf16.msra.mxu0 0
  %1184 = vmatprep.subr.bf16.mxu0 0
  %1185 = vmatpush2.bf16.msra.mxu0 0
  %1186 = vmatprep.subr.bf16.mxu0 0
  %1187 = vmatpush2.bf16.msra.mxu0 0
  %1188 = vmatprep.subr.bf16.mxu0 0
  %1189 = vmatpush2.bf16.msra.mxu0 0
  %1190 = vmatprep.mubr.bf16.mxu0 0
  %1191 = vmatmul.mubr.bf16.gmra.mxu0 %v1156
  %v1192 = vpop.f32.mrf.mxu0
  %v1193 = vadd.f32 0.0, %v1192
  %v1194 = vpop.f32.mrf.mxu0
  %v1195 = vpop.f32.mrf.mxu0
  %v1196 = vpop.f32.mrf.mxu0
  %1197 = vdwg.mxu0
  %v1198 = vadd.f32 %v1127, %v1193
  %v1199 = vld [vmem:[%s3] sm:$0x1]
  %1201 = vset.pattern.permute.xlu0 0
  %1202 = vperm.xlu0 %1201, %v1199
  %v1203 = vpop.permute.xlu0 %1202
  %v1205 = vlaneseq
  %v1206 = vshrl.u32 %v1205, 7
  %v1207 = vsub.s32 0, %v1206
  %v1208 = vrot.slane %v1203, %v1207
  %v1209 = vadd.f32 %v1198, %v1208
  %v1210 = vpack.c.bf16 %v1209, %v1209
  %vm1211 = vcmask 1040384
  %vm1212 = vsmask.f32 256
  %vm1213 = vmand %vm1211, %vm1212
  %v1214 = vld [vmem:[%s4] sm:$0x1]
  %v1215 = vsel %vm1213, %v1210, %v1214
  %1216 = vst [vmem:[%s4] sm:$0x1] %v1215
  // Predicated region
  $region18: #{nlayer_discriminator_forward.9} parent=0 // pred_check
    _
  $region19: #{nlayer_discriminator_forward.9} parent=0 // pred_check_branch
    %1218 = sbr.rel (0) target = $region21
  $region20: #{nlayer_discriminator_forward.9} parent=0 // pred_region
    _
  $region21: #{nlayer_discriminator_forward.9} parent=0 // pred_fallthru
    _
  // Predicated region
  $region22: #{nlayer_discriminator_forward.9} parent=0 // pred_check
    _
  $region23: #{nlayer_discriminator_forward.9} parent=0 // pred_check_branch
    %1220 = sbr.rel (0) target = $region25
  $region24: #{nlayer_discriminator_forward.9} parent=0 // pred_region
    _
  $region25: #{nlayer_discriminator_forward.9} parent=0 // pred_fallthru
    _

// kernel: nlayer_discriminator_forward.8
$region0: #{nlayer_discriminator_forward.8}
  #allocation0 [shape = 'u32[]', space=smem, size = 0x4, offset = 0x4, fixed_abs, tag = 'smem constant byte address 0x4 - core index']
  #allocation1 [shape = 'u32[144,128]{1,0:T(1,128)}', space=vmem, size = 0x12000, scoped, tag = 'internal scratch']
  %s0 = inlined_call_operand.vmem [shape: bf16[16,64,32], index: 0, kind: input, shape index: {}]
  %s1 = inlined_call_operand.vmem [shape: bf16[32,256], index: 1, kind: input, shape index: {}]
  %s2 = inlined_call_operand.vmem [shape: f32[1,128], index: 2, kind: input, shape index: {}]
  %s3 = inlined_call_operand.vmem [shape: f32[64,3], index: 3, kind: input, shape index: {}]
  %s4 = inlined_call_operand.vmem [shape: bf16[64,128], index: 4, kind: output, shape index: {}]
  %s5 = sld [smem:[#allocation0]]
  $region26: #{nlayer_discriminator_forward.8} parent=0
    _
  %s7 = ssub.s32 1, %s5
  %s8 = scalar_select 0, %s7, %s5
  // Predicated region
  $region2: #{nlayer_discriminator_forward.8} parent=0 // pred_check
    _
  $region3: #{nlayer_discriminator_forward.8} parent=0 // pred_check_branch
    %10 = sbr.rel (0) target = $region5
  $region4: #{nlayer_discriminator_forward.8} parent=0 // pred_region
    _
  $region5: #{nlayer_discriminator_forward.8} parent=0 // pred_fallthru
    _
  // Predicated region
  $region6: #{nlayer_discriminator_forward.8} parent=0 // pred_check
    _
  $region7: #{nlayer_discriminator_forward.8} parent=0 // pred_check_branch
    %12 = sbr.rel (0) target = $region9
  $region8: #{nlayer_discriminator_forward.8} parent=0 // pred_region
    _
  $region9: #{nlayer_discriminator_forward.8} parent=0 // pred_fallthru
    _
  // Predicated region
  $region10: #{nlayer_discriminator_forward.8} parent=0 // pred_check
    _
  $region11: #{nlayer_discriminator_forward.8} parent=0 // pred_check_branch
    %14 = sbr.rel (0) target = $region13
  $region12: #{nlayer_discriminator_forward.8} parent=0 // pred_region
    _
  $region13: #{nlayer_discriminator_forward.8} parent=0 // pred_fallthru
    _
  // Predicated region
  $region14: #{nlayer_discriminator_forward.8} parent=0 // pred_check
    _
  $region15: #{nlayer_discriminator_forward.8} parent=0 // pred_check_branch
    %16 = sbr.rel (0) target = $region17
  $region16: #{nlayer_discriminator_forward.8} parent=0 // pred_region
    _
  $region17: #{nlayer_discriminator_forward.8} parent=0 // pred_fallthru
    _
  %v18 = vld [vmem:[%s0] sm:$0xf]
  %v19 = vld [vmem:[%s0 + $0x4] sm:$0xf]
  %v20 = vld [vmem:[%s0 + $0x8] sm:$0xf]
  %v21 = vld [vmem:[%s0 + $0xc] sm:$0xf]
  %v22 = vld [vmem:[%s0 + $0x10] sm:$0xf]
  %v23 = vld [vmem:[%s0 + $0x14] sm:$0xf]
  %v24 = vld [vmem:[%s0 + $0x18] sm:$0xf]
  %v25 = vld [vmem:[%s0 + $0x1c] sm:$0xf]
  %v26 = vld [vmem:[%s1] sm:$0xf]
  %v27 = vld [vmem:[%s1 + $0x8] sm:$0xf]
  %v28 = vld [vmem:[%s1 + $0x10] sm:$0xf]
  %v29 = vld [vmem:[%s1 + $0x18] sm:$0xf]
  %s30 = scalar_lea.vmem %s0, 32
  %v31 = vld [vmem:[%s30] sm:$0xf]
  %v32 = vld [vmem:[%s30 + $0x4] sm:$0xf]
  %v33 = vld [vmem:[%s30 + $0x8] sm:$0xf]
  %v34 = vld [vmem:[%s30 + $0xc] sm:$0xf]
  %v35 = vld [vmem:[%s30 + $0x10] sm:$0xf]
  %v36 = vld [vmem:[%s30 + $0x14] sm:$0xf]
  %v37 = vld [vmem:[%s30 + $0x18] sm:$0xf]
  %v38 = vld [vmem:[%s30 + $0x1c] sm:$0xf]
  %v39 = vld [vmem:[%s1] sm:$0xff]
  %v40 = vld [vmem:[%s1 + $0x8] sm:$0xff]
  %v41 = vld [vmem:[%s1 + $0x10] sm:$0xff]
  %v42 = vld [vmem:[%s1 + $0x18] sm:$0xff]
  %v51 = vunpack.c.l.b16 %v31
  %v52 = vunpack.c.l.b16 %v32
  %v53 = vunpack.c.l.b16 %v33
  %v54 = vunpack.c.l.b16 %v34
  %v55 = vunpack.c.l.b16 %v35
  %v56 = vunpack.c.l.b16 %v36
  %v57 = vunpack.c.l.b16 %v37
  %v58 = vunpack.c.l.b16 %v38
  %v59 = vpack.c.b16 %v52, %v51
  %v60 = vpack.c.b16 %v54, %v53
  %v61 = vpack.c.b16 %v56, %v55
  %v62 = vpack.c.b16 %v58, %v57
  %v67 = vunpack.c.l.b16 %v39
  %v68 = vunpack.c.h.b16 %v39
  %v69 = vunpack.c.l.b16 %v40
  %v70 = vunpack.c.h.b16 %v40
  %v71 = vunpack.c.l.b16 %v41
  %v72 = vunpack.c.h.b16 %v41
  %v73 = vunpack.c.l.b16 %v42
  %v74 = vunpack.c.h.b16 %v42
  %v75 = vpack.c.b16 %v69, %v67
  %v76 = vpack.c.b16 %v70, %v68
  %v77 = vpack.c.b16 %v73, %v71
  %v78 = vpack.c.b16 %v74, %v72
  %79 = vrot.lane.b32.xlu0 %v75, 127
  %v80 = vpop.permute.xlu0 %79
  %81 = vrot.lane.b32.xlu0 %v76, 127
  %v82 = vpop.permute.xlu0 %81
  %83 = vrot.lane.b32.xlu0 %v77, 127
  %v84 = vpop.permute.xlu0 %83
  %85 = vrot.lane.b32.xlu0 %v78, 127
  %v86 = vpop.permute.xlu0 %85
  %vm87 = vcmask 1039360
  %v88 = vsel %vm87, %v80, %v82
  %v89 = vsel %vm87, %v84, %v86
  %vm92 = vcmask 261120
  %v94 = vsel %vm92, %v59, 0
  %v97 = vsel %vm92, %v60, 0
  %v100 = vsel %vm92, %v61, 0
  %v103 = vsel %vm92, %v62, 0
  %105 = vmatprep.subr.bf16.mxu0 0
  %106 = vmatpush1.bf16.msra.mxu0 0
  %107 = vmatprep.subr.bf16.mxu0 0
  %108 = vmatpush1.bf16.msra.mxu0 0
  %109 = vmatprep.subr.bf16.mxu0 0
  %110 = vmatpush1.bf16.msra.mxu0 0
  %111 = vmatprep.subr.bf16.mxu0 0
  %112 = vmatpush1.bf16.msra.mxu0 0
  %113 = vmatprep.subr.bf16.mxu0 0
  %114 = vmatpush1.bf16.msra.mxu0 0
  %115 = vmatprep.subr.bf16.mxu0 0
  %116 = vmatpush1.bf16.msra.mxu0 0
  %117 = vmatprep.subr.bf16.mxu0 0
  %118 = vmatpush1.bf16.msra.mxu0 %v89
  %119 = vmatprep.subr.bf16.mxu0 0
  %120 = vmatpush1.bf16.msra.mxu0 %v88
  %121 = vmatprep.subr.bf16.mxu0 0
  %122 = vmatpush2.bf16.msra.mxu0 0
  %123 = vmatprep.subr.bf16.mxu0 0
  %124 = vmatpush2.bf16.msra.mxu0 0
  %125 = vmatprep.subr.bf16.mxu0 0
  %126 = vmatpush2.bf16.msra.mxu0 0
  %127 = vmatprep.subr.bf16.mxu0 0
  %128 = vmatpush2.bf16.msra.mxu0 0
  %129 = vmatprep.subr.bf16.mxu0 0
  %130 = vmatpush2.bf16.msra.mxu0 0
  %131 = vmatprep.subr.bf16.mxu0 0
  %132 = vmatpush2.bf16.msra.mxu0 0
  %133 = vmatprep.subr.bf16.mxu0 0
  %134 = vmatpush2.bf16.msra.mxu0 0
  %135 = vmatprep.subr.bf16.mxu0 0
  %136 = vmatpush2.bf16.msra.mxu0 0
  %137 = vmatprep.mubr.bf16.mxu0 0
  %138 = vmatmul.mubr.bf16.gmra.mxu0 %v94
  %v139 = vpop.f32.mrf.mxu0
  %v140 = vadd.f32 0.0, %v139
  %v141 = vpop.f32.mrf.mxu0
  %v142 = vpop.f32.mrf.mxu0
  %v143 = vadd.f32 0.0, %v142
  %v144 = vpop.f32.mrf.mxu0
  %145 = vmatprep.mubr.bf16.mxu0 0
  %146 = vmatmul.mubr.bf16.gmra.mxu0 %v97
  %v147 = vpop.f32.mrf.mxu0
  %v148 = vadd.f32 0.0, %v147
  %v149 = vpop.f32.mrf.mxu0
  %v150 = vpop.f32.mrf.mxu0
  %v151 = vadd.f32 0.0, %v150
  %v152 = vpop.f32.mrf.mxu0
  %153 = vmatprep.mubr.bf16.mxu0 0
  %154 = vmatmul.mubr.bf16.gmra.mxu0 %v100
  %v155 = vpop.f32.mrf.mxu0
  %v156 = vadd.f32 0.0, %v155
  %v157 = vpop.f32.mrf.mxu0
  %v158 = vpop.f32.mrf.mxu0
  %v159 = vadd.f32 0.0, %v158
  %v160 = vpop.f32.mrf.mxu0
  %161 = vmatprep.mubr.bf16.mxu0 0
  %162 = vmatmul.mubr.bf16.gmra.mxu0 %v103
  %v163 = vpop.f32.mrf.mxu0
  %v164 = vadd.f32 0.0, %v163
  %v165 = vpop.f32.mrf.mxu0
  %v166 = vpop.f32.mrf.mxu0
  %v167 = vadd.f32 0.0, %v166
  %v168 = vpop.f32.mrf.mxu0
  %169 = vdwg.mxu0
  %v178 = vunpack.c.l.b16 %v18
  %v179 = vunpack.c.l.b16 %v19
  %v180 = vunpack.c.l.b16 %v20
  %v181 = vunpack.c.l.b16 %v21
  %v182 = vunpack.c.l.b16 %v22
  %v183 = vunpack.c.l.b16 %v23
  %v184 = vunpack.c.l.b16 %v24
  %v185 = vunpack.c.l.b16 %v25
  %v186 = vpack.c.b16 %v179, %v178
  %v187 = vpack.c.b16 %v181, %v180
  %v188 = vpack.c.b16 %v183, %v182
  %v189 = vpack.c.b16 %v185, %v184
  %v194 = vunpack.c.l.b16 %v26
  %v195 = vunpack.c.l.b16 %v27
  %v196 = vunpack.c.l.b16 %v28
  %v197 = vunpack.c.l.b16 %v29
  %v198 = vpack.c.b16 %v195, %v194
  %v199 = vpack.c.b16 %v197, %v196
  %v203 = vsel %vm92, %v186, 0
  %v206 = vsel %vm92, %v187, 0
  %v209 = vsel %vm92, %v188, 0
  %v212 = vsel %vm92, %v189, 0
  %214 = vmatprep.subr.bf16.mxu0 0
  %215 = vmatpush1.bf16.msra.mxu0 0
  %216 = vmatprep.subr.bf16.mxu0 0
  %217 = vmatpush1.bf16.msra.mxu0 0
  %218 = vmatprep.subr.bf16.mxu0 0
  %219 = vmatpush1.bf16.msra.mxu0 0
  %220 = vmatprep.subr.bf16.mxu0 0
  %221 = vmatpush1.bf16.msra.mxu0 0
  %222 = vmatprep.subr.bf16.mxu0 0
  %223 = vmatpush1.bf16.msra.mxu0 0
  %224 = vmatprep.subr.bf16.mxu0 0
  %225 = vmatpush1.bf16.msra.mxu0 0
  %226 = vmatprep.subr.bf16.mxu0 0
  %227 = vmatpush1.bf16.msra.mxu0 %v199
  %228 = vmatprep.subr.bf16.mxu0 0
  %229 = vmatpush1.bf16.msra.mxu0 %v198
  %230 = vmatprep.subr.bf16.mxu0 0
  %231 = vmatpush2.bf16.msra.mxu0 0
  %232 = vmatprep.subr.bf16.mxu0 0
  %233 = vmatpush2.bf16.msra.mxu0 0
  %234 = vmatprep.subr.bf16.mxu0 0
  %235 = vmatpush2.bf16.msra.mxu0 0
  %236 = vmatprep.subr.bf16.mxu0 0
  %237 = vmatpush2.bf16.msra.mxu0 0
  %238 = vmatprep.subr.bf16.mxu0 0
  %239 = vmatpush2.bf16.msra.mxu0 0
  %240 = vmatprep.subr.bf16.mxu0 0
  %241 = vmatpush2.bf16.msra.mxu0 0
  %242 = vmatprep.subr.bf16.mxu0 0
  %243 = vmatpush2.bf16.msra.mxu0 0
  %244 = vmatprep.subr.bf16.mxu0 0
  %245 = vmatpush2.bf16.msra.mxu0 0
  %246 = vmatprep.mubr.bf16.mxu0 0
  %247 = vmatmul.mubr.bf16.gmra.mxu0 %v203
  %v248 = vpop.f32.mrf.mxu0
  %v249 = vadd.f32 %v140, %v248
  %v250 = vpop.f32.mrf.mxu0
  %v251 = vpop.f32.mrf.mxu0
  %v252 = vadd.f32 %v143, %v251
  %v253 = vpop.f32.mrf.mxu0
  %254 = vmatprep.mubr.bf16.mxu0 0
  %255 = vmatmul.mubr.bf16.gmra.mxu0 %v206
  %v256 = vpop.f32.mrf.mxu0
  %v257 = vadd.f32 %v148, %v256
  %v258 = vpop.f32.mrf.mxu0
  %v259 = vpop.f32.mrf.mxu0
  %v260 = vadd.f32 %v151, %v259
  %v261 = vpop.f32.mrf.mxu0
  %262 = vmatprep.mubr.bf16.mxu0 0
  %263 = vmatmul.mubr.bf16.gmra.mxu0 %v209
  %v264 = vpop.f32.mrf.mxu0
  %v265 = vadd.f32 %v156, %v264
  %v266 = vpop.f32.mrf.mxu0
  %v267 = vpop.f32.mrf.mxu0
  %v268 = vadd.f32 %v159, %v267
  %v269 = vpop.f32.mrf.mxu0
  %270 = vmatprep.mubr.bf16.mxu0 0
  %271 = vmatmul.mubr.bf16.gmra.mxu0 %v212
  %v272 = vpop.f32.mrf.mxu0
  %v273 = vadd.f32 %v164, %v272
  %v274 = vpop.f32.mrf.mxu0
  %v275 = vpop.f32.mrf.mxu0
  %v276 = vadd.f32 %v167, %v275
  %v277 = vpop.f32.mrf.mxu0
  %278 = vdwg.mxu0
  %s279 = scalar_lea.vmem %s0, 64
  %v280 = vld [vmem:[%s279] sm:$0xf]
  %v281 = vld [vmem:[%s279 + $0x4] sm:$0xf]
  %v282 = vld [vmem:[%s279 + $0x8] sm:$0xf]
  %v283 = vld [vmem:[%s279 + $0xc] sm:$0xf]
  %v284 = vld [vmem:[%s279 + $0x10] sm:$0xf]
  %v285 = vld [vmem:[%s279 + $0x14] sm:$0xf]
  %v286 = vld [vmem:[%s279 + $0x18] sm:$0xf]
  %v287 = vld [vmem:[%s279 + $0x1c] sm:$0xf]
  %v296 = vunpack.c.l.b16 %v280
  %v297 = vunpack.c.l.b16 %v281
  %v298 = vunpack.c.l.b16 %v282
  %v299 = vunpack.c.l.b16 %v283
  %v300 = vunpack.c.l.b16 %v284
  %v301 = vunpack.c.l.b16 %v285
  %v302 = vunpack.c.l.b16 %v286
  %v303 = vunpack.c.l.b16 %v287
  %v304 = vpack.c.b16 %v297, %v296
  %v305 = vpack.c.b16 %v299, %v298
  %v306 = vpack.c.b16 %v301, %v300
  %v307 = vpack.c.b16 %v303, %v302
  %308 = vrot.lane.b32.xlu0 %v75, 126
  %v309 = vpop.permute.xlu0 %308
  %310 = vrot.lane.b32.xlu0 %v76, 126
  %v311 = vpop.permute.xlu0 %310
  %312 = vrot.lane.b32.xlu0 %v77, 126
  %v313 = vpop.permute.xlu0 %312
  %314 = vrot.lane.b32.xlu0 %v78, 126
  %v315 = vpop.permute.xlu0 %314
  %vm316 = vcmask 1031168
  %v317 = vsel %vm316, %v309, %v311
  %v318 = vsel %vm316, %v313, %v315
  %v322 = vsel %vm92, %v304, 0
  %v325 = vsel %vm92, %v305, 0
  %v328 = vsel %vm92, %v306, 0
  %v331 = vsel %vm92, %v307, 0
  %333 = vmatprep.subr.bf16.mxu0 0
  %334 = vmatpush1.bf16.msra.mxu0 0
  %335 = vmatprep.subr.bf16.mxu0 0
  %336 = vmatpush1.bf16.msra.mxu0 0
  %337 = vmatprep.subr.bf16.mxu0 0
  %338 = vmatpush1.bf16.msra.mxu0 0
  %339 = vmatprep.subr.bf16.mxu0 0
  %340 = vmatpush1.bf16.msra.mxu0 0
  %341 = vmatprep.subr.bf16.mxu0 0
  %342 = vmatpush1.bf16.msra.mxu0 0
  %343 = vmatprep.subr.bf16.mxu0 0
  %344 = vmatpush1.bf16.msra.mxu0 0
  %345 = vmatprep.subr.bf16.mxu0 0
  %346 = vmatpush1.bf16.msra.mxu0 %v318
  %347 = vmatprep.subr.bf16.mxu0 0
  %348 = vmatpush1.bf16.msra.mxu0 %v317
  %349 = vmatprep.subr.bf16.mxu0 0
  %350 = vmatpush2.bf16.msra.mxu0 0
  %351 = vmatprep.subr.bf16.mxu0 0
  %352 = vmatpush2.bf16.msra.mxu0 0
  %353 = vmatprep.subr.bf16.mxu0 0
  %354 = vmatpush2.bf16.msra.mxu0 0
  %355 = vmatprep.subr.bf16.mxu0 0
  %356 = vmatpush2.bf16.msra.mxu0 0
  %357 = vmatprep.subr.bf16.mxu0 0
  %358 = vmatpush2.bf16.msra.mxu0 0
  %359 = vmatprep.subr.bf16.mxu0 0
  %360 = vmatpush2.bf16.msra.mxu0 0
  %361 = vmatprep.subr.bf16.mxu0 0
  %362 = vmatpush2.bf16.msra.mxu0 0
  %363 = vmatprep.subr.bf16.mxu0 0
  %364 = vmatpush2.bf16.msra.mxu0 0
  %365 = vmatprep.mubr.bf16.mxu0 0
  %366 = vmatmul.mubr.bf16.gmra.mxu0 %v322
  %v367 = vpop.f32.mrf.mxu0
  %v368 = vadd.f32 0.0, %v367
  %v369 = vpop.f32.mrf.mxu0
  %v370 = vpop.f32.mrf.mxu0
  %v371 = vadd.f32 0.0, %v370
  %v372 = vpop.f32.mrf.mxu0
  %373 = vmatprep.mubr.bf16.mxu0 0
  %374 = vmatmul.mubr.bf16.gmra.mxu0 %v325
  %v375 = vpop.f32.mrf.mxu0
  %v376 = vadd.f32 0.0, %v375
  %v377 = vpop.f32.mrf.mxu0
  %v378 = vpop.f32.mrf.mxu0
  %v379 = vadd.f32 0.0, %v378
  %v380 = vpop.f32.mrf.mxu0
  %381 = vmatprep.mubr.bf16.mxu0 0
  %382 = vmatmul.mubr.bf16.gmra.mxu0 %v328
  %v383 = vpop.f32.mrf.mxu0
  %v384 = vadd.f32 0.0, %v383
  %v385 = vpop.f32.mrf.mxu0
  %v386 = vpop.f32.mrf.mxu0
  %v387 = vadd.f32 0.0, %v386
  %v388 = vpop.f32.mrf.mxu0
  %389 = vmatprep.mubr.bf16.mxu0 0
  %390 = vmatmul.mubr.bf16.gmra.mxu0 %v331
  %v391 = vpop.f32.mrf.mxu0
  %v392 = vadd.f32 0.0, %v391
  %v393 = vpop.f32.mrf.mxu0
  %v394 = vpop.f32.mrf.mxu0
  %v395 = vadd.f32 0.0, %v394
  %v396 = vpop.f32.mrf.mxu0
  %397 = vdwg.mxu0
  %v398 = vadd.f32 %v249, %v368
  %v399 = vadd.f32 %v252, %v371
  %v400 = vadd.f32 %v257, %v376
  %v401 = vadd.f32 %v260, %v379
  %v402 = vadd.f32 %v265, %v384
  %v403 = vadd.f32 %v268, %v387
  %v404 = vadd.f32 %v273, %v392
  %v405 = vadd.f32 %v276, %v395
  %s406 = scalar_lea.vmem %s0, 96
  %v407 = vld [vmem:[%s406] sm:$0xf]
  %v408 = vld [vmem:[%s406 + $0x4] sm:$0xf]
  %v409 = vld [vmem:[%s406 + $0x8] sm:$0xf]
  %v410 = vld [vmem:[%s406 + $0xc] sm:$0xf]
  %v411 = vld [vmem:[%s406 + $0x10] sm:$0xf]
  %v412 = vld [vmem:[%s406 + $0x14] sm:$0xf]
  %v413 = vld [vmem:[%s406 + $0x18] sm:$0xf]
  %v414 = vld [vmem:[%s406 + $0x1c] sm:$0xf]
  %v423 = vunpack.c.l.b16 %v407
  %v424 = vunpack.c.l.b16 %v408
  %v425 = vunpack.c.l.b16 %v409
  %v426 = vunpack.c.l.b16 %v410
  %v427 = vunpack.c.l.b16 %v411
  %v428 = vunpack.c.l.b16 %v412
  %v429 = vunpack.c.l.b16 %v413
  %v430 = vunpack.c.l.b16 %v414
  %v431 = vpack.c.b16 %v424, %v423
  %v432 = vpack.c.b16 %v426, %v425
  %v433 = vpack.c.b16 %v428, %v427
  %v434 = vpack.c.b16 %v430, %v429
  %435 = vrot.lane.b32.xlu0 %v75, 125
  %v436 = vpop.permute.xlu0 %435
  %437 = vrot.lane.b32.xlu0 %v76, 125
  %v438 = vpop.permute.xlu0 %437
  %439 = vrot.lane.b32.xlu0 %v77, 125
  %v440 = vpop.permute.xlu0 %439
  %441 = vrot.lane.b32.xlu0 %v78, 125
  %v442 = vpop.permute.xlu0 %441
  %vm443 = vcmask 1022976
  %v444 = vsel %vm443, %v436, %v438
  %v445 = vsel %vm443, %v440, %v442
  %v449 = vsel %vm92, %v431, 0
  %v452 = vsel %vm92, %v432, 0
  %v455 = vsel %vm92, %v433, 0
  %v458 = vsel %vm92, %v434, 0
  %460 = vmatprep.subr.bf16.mxu0 0
  %461 = vmatpush1.bf16.msra.mxu0 0
  %462 = vmatprep.subr.bf16.mxu0 0
  %463 = vmatpush1.bf16.msra.mxu0 0
  %464 = vmatprep.subr.bf16.mxu0 0
  %465 = vmatpush1.bf16.msra.mxu0 0
  %466 = vmatprep.subr.bf16.mxu0 0
  %467 = vmatpush1.bf16.msra.mxu0 0
  %468 = vmatprep.subr.bf16.mxu0 0
  %469 = vmatpush1.bf16.msra.mxu0 0
  %470 = vmatprep.subr.bf16.mxu0 0
  %471 = vmatpush1.bf16.msra.mxu0 0
  %472 = vmatprep.subr.bf16.mxu0 0
  %473 = vmatpush1.bf16.msra.mxu0 %v445
  %474 = vmatprep.subr.bf16.mxu0 0
  %475 = vmatpush1.bf16.msra.mxu0 %v444
  %476 = vmatprep.subr.bf16.mxu0 0
  %477 = vmatpush2.bf16.msra.mxu0 0
  %478 = vmatprep.subr.bf16.mxu0 0
  %479 = vmatpush2.bf16.msra.mxu0 0
  %480 = vmatprep.subr.bf16.mxu0 0
  %481 = vmatpush2.bf16.msra.mxu0 0
  %482 = vmatprep.subr.bf16.mxu0 0
  %483 = vmatpush2.bf16.msra.mxu0 0
  %484 = vmatprep.subr.bf16.mxu0 0
  %485 = vmatpush2.bf16.msra.mxu0 0
  %486 = vmatprep.subr.bf16.mxu0 0
  %487 = vmatpush2.bf16.msra.mxu0 0
  %488 = vmatprep.subr.bf16.mxu0 0
  %489 = vmatpush2.bf16.msra.mxu0 0
  %490 = vmatprep.subr.bf16.mxu0 0
  %491 = vmatpush2.bf16.msra.mxu0 0
  %492 = vmatprep.mubr.bf16.mxu0 0
  %493 = vmatmul.mubr.bf16.gmra.mxu0 %v449
  %v494 = vpop.f32.mrf.mxu0
  %v495 = vadd.f32 0.0, %v494
  %v496 = vpop.f32.mrf.mxu0
  %v497 = vpop.f32.mrf.mxu0
  %v498 = vadd.f32 0.0, %v497
  %v499 = vpop.f32.mrf.mxu0
  %500 = vmatprep.mubr.bf16.mxu0 0
  %501 = vmatmul.mubr.bf16.gmra.mxu0 %v452
  %v502 = vpop.f32.mrf.mxu0
  %v503 = vadd.f32 0.0, %v502
  %v504 = vpop.f32.mrf.mxu0
  %v505 = vpop.f32.mrf.mxu0
  %v506 = vadd.f32 0.0, %v505
  %v507 = vpop.f32.mrf.mxu0
  %508 = vmatprep.mubr.bf16.mxu0 0
  %509 = vmatmul.mubr.bf16.gmra.mxu0 %v455
  %v510 = vpop.f32.mrf.mxu0
  %v511 = vadd.f32 0.0, %v510
  %v512 = vpop.f32.mrf.mxu0
  %v513 = vpop.f32.mrf.mxu0
  %v514 = vadd.f32 0.0, %v513
  %v515 = vpop.f32.mrf.mxu0
  %516 = vmatprep.mubr.bf16.mxu0 0
  %517 = vmatmul.mubr.bf16.gmra.mxu0 %v458
  %v518 = vpop.f32.mrf.mxu0
  %v519 = vadd.f32 0.0, %v518
  %v520 = vpop.f32.mrf.mxu0
  %v521 = vpop.f32.mrf.mxu0
  %v522 = vadd.f32 0.0, %v521
  %v523 = vpop.f32.mrf.mxu0
  %524 = vdwg.mxu0
  %v525 = vadd.f32 %v398, %v495
  %v526 = vadd.f32 %v399, %v498
  %v527 = vadd.f32 %v400, %v503
  %v528 = vadd.f32 %v401, %v506
  %v529 = vadd.f32 %v402, %v511
  %v530 = vadd.f32 %v403, %v514
  %v531 = vadd.f32 %v404, %v519
  %v532 = vadd.f32 %v405, %v522
  %s533 = scalar_lea.vmem %s0, 128
  %v534 = vld [vmem:[%s533] sm:$0xf]
  %v535 = vld [vmem:[%s533 + $0x4] sm:$0xf]
  %v536 = vld [vmem:[%s533 + $0x8] sm:$0xf]
  %v537 = vld [vmem:[%s533 + $0xc] sm:$0xf]
  %v538 = vld [vmem:[%s533 + $0x10] sm:$0xf]
  %v539 = vld [vmem:[%s533 + $0x14] sm:$0xf]
  %v540 = vld [vmem:[%s533 + $0x18] sm:$0xf]
  %v541 = vld [vmem:[%s533 + $0x1c] sm:$0xf]
  %v550 = vunpack.c.l.b16 %v534
  %v551 = vunpack.c.l.b16 %v535
  %v552 = vunpack.c.l.b16 %v536
  %v553 = vunpack.c.l.b16 %v537
  %v554 = vunpack.c.l.b16 %v538
  %v555 = vunpack.c.l.b16 %v539
  %v556 = vunpack.c.l.b16 %v540
  %v557 = vunpack.c.l.b16 %v541
  %v558 = vpack.c.b16 %v551, %v550
  %v559 = vpack.c.b16 %v553, %v552
  %v560 = vpack.c.b16 %v555, %v554
  %v561 = vpack.c.b16 %v557, %v556
  %562 = vrot.lane.b32.xlu0 %v75, 122
  %v563 = vpop.permute.xlu0 %562
  %564 = vrot.lane.b32.xlu0 %v76, 122
  %v565 = vpop.permute.xlu0 %564
  %566 = vrot.lane.b32.xlu0 %v77, 122
  %v567 = vpop.permute.xlu0 %566
  %568 = vrot.lane.b32.xlu0 %v78, 122
  %v569 = vpop.permute.xlu0 %568
  %vm570 = vcmask 998400
  %v571 = vsel %vm570, %v563, %v565
  %v572 = vsel %vm570, %v567, %v569
  %v576 = vsel %vm92, %v558, 0
  %v579 = vsel %vm92, %v559, 0
  %v582 = vsel %vm92, %v560, 0
  %v585 = vsel %vm92, %v561, 0
  %587 = vmatprep.subr.bf16.mxu0 0
  %588 = vmatpush1.bf16.msra.mxu0 0
  %589 = vmatprep.subr.bf16.mxu0 0
  %590 = vmatpush1.bf16.msra.mxu0 0
  %591 = vmatprep.subr.bf16.mxu0 0
  %592 = vmatpush1.bf16.msra.mxu0 0
  %593 = vmatprep.subr.bf16.mxu0 0
  %594 = vmatpush1.bf16.msra.mxu0 0
  %595 = vmatprep.subr.bf16.mxu0 0
  %596 = vmatpush1.bf16.msra.mxu0 0
  %597 = vmatprep.subr.bf16.mxu0 0
  %598 = vmatpush1.bf16.msra.mxu0 0
  %599 = vmatprep.subr.bf16.mxu0 0
  %600 = vmatpush1.bf16.msra.mxu0 %v572
  %601 = vmatprep.subr.bf16.mxu0 0
  %602 = vmatpush1.bf16.msra.mxu0 %v571
  %603 = vmatprep.subr.bf16.mxu0 0
  %604 = vmatpush2.bf16.msra.mxu0 0
  %605 = vmatprep.subr.bf16.mxu0 0
  %606 = vmatpush2.bf16.msra.mxu0 0
  %607 = vmatprep.subr.bf16.mxu0 0
  %608 = vmatpush2.bf16.msra.mxu0 0
  %609 = vmatprep.subr.bf16.mxu0 0
  %610 = vmatpush2.bf16.msra.mxu0 0
  %611 = vmatprep.subr.bf16.mxu0 0
  %612 = vmatpush2.bf16.msra.mxu0 0
  %613 = vmatprep.subr.bf16.mxu0 0
  %614 = vmatpush2.bf16.msra.mxu0 0
  %615 = vmatprep.subr.bf16.mxu0 0
  %616 = vmatpush2.bf16.msra.mxu0 0
  %617 = vmatprep.subr.bf16.mxu0 0
  %618 = vmatpush2.bf16.msra.mxu0 0
  %619 = vmatprep.mubr.bf16.mxu0 0
  %620 = vmatmul.mubr.bf16.gmra.mxu0 %v576
  %v621 = vpop.f32.mrf.mxu0
  %v622 = vadd.f32 0.0, %v621
  %v623 = vpop.f32.mrf.mxu0
  %v624 = vpop.f32.mrf.mxu0
  %v625 = vadd.f32 0.0, %v624
  %v626 = vpop.f32.mrf.mxu0
  %627 = vmatprep.mubr.bf16.mxu0 0
  %628 = vmatmul.mubr.bf16.gmra.mxu0 %v579
  %v629 = vpop.f32.mrf.mxu0
  %v630 = vadd.f32 0.0, %v629
  %v631 = vpop.f32.mrf.mxu0
  %v632 = vpop.f32.mrf.mxu0
  %v633 = vadd.f32 0.0, %v632
  %v634 = vpop.f32.mrf.mxu0
  %635 = vmatprep.mubr.bf16.mxu0 0
  %636 = vmatmul.mubr.bf16.gmra.mxu0 %v582
  %v637 = vpop.f32.mrf.mxu0
  %v638 = vadd.f32 0.0, %v637
  %v639 = vpop.f32.mrf.mxu0
  %v640 = vpop.f32.mrf.mxu0
  %v641 = vadd.f32 0.0, %v640
  %v642 = vpop.f32.mrf.mxu0
  %643 = vmatprep.mubr.bf16.mxu0 0
  %644 = vmatmul.mubr.bf16.gmra.mxu0 %v585
  %v645 = vpop.f32.mrf.mxu0
  %v646 = vadd.f32 0.0, %v645
  %v647 = vpop.f32.mrf.mxu0
  %v648 = vpop.f32.mrf.mxu0
  %v649 = vadd.f32 0.0, %v648
  %v650 = vpop.f32.mrf.mxu0
  %651 = vdwg.mxu0
  %v652 = vadd.f32 %v525, %v622
  %v653 = vadd.f32 %v526, %v625
  %v654 = vadd.f32 %v527, %v630
  %v655 = vadd.f32 %v528, %v633
  %v656 = vadd.f32 %v529, %v638
  %v657 = vadd.f32 %v530, %v641
  %v658 = vadd.f32 %v531, %v646
  %v659 = vadd.f32 %v532, %v649
  %s660 = scalar_lea.vmem %s0, 160
  %v661 = vld [vmem:[%s660] sm:$0xf]
  %v662 = vld [vmem:[%s660 + $0x4] sm:$0xf]
  %v663 = vld [vmem:[%s660 + $0x8] sm:$0xf]
  %v664 = vld [vmem:[%s660 + $0xc] sm:$0xf]
  %v665 = vld [vmem:[%s660 + $0x10] sm:$0xf]
  %v666 = vld [vmem:[%s660 + $0x14] sm:$0xf]
  %v667 = vld [vmem:[%s660 + $0x18] sm:$0xf]
  %v668 = vld [vmem:[%s660 + $0x1c] sm:$0xf]
  %v677 = vunpack.c.l.b16 %v661
  %v678 = vunpack.c.l.b16 %v662
  %v679 = vunpack.c.l.b16 %v663
  %v680 = vunpack.c.l.b16 %v664
  %v681 = vunpack.c.l.b16 %v665
  %v682 = vunpack.c.l.b16 %v666
  %v683 = vunpack.c.l.b16 %v667
  %v684 = vunpack.c.l.b16 %v668
  %v685 = vpack.c.b16 %v678, %v677
  %v686 = vpack.c.b16 %v680, %v679
  %v687 = vpack.c.b16 %v682, %v681
  %v688 = vpack.c.b16 %v684, %v683
  %689 = vrot.lane.b32.xlu0 %v75, 121
  %v690 = vpop.permute.xlu0 %689
  %691 = vrot.lane.b32.xlu0 %v76, 121
  %v692 = vpop.permute.xlu0 %691
  %693 = vrot.lane.b32.xlu0 %v77, 121
  %v694 = vpop.permute.xlu0 %693
  %695 = vrot.lane.b32.xlu0 %v78, 121
  %v696 = vpop.permute.xlu0 %695
  %vm697 = vcmask 990208
  %v698 = vsel %vm697, %v690, %v692
  %v699 = vsel %vm697, %v694, %v696
  %v703 = vsel %vm92, %v685, 0
  %v706 = vsel %vm92, %v686, 0
  %v709 = vsel %vm92, %v687, 0
  %v712 = vsel %vm92, %v688, 0
  %714 = vmatprep.subr.bf16.mxu0 0
  %715 = vmatpush1.bf16.msra.mxu0 0
  %716 = vmatprep.subr.bf16.mxu0 0
  %717 = vmatpush1.bf16.msra.mxu0 0
  %718 = vmatprep.subr.bf16.mxu0 0
  %719 = vmatpush1.bf16.msra.mxu0 0
  %720 = vmatprep.subr.bf16.mxu0 0
  %721 = vmatpush1.bf16.msra.mxu0 0
  %722 = vmatprep.subr.bf16.mxu0 0
  %723 = vmatpush1.bf16.msra.mxu0 0
  %724 = vmatprep.subr.bf16.mxu0 0
  %725 = vmatpush1.bf16.msra.mxu0 0
  %726 = vmatprep.subr.bf16.mxu0 0
  %727 = vmatpush1.bf16.msra.mxu0 %v699
  %728 = vmatprep.subr.bf16.mxu0 0
  %729 = vmatpush1.bf16.msra.mxu0 %v698
  %730 = vmatprep.subr.bf16.mxu0 0
  %731 = vmatpush2.bf16.msra.mxu0 0
  %732 = vmatprep.subr.bf16.mxu0 0
  %733 = vmatpush2.bf16.msra.mxu0 0
  %734 = vmatprep.subr.bf16.mxu0 0
  %735 = vmatpush2.bf16.msra.mxu0 0
  %736 = vmatprep.subr.bf16.mxu0 0
  %737 = vmatpush2.bf16.msra.mxu0 0
  %738 = vmatprep.subr.bf16.mxu0 0
  %739 = vmatpush2.bf16.msra.mxu0 0
  %740 = vmatprep.subr.bf16.mxu0 0
  %741 = vmatpush2.bf16.msra.mxu0 0
  %742 = vmatprep.subr.bf16.mxu0 0
  %743 = vmatpush2.bf16.msra.mxu0 0
  %744 = vmatprep.subr.bf16.mxu0 0
  %745 = vmatpush2.bf16.msra.mxu0 0
  %746 = vmatprep.mubr.bf16.mxu0 0
  %747 = vmatmul.mubr.bf16.gmra.mxu0 %v703
  %v748 = vpop.f32.mrf.mxu0
  %v749 = vadd.f32 0.0, %v748
  %v750 = vpop.f32.mrf.mxu0
  %v751 = vpop.f32.mrf.mxu0
  %v752 = vadd.f32 0.0, %v751
  %v753 = vpop.f32.mrf.mxu0
  %754 = vmatprep.mubr.bf16.mxu0 0
  %755 = vmatmul.mubr.bf16.gmra.mxu0 %v706
  %v756 = vpop.f32.mrf.mxu0
  %v757 = vadd.f32 0.0, %v756
  %v758 = vpop.f32.mrf.mxu0
  %v759 = vpop.f32.mrf.mxu0
  %v760 = vadd.f32 0.0, %v759
  %v761 = vpop.f32.mrf.mxu0
  %762 = vmatprep.mubr.bf16.mxu0 0
  %763 = vmatmul.mubr.bf16.gmra.mxu0 %v709
  %v764 = vpop.f32.mrf.mxu0
  %v765 = vadd.f32 0.0, %v764
  %v766 = vpop.f32.mrf.mxu0
  %v767 = vpop.f32.mrf.mxu0
  %v768 = vadd.f32 0.0, %v767
  %v769 = vpop.f32.mrf.mxu0
  %770 = vmatprep.mubr.bf16.mxu0 0
  %771 = vmatmul.mubr.bf16.gmra.mxu0 %v712
  %v772 = vpop.f32.mrf.mxu0
  %v773 = vadd.f32 0.0, %v772
  %v774 = vpop.f32.mrf.mxu0
  %v775 = vpop.f32.mrf.mxu0
  %v776 = vadd.f32 0.0, %v775
  %v777 = vpop.f32.mrf.mxu0
  %778 = vdwg.mxu0
  %v779 = vadd.f32 %v652, %v749
  %v780 = vadd.f32 %v653, %v752
  %v781 = vadd.f32 %v654, %v757
  %v782 = vadd.f32 %v655, %v760
  %v783 = vadd.f32 %v656, %v765
  %v784 = vadd.f32 %v657, %v768
  %v785 = vadd.f32 %v658, %v773
  %v786 = vadd.f32 %v659, %v776
  %s787 = scalar_lea.vmem %s0, 192
  %v788 = vld [vmem:[%s787] sm:$0xf]
  %v789 = vld [vmem:[%s787 + $0x4] sm:$0xf]
  %v790 = vld [vmem:[%s787 + $0x8] sm:$0xf]
  %v791 = vld [vmem:[%s787 + $0xc] sm:$0xf]
  %v792 = vld [vmem:[%s787 + $0x10] sm:$0xf]
  %v793 = vld [vmem:[%s787 + $0x14] sm:$0xf]
  %v794 = vld [vmem:[%s787 + $0x18] sm:$0xf]
  %v795 = vld [vmem:[%s787 + $0x1c] sm:$0xf]
  %v804 = vunpack.c.l.b16 %v788
  %v805 = vunpack.c.l.b16 %v789
  %v806 = vunpack.c.l.b16 %v790
  %v807 = vunpack.c.l.b16 %v791
  %v808 = vunpack.c.l.b16 %v792
  %v809 = vunpack.c.l.b16 %v793
  %v810 = vunpack.c.l.b16 %v794
  %v811 = vunpack.c.l.b16 %v795
  %v812 = vpack.c.b16 %v805, %v804
  %v813 = vpack.c.b16 %v807, %v806
  %v814 = vpack.c.b16 %v809, %v808
  %v815 = vpack.c.b16 %v811, %v810
  %816 = vrot.lane.b32.xlu0 %v75, 120
  %v817 = vpop.permute.xlu0 %816
  %818 = vrot.lane.b32.xlu0 %v76, 120
  %v819 = vpop.permute.xlu0 %818
  %820 = vrot.lane.b32.xlu0 %v77, 120
  %v821 = vpop.permute.xlu0 %820
  %822 = vrot.lane.b32.xlu0 %v78, 120
  %v823 = vpop.permute.xlu0 %822
  %vm824 = vcmask 982016
  %v825 = vsel %vm824, %v817, %v819
  %v826 = vsel %vm824, %v821, %v823
  %v830 = vsel %vm92, %v812, 0
  %v833 = vsel %vm92, %v813, 0
  %v836 = vsel %vm92, %v814, 0
  %v839 = vsel %vm92, %v815, 0
  %841 = vmatprep.subr.bf16.mxu0 0
  %842 = vmatpush1.bf16.msra.mxu0 0
  %843 = vmatprep.subr.bf16.mxu0 0
  %844 = vmatpush1.bf16.msra.mxu0 0
  %845 = vmatprep.subr.bf16.mxu0 0
  %846 = vmatpush1.bf16.msra.mxu0 0
  %847 = vmatprep.subr.bf16.mxu0 0
  %848 = vmatpush1.bf16.msra.mxu0 0
  %849 = vmatprep.subr.bf16.mxu0 0
  %850 = vmatpush1.bf16.msra.mxu0 0
  %851 = vmatprep.subr.bf16.mxu0 0
  %852 = vmatpush1.bf16.msra.mxu0 0
  %853 = vmatprep.subr.bf16.mxu0 0
  %854 = vmatpush1.bf16.msra.mxu0 %v826
  %855 = vmatprep.subr.bf16.mxu0 0
  %856 = vmatpush1.bf16.msra.mxu0 %v825
  %857 = vmatprep.subr.bf16.mxu0 0
  %858 = vmatpush2.bf16.msra.mxu0 0
  %859 = vmatprep.subr.bf16.mxu0 0
  %860 = vmatpush2.bf16.msra.mxu0 0
  %861 = vmatprep.subr.bf16.mxu0 0
  %862 = vmatpush2.bf16.msra.mxu0 0
  %863 = vmatprep.subr.bf16.mxu0 0
  %864 = vmatpush2.bf16.msra.mxu0 0
  %865 = vmatprep.subr.bf16.mxu0 0
  %866 = vmatpush2.bf16.msra.mxu0 0
  %867 = vmatprep.subr.bf16.mxu0 0
  %868 = vmatpush2.bf16.msra.mxu0 0
  %869 = vmatprep.subr.bf16.mxu0 0
  %870 = vmatpush2.bf16.msra.mxu0 0
  %871 = vmatprep.subr.bf16.mxu0 0
  %872 = vmatpush2.bf16.msra.mxu0 0
  %873 = vmatprep.mubr.bf16.mxu0 0
  %874 = vmatmul.mubr.bf16.gmra.mxu0 %v830
  %v875 = vpop.f32.mrf.mxu0
  %v876 = vadd.f32 0.0, %v875
  %v877 = vpop.f32.mrf.mxu0
  %v878 = vpop.f32.mrf.mxu0
  %v879 = vadd.f32 0.0, %v878
  %v880 = vpop.f32.mrf.mxu0
  %881 = vmatprep.mubr.bf16.mxu0 0
  %882 = vmatmul.mubr.bf16.gmra.mxu0 %v833
  %v883 = vpop.f32.mrf.mxu0
  %v884 = vadd.f32 0.0, %v883
  %v885 = vpop.f32.mrf.mxu0
  %v886 = vpop.f32.mrf.mxu0
  %v887 = vadd.f32 0.0, %v886
  %v888 = vpop.f32.mrf.mxu0
  %889 = vmatprep.mubr.bf16.mxu0 0
  %890 = vmatmul.mubr.bf16.gmra.mxu0 %v836
  %v891 = vpop.f32.mrf.mxu0
  %v892 = vadd.f32 0.0, %v891
  %v893 = vpop.f32.mrf.mxu0
  %v894 = vpop.f32.mrf.mxu0
  %v895 = vadd.f32 0.0, %v894
  %v896 = vpop.f32.mrf.mxu0
  %897 = vmatprep.mubr.bf16.mxu0 0
  %898 = vmatmul.mubr.bf16.gmra.mxu0 %v839
  %v899 = vpop.f32.mrf.mxu0
  %v900 = vadd.f32 0.0, %v899
  %v901 = vpop.f32.mrf.mxu0
  %v902 = vpop.f32.mrf.mxu0
  %v903 = vadd.f32 0.0, %v902
  %v904 = vpop.f32.mrf.mxu0
  %905 = vdwg.mxu0
  %v906 = vadd.f32 %v779, %v876
  %v907 = vadd.f32 %v780, %v879
  %v908 = vadd.f32 %v781, %v884
  %v909 = vadd.f32 %v782, %v887
  %v910 = vadd.f32 %v783, %v892
  %v911 = vadd.f32 %v784, %v895
  %v912 = vadd.f32 %v785, %v900
  %v913 = vadd.f32 %v786, %v903
  %s914 = scalar_lea.vmem %s0, 224
  %v915 = vld [vmem:[%s914] sm:$0xf]
  %v916 = vld [vmem:[%s914 + $0x4] sm:$0xf]
  %v917 = vld [vmem:[%s914 + $0x8] sm:$0xf]
  %v918 = vld [vmem:[%s914 + $0xc] sm:$0xf]
  %v919 = vld [vmem:[%s914 + $0x10] sm:$0xf]
  %v920 = vld [vmem:[%s914 + $0x14] sm:$0xf]
  %v921 = vld [vmem:[%s914 + $0x18] sm:$0xf]
  %v922 = vld [vmem:[%s914 + $0x1c] sm:$0xf]
  %v931 = vunpack.c.l.b16 %v915
  %v932 = vunpack.c.l.b16 %v916
  %v933 = vunpack.c.l.b16 %v917
  %v934 = vunpack.c.l.b16 %v918
  %v935 = vunpack.c.l.b16 %v919
  %v936 = vunpack.c.l.b16 %v920
  %v937 = vunpack.c.l.b16 %v921
  %v938 = vunpack.c.l.b16 %v922
  %v939 = vpack.c.b16 %v932, %v931
  %v940 = vpack.c.b16 %v934, %v933
  %v941 = vpack.c.b16 %v936, %v935
  %v942 = vpack.c.b16 %v938, %v937
  %943 = vrot.lane.b32.xlu0 %v75, 119
  %v944 = vpop.permute.xlu0 %943
  %945 = vrot.lane.b32.xlu0 %v76, 119
  %v946 = vpop.permute.xlu0 %945
  %947 = vrot.lane.b32.xlu0 %v77, 119
  %v948 = vpop.permute.xlu0 %947
  %949 = vrot.lane.b32.xlu0 %v78, 119
  %v950 = vpop.permute.xlu0 %949
  %vm951 = vcmask 973824
  %v952 = vsel %vm951, %v944, %v946
  %v953 = vsel %vm951, %v948, %v950
  %v957 = vsel %vm92, %v939, 0
  %v960 = vsel %vm92, %v940, 0
  %v963 = vsel %vm92, %v941, 0
  %v966 = vsel %vm92, %v942, 0
  %968 = vmatprep.subr.bf16.mxu0 0
  %969 = vmatpush1.bf16.msra.mxu0 0
  %970 = vmatprep.subr.bf16.mxu0 0
  %971 = vmatpush1.bf16.msra.mxu0 0
  %972 = vmatprep.subr.bf16.mxu0 0
  %973 = vmatpush1.bf16.msra.mxu0 0
  %974 = vmatprep.subr.bf16.mxu0 0
  %975 = vmatpush1.bf16.msra.mxu0 0
  %976 = vmatprep.subr.bf16.mxu0 0
  %977 = vmatpush1.bf16.msra.mxu0 0
  %978 = vmatprep.subr.bf16.mxu0 0
  %979 = vmatpush1.bf16.msra.mxu0 0
  %980 = vmatprep.subr.bf16.mxu0 0
  %981 = vmatpush1.bf16.msra.mxu0 %v953
  %982 = vmatprep.subr.bf16.mxu0 0
  %983 = vmatpush1.bf16.msra.mxu0 %v952
  %984 = vmatprep.subr.bf16.mxu0 0
  %985 = vmatpush2.bf16.msra.mxu0 0
  %986 = vmatprep.subr.bf16.mxu0 0
  %987 = vmatpush2.bf16.msra.mxu0 0
  %988 = vmatprep.subr.bf16.mxu0 0
  %989 = vmatpush2.bf16.msra.mxu0 0
  %990 = vmatprep.subr.bf16.mxu0 0
  %991 = vmatpush2.bf16.msra.mxu0 0
  %992 = vmatprep.subr.bf16.mxu0 0
  %993 = vmatpush2.bf16.msra.mxu0 0
  %994 = vmatprep.subr.bf16.mxu0 0
  %995 = vmatpush2.bf16.msra.mxu0 0
  %996 = vmatprep.subr.bf16.mxu0 0
  %997 = vmatpush2.bf16.msra.mxu0 0
  %998 = vmatprep.subr.bf16.mxu0 0
  %999 = vmatpush2.bf16.msra.mxu0 0
  %1000 = vmatprep.mubr.bf16.mxu0 0
  %1001 = vmatmul.mubr.bf16.gmra.mxu0 %v957
  %v1002 = vpop.f32.mrf.mxu0
  %v1003 = vadd.f32 0.0, %v1002
  %v1004 = vpop.f32.mrf.mxu0
  %v1005 = vpop.f32.mrf.mxu0
  %v1006 = vadd.f32 0.0, %v1005
  %v1007 = vpop.f32.mrf.mxu0
  %1008 = vmatprep.mubr.bf16.mxu0 0
  %1009 = vmatmul.mubr.bf16.gmra.mxu0 %v960
  %v1010 = vpop.f32.mrf.mxu0
  %v1011 = vadd.f32 0.0, %v1010
  %v1012 = vpop.f32.mrf.mxu0
  %v1013 = vpop.f32.mrf.mxu0
  %v1014 = vadd.f32 0.0, %v1013
  %v1015 = vpop.f32.mrf.mxu0
  %1016 = vmatprep.mubr.bf16.mxu0 0
  %1017 = vmatmul.mubr.bf16.gmra.mxu0 %v963
  %v1018 = vpop.f32.mrf.mxu0
  %v1019 = vadd.f32 0.0, %v1018
  %v1020 = vpop.f32.mrf.mxu0
  %v1021 = vpop.f32.mrf.mxu0
  %v1022 = vadd.f32 0.0, %v1021
  %v1023 = vpop.f32.mrf.mxu0
  %1024 = vmatprep.mubr.bf16.mxu0 0
  %1025 = vmatmul.mubr.bf16.gmra.mxu0 %v966
  %v1026 = vpop.f32.mrf.mxu0
  %v1027 = vadd.f32 0.0, %v1026
  %v1028 = vpop.f32.mrf.mxu0
  %v1029 = vpop.f32.mrf.mxu0
  %v1030 = vadd.f32 0.0, %v1029
  %v1031 = vpop.f32.mrf.mxu0
  %1032 = vdwg.mxu0
  %v1033 = vadd.f32 %v906, %v1003
  %v1034 = vadd.f32 %v907, %v1006
  %v1035 = vadd.f32 %v908, %v1011
  %v1036 = vadd.f32 %v909, %v1014
  %v1037 = vadd.f32 %v910, %v1019
  %v1038 = vadd.f32 %v911, %v1022
  %v1039 = vadd.f32 %v912, %v1027
  %v1040 = vadd.f32 %v913, %v1030
  %s1041 = scalar_lea.vmem %s0, 256
  %v1042 = vld [vmem:[%s1041] sm:$0xf]
  %v1043 = vld [vmem:[%s1041 + $0x4] sm:$0xf]
  %v1044 = vld [vmem:[%s1041 + $0x8] sm:$0xf]
  %v1045 = vld [vmem:[%s1041 + $0xc] sm:$0xf]
  %v1046 = vld [vmem:[%s1041 + $0x10] sm:$0xf]
  %v1047 = vld [vmem:[%s1041 + $0x14] sm:$0xf]
  %v1048 = vld [vmem:[%s1041 + $0x18] sm:$0xf]
  %v1049 = vld [vmem:[%s1041 + $0x1c] sm:$0xf]
  %v1058 = vunpack.c.l.b16 %v1042
  %v1059 = vunpack.c.l.b16 %v1043
  %v1060 = vunpack.c.l.b16 %v1044
  %v1061 = vunpack.c.l.b16 %v1045
  %v1062 = vunpack.c.l.b16 %v1046
  %v1063 = vunpack.c.l.b16 %v1047
  %v1064 = vunpack.c.l.b16 %v1048
  %v1065 = vunpack.c.l.b16 %v1049
  %v1066 = vpack.c.b16 %v1059, %v1058
  %v1067 = vpack.c.b16 %v1061, %v1060
  %v1068 = vpack.c.b16 %v1063, %v1062
  %v1069 = vpack.c.b16 %v1065, %v1064
  %1070 = vrot.lane.b32.xlu0 %v75, 116
  %v1071 = vpop.permute.xlu0 %1070
  %1072 = vrot.lane.b32.xlu0 %v76, 116
  %v1073 = vpop.permute.xlu0 %1072
  %1074 = vrot.lane.b32.xlu0 %v77, 116
  %v1075 = vpop.permute.xlu0 %1074
  %1076 = vrot.lane.b32.xlu0 %v78, 116
  %v1077 = vpop.permute.xlu0 %1076
  %vm1078 = vcmask 949248
  %v1079 = vsel %vm1078, %v1071, %v1073
  %v1080 = vsel %vm1078, %v1075, %v1077
  %v1084 = vsel %vm92, %v1066, 0
  %v1087 = vsel %vm92, %v1067, 0
  %v1090 = vsel %vm92, %v1068, 0
  %v1093 = vsel %vm92, %v1069, 0
  %1095 = vmatprep.subr.bf16.mxu0 0
  %1096 = vmatpush1.bf16.msra.mxu0 0
  %1097 = vmatprep.subr.bf16.mxu0 0
  %1098 = vmatpush1.bf16.msra.mxu0 0
  %1099 = vmatprep.subr.bf16.mxu0 0
  %1100 = vmatpush1.bf16.msra.mxu0 0
  %1101 = vmatprep.subr.bf16.mxu0 0
  %1102 = vmatpush1.bf16.msra.mxu0 0
  %1103 = vmatprep.subr.bf16.mxu0 0
  %1104 = vmatpush1.bf16.msra.mxu0 0
  %1105 = vmatprep.subr.bf16.mxu0 0
  %1106 = vmatpush1.bf16.msra.mxu0 0
  %1107 = vmatprep.subr.bf16.mxu0 0
  %1108 = vmatpush1.bf16.msra.mxu0 %v1080
  %1109 = vmatprep.subr.bf16.mxu0 0
  %1110 = vmatpush1.bf16.msra.mxu0 %v1079
  %1111 = vmatprep.subr.bf16.mxu0 0
  %1112 = vmatpush2.bf16.msra.mxu0 0
  %1113 = vmatprep.subr.bf16.mxu0 0
  %1114 = vmatpush2.bf16.msra.mxu0 0
  %1115 = vmatprep.subr.bf16.mxu0 0
  %1116 = vmatpush2.bf16.msra.mxu0 0
  %1117 = vmatprep.subr.bf16.mxu0 0
  %1118 = vmatpush2.bf16.msra.mxu0 0
  %1119 = vmatprep.subr.bf16.mxu0 0
  %1120 = vmatpush2.bf16.msra.mxu0 0
  %1121 = vmatprep.subr.bf16.mxu0 0
  %1122 = vmatpush2.bf16.msra.mxu0 0
  %1123 = vmatprep.subr.bf16.mxu0 0
  %1124 = vmatpush2.bf16.msra.mxu0 0
  %1125 = vmatprep.subr.bf16.mxu0 0
  %1126 = vmatpush2.bf16.msra.mxu0 0
  %1127 = vmatprep.mubr.bf16.mxu0 0
  %1128 = vmatmul.mubr.bf16.gmra.mxu0 %v1084
  %v1129 = vpop.f32.mrf.mxu0
  %v1130 = vadd.f32 0.0, %v1129
  %v1131 = vpop.f32.mrf.mxu0
  %v1132 = vpop.f32.mrf.mxu0
  %v1133 = vadd.f32 0.0, %v1132
  %v1134 = vpop.f32.mrf.mxu0
  %1135 = vmatprep.mubr.bf16.mxu0 0
  %1136 = vmatmul.mubr.bf16.gmra.mxu0 %v1087
  %v1137 = vpop.f32.mrf.mxu0
  %v1138 = vadd.f32 0.0, %v1137
  %v1139 = vpop.f32.mrf.mxu0
  %v1140 = vpop.f32.mrf.mxu0
  %v1141 = vadd.f32 0.0, %v1140
  %v1142 = vpop.f32.mrf.mxu0
  %1143 = vmatprep.mubr.bf16.mxu0 0
  %1144 = vmatmul.mubr.bf16.gmra.mxu0 %v1090
  %v1145 = vpop.f32.mrf.mxu0
  %v1146 = vadd.f32 0.0, %v1145
  %v1147 = vpop.f32.mrf.mxu0
  %v1148 = vpop.f32.mrf.mxu0
  %v1149 = vadd.f32 0.0, %v1148
  %v1150 = vpop.f32.mrf.mxu0
  %1151 = vmatprep.mubr.bf16.mxu0 0
  %1152 = vmatmul.mubr.bf16.gmra.mxu0 %v1093
  %v1153 = vpop.f32.mrf.mxu0
  %v1154 = vadd.f32 0.0, %v1153
  %v1155 = vpop.f32.mrf.mxu0
  %v1156 = vpop.f32.mrf.mxu0
  %v1157 = vadd.f32 0.0, %v1156
  %v1158 = vpop.f32.mrf.mxu0
  %1159 = vdwg.mxu0
  %v1160 = vadd.f32 %v1033, %v1130
  %v1161 = vadd.f32 %v1034, %v1133
  %v1162 = vadd.f32 %v1035, %v1138
  %v1163 = vadd.f32 %v1036, %v1141
  %v1164 = vadd.f32 %v1037, %v1146
  %v1165 = vadd.f32 %v1038, %v1149
  %v1166 = vadd.f32 %v1039, %v1154
  %v1167 = vadd.f32 %v1040, %v1157
  %s1168 = scalar_lea.vmem %s0, 288
  %v1169 = vld [vmem:[%s1168] sm:$0xf]
  %v1170 = vld [vmem:[%s1168 + $0x4] sm:$0xf]
  %v1171 = vld [vmem:[%s1168 + $0x8] sm:$0xf]
  %v1172 = vld [vmem:[%s1168 + $0xc] sm:$0xf]
  %v1173 = vld [vmem:[%s1168 + $0x10] sm:$0xf]
  %v1174 = vld [vmem:[%s1168 + $0x14] sm:$0xf]
  %v1175 = vld [vmem:[%s1168 + $0x18] sm:$0xf]
  %v1176 = vld [vmem:[%s1168 + $0x1c] sm:$0xf]
  %v1185 = vunpack.c.l.b16 %v1169
  %v1186 = vunpack.c.l.b16 %v1170
  %v1187 = vunpack.c.l.b16 %v1171
  %v1188 = vunpack.c.l.b16 %v1172
  %v1189 = vunpack.c.l.b16 %v1173
  %v1190 = vunpack.c.l.b16 %v1174
  %v1191 = vunpack.c.l.b16 %v1175
  %v1192 = vunpack.c.l.b16 %v1176
  %v1193 = vpack.c.b16 %v1186, %v1185
  %v1194 = vpack.c.b16 %v1188, %v1187
  %v1195 = vpack.c.b16 %v1190, %v1189
  %v1196 = vpack.c.b16 %v1192, %v1191
  %1197 = vrot.lane.b32.xlu0 %v75, 115
  %v1198 = vpop.permute.xlu0 %1197
  %1199 = vrot.lane.b32.xlu0 %v76, 115
  %v1200 = vpop.permute.xlu0 %1199
  %1201 = vrot.lane.b32.xlu0 %v77, 115
  %v1202 = vpop.permute.xlu0 %1201
  %1203 = vrot.lane.b32.xlu0 %v78, 115
  %v1204 = vpop.permute.xlu0 %1203
  %vm1205 = vcmask 941056
  %v1206 = vsel %vm1205, %v1198, %v1200
  %v1207 = vsel %vm1205, %v1202, %v1204
  %v1211 = vsel %vm92, %v1193, 0
  %v1214 = vsel %vm92, %v1194, 0
  %v1217 = vsel %vm92, %v1195, 0
  %v1220 = vsel %vm92, %v1196, 0
  %1222 = vmatprep.subr.bf16.mxu0 0
  %1223 = vmatpush1.bf16.msra.mxu0 0
  %1224 = vmatprep.subr.bf16.mxu0 0
  %1225 = vmatpush1.bf16.msra.mxu0 0
  %1226 = vmatprep.subr.bf16.mxu0 0
  %1227 = vmatpush1.bf16.msra.mxu0 0
  %1228 = vmatprep.subr.bf16.mxu0 0
  %1229 = vmatpush1.bf16.msra.mxu0 0
  %1230 = vmatprep.subr.bf16.mxu0 0
  %1231 = vmatpush1.bf16.msra.mxu0 0
  %1232 = vmatprep.subr.bf16.mxu0 0
  %1233 = vmatpush1.bf16.msra.mxu0 0
  %1234 = vmatprep.subr.bf16.mxu0 0
  %1235 = vmatpush1.bf16.msra.mxu0 %v1207
  %1236 = vmatprep.subr.bf16.mxu0 0
  %1237 = vmatpush1.bf16.msra.mxu0 %v1206
  %1238 = vmatprep.subr.bf16.mxu0 0
  %1239 = vmatpush2.bf16.msra.mxu0 0
  %1240 = vmatprep.subr.bf16.mxu0 0
  %1241 = vmatpush2.bf16.msra.mxu0 0
  %1242 = vmatprep.subr.bf16.mxu0 0
  %1243 = vmatpush2.bf16.msra.mxu0 0
  %1244 = vmatprep.subr.bf16.mxu0 0
  %1245 = vmatpush2.bf16.msra.mxu0 0
  %1246 = vmatprep.subr.bf16.mxu0 0
  %1247 = vmatpush2.bf16.msra.mxu0 0
  %1248 = vmatprep.subr.bf16.mxu0 0
  %1249 = vmatpush2.bf16.msra.mxu0 0
  %1250 = vmatprep.subr.bf16.mxu0 0
  %1251 = vmatpush2.bf16.msra.mxu0 0
  %1252 = vmatprep.subr.bf16.mxu0 0
  %1253 = vmatpush2.bf16.msra.mxu0 0
  %1254 = vmatprep.mubr.bf16.mxu0 0
  %1255 = vmatmul.mubr.bf16.gmra.mxu0 %v1211
  %v1256 = vpop.f32.mrf.mxu0
  %v1257 = vadd.f32 0.0, %v1256
  %v1258 = vpop.f32.mrf.mxu0
  %v1259 = vpop.f32.mrf.mxu0
  %v1260 = vadd.f32 0.0, %v1259
  %v1261 = vpop.f32.mrf.mxu0
  %1262 = vmatprep.mubr.bf16.mxu0 0
  %1263 = vmatmul.mubr.bf16.gmra.mxu0 %v1214
  %v1264 = vpop.f32.mrf.mxu0
  %v1265 = vadd.f32 0.0, %v1264
  %v1266 = vpop.f32.mrf.mxu0
  %v1267 = vpop.f32.mrf.mxu0
  %v1268 = vadd.f32 0.0, %v1267
  %v1269 = vpop.f32.mrf.mxu0
  %1270 = vmatprep.mubr.bf16.mxu0 0
  %1271 = vmatmul.mubr.bf16.gmra.mxu0 %v1217
  %v1272 = vpop.f32.mrf.mxu0
  %v1273 = vadd.f32 0.0, %v1272
  %v1274 = vpop.f32.mrf.mxu0
  %v1275 = vpop.f32.mrf.mxu0
  %v1276 = vadd.f32 0.0, %v1275
  %v1277 = vpop.f32.mrf.mxu0
  %1278 = vmatprep.mubr.bf16.mxu0 0
  %1279 = vmatmul.mubr.bf16.gmra.mxu0 %v1220
  %v1280 = vpop.f32.mrf.mxu0
  %v1281 = vadd.f32 0.0, %v1280
  %v1282 = vpop.f32.mrf.mxu0
  %v1283 = vpop.f32.mrf.mxu0
  %v1284 = vadd.f32 0.0, %v1283
  %v1285 = vpop.f32.mrf.mxu0
  %1286 = vdwg.mxu0
  %v1287 = vadd.f32 %v1160, %v1257
  %v1288 = vadd.f32 %v1161, %v1260
  %v1289 = vadd.f32 %v1162, %v1265
  %v1290 = vadd.f32 %v1163, %v1268
  %v1291 = vadd.f32 %v1164, %v1273
  %v1292 = vadd.f32 %v1165, %v1276
  %v1293 = vadd.f32 %v1166, %v1281
  %v1294 = vadd.f32 %v1167, %v1284
  %s1295 = scalar_lea.vmem %s0, 320
  %v1296 = vld [vmem:[%s1295] sm:$0xf]
  %v1297 = vld [vmem:[%s1295 + $0x4] sm:$0xf]
  %v1298 = vld [vmem:[%s1295 + $0x8] sm:$0xf]
  %v1299 = vld [vmem:[%s1295 + $0xc] sm:$0xf]
  %v1300 = vld [vmem:[%s1295 + $0x10] sm:$0xf]
  %v1301 = vld [vmem:[%s1295 + $0x14] sm:$0xf]
  %v1302 = vld [vmem:[%s1295 + $0x18] sm:$0xf]
  %v1303 = vld [vmem:[%s1295 + $0x1c] sm:$0xf]
  %v1312 = vunpack.c.l.b16 %v1296
  %v1313 = vunpack.c.l.b16 %v1297
  %v1314 = vunpack.c.l.b16 %v1298
  %v1315 = vunpack.c.l.b16 %v1299
  %v1316 = vunpack.c.l.b16 %v1300
  %v1317 = vunpack.c.l.b16 %v1301
  %v1318 = vunpack.c.l.b16 %v1302
  %v1319 = vunpack.c.l.b16 %v1303
  %v1320 = vpack.c.b16 %v1313, %v1312
  %v1321 = vpack.c.b16 %v1315, %v1314
  %v1322 = vpack.c.b16 %v1317, %v1316
  %v1323 = vpack.c.b16 %v1319, %v1318
  %1324 = vrot.lane.b32.xlu0 %v75, 114
  %v1325 = vpop.permute.xlu0 %1324
  %1326 = vrot.lane.b32.xlu0 %v76, 114
  %v1327 = vpop.permute.xlu0 %1326
  %1328 = vrot.lane.b32.xlu0 %v77, 114
  %v1329 = vpop.permute.xlu0 %1328
  %1330 = vrot.lane.b32.xlu0 %v78, 114
  %v1331 = vpop.permute.xlu0 %1330
  %vm1332 = vcmask 932864
  %v1333 = vsel %vm1332, %v1325, %v1327
  %v1334 = vsel %vm1332, %v1329, %v1331
  %v1338 = vsel %vm92, %v1320, 0
  %v1341 = vsel %vm92, %v1321, 0
  %v1344 = vsel %vm92, %v1322, 0
  %v1347 = vsel %vm92, %v1323, 0
  %1349 = vmatprep.subr.bf16.mxu0 0
  %1350 = vmatpush1.bf16.msra.mxu0 0
  %1351 = vmatprep.subr.bf16.mxu0 0
  %1352 = vmatpush1.bf16.msra.mxu0 0
  %1353 = vmatprep.subr.bf16.mxu0 0
  %1354 = vmatpush1.bf16.msra.mxu0 0
  %1355 = vmatprep.subr.bf16.mxu0 0
  %1356 = vmatpush1.bf16.msra.mxu0 0
  %1357 = vmatprep.subr.bf16.mxu0 0
  %1358 = vmatpush1.bf16.msra.mxu0 0
  %1359 = vmatprep.subr.bf16.mxu0 0
  %1360 = vmatpush1.bf16.msra.mxu0 0
  %1361 = vmatprep.subr.bf16.mxu0 0
  %1362 = vmatpush1.bf16.msra.mxu0 %v1334
  %1363 = vmatprep.subr.bf16.mxu0 0
  %1364 = vmatpush1.bf16.msra.mxu0 %v1333
  %1365 = vmatprep.subr.bf16.mxu0 0
  %1366 = vmatpush2.bf16.msra.mxu0 0
  %1367 = vmatprep.subr.bf16.mxu0 0
  %1368 = vmatpush2.bf16.msra.mxu0 0
  %1369 = vmatprep.subr.bf16.mxu0 0
  %1370 = vmatpush2.bf16.msra.mxu0 0
  %1371 = vmatprep.subr.bf16.mxu0 0
  %1372 = vmatpush2.bf16.msra.mxu0 0
  %1373 = vmatprep.subr.bf16.mxu0 0
  %1374 = vmatpush2.bf16.msra.mxu0 0
  %1375 = vmatprep.subr.bf16.mxu0 0
  %1376 = vmatpush2.bf16.msra.mxu0 0
  %1377 = vmatprep.subr.bf16.mxu0 0
  %1378 = vmatpush2.bf16.msra.mxu0 0
  %1379 = vmatprep.subr.bf16.mxu0 0
  %1380 = vmatpush2.bf16.msra.mxu0 0
  %1381 = vmatprep.mubr.bf16.mxu0 0
  %1382 = vmatmul.mubr.bf16.gmra.mxu0 %v1338
  %v1383 = vpop.f32.mrf.mxu0
  %v1384 = vadd.f32 0.0, %v1383
  %v1385 = vpop.f32.mrf.mxu0
  %v1386 = vpop.f32.mrf.mxu0
  %v1387 = vadd.f32 0.0, %v1386
  %v1388 = vpop.f32.mrf.mxu0
  %1389 = vmatprep.mubr.bf16.mxu0 0
  %1390 = vmatmul.mubr.bf16.gmra.mxu0 %v1341
  %v1391 = vpop.f32.mrf.mxu0
  %v1392 = vadd.f32 0.0, %v1391
  %v1393 = vpop.f32.mrf.mxu0
  %v1394 = vpop.f32.mrf.mxu0
  %v1395 = vadd.f32 0.0, %v1394
  %v1396 = vpop.f32.mrf.mxu0
  %1397 = vmatprep.mubr.bf16.mxu0 0
  %1398 = vmatmul.mubr.bf16.gmra.mxu0 %v1344
  %v1399 = vpop.f32.mrf.mxu0
  %v1400 = vadd.f32 0.0, %v1399
  %v1401 = vpop.f32.mrf.mxu0
  %v1402 = vpop.f32.mrf.mxu0
  %v1403 = vadd.f32 0.0, %v1402
  %v1404 = vpop.f32.mrf.mxu0
  %1405 = vmatprep.mubr.bf16.mxu0 0
  %1406 = vmatmul.mubr.bf16.gmra.mxu0 %v1347
  %v1407 = vpop.f32.mrf.mxu0
  %v1408 = vadd.f32 0.0, %v1407
  %v1409 = vpop.f32.mrf.mxu0
  %v1410 = vpop.f32.mrf.mxu0
  %v1411 = vadd.f32 0.0, %v1410
  %v1412 = vpop.f32.mrf.mxu0
  %1413 = vdwg.mxu0
  %v1414 = vadd.f32 %v1287, %v1384
  %v1415 = vadd.f32 %v1288, %v1387
  %v1416 = vadd.f32 %v1289, %v1392
  %v1417 = vadd.f32 %v1290, %v1395
  %v1418 = vadd.f32 %v1291, %v1400
  %v1419 = vadd.f32 %v1292, %v1403
  %v1420 = vadd.f32 %v1293, %v1408
  %v1421 = vadd.f32 %v1294, %v1411
  %s1422 = scalar_lea.vmem %s0, 352
  %v1423 = vld [vmem:[%s1422] sm:$0xf]
  %v1424 = vld [vmem:[%s1422 + $0x4] sm:$0xf]
  %v1425 = vld [vmem:[%s1422 + $0x8] sm:$0xf]
  %v1426 = vld [vmem:[%s1422 + $0xc] sm:$0xf]
  %v1427 = vld [vmem:[%s1422 + $0x10] sm:$0xf]
  %v1428 = vld [vmem:[%s1422 + $0x14] sm:$0xf]
  %v1429 = vld [vmem:[%s1422 + $0x18] sm:$0xf]
  %v1430 = vld [vmem:[%s1422 + $0x1c] sm:$0xf]
  %v1439 = vunpack.c.l.b16 %v1423
  %v1440 = vunpack.c.l.b16 %v1424
  %v1441 = vunpack.c.l.b16 %v1425
  %v1442 = vunpack.c.l.b16 %v1426
  %v1443 = vunpack.c.l.b16 %v1427
  %v1444 = vunpack.c.l.b16 %v1428
  %v1445 = vunpack.c.l.b16 %v1429
  %v1446 = vunpack.c.l.b16 %v1430
  %v1447 = vpack.c.b16 %v1440, %v1439
  %v1448 = vpack.c.b16 %v1442, %v1441
  %v1449 = vpack.c.b16 %v1444, %v1443
  %v1450 = vpack.c.b16 %v1446, %v1445
  %1451 = vrot.lane.b32.xlu0 %v75, 113
  %v1452 = vpop.permute.xlu0 %1451
  %1453 = vrot.lane.b32.xlu0 %v76, 113
  %v1454 = vpop.permute.xlu0 %1453
  %1455 = vrot.lane.b32.xlu0 %v77, 113
  %v1456 = vpop.permute.xlu0 %1455
  %1457 = vrot.lane.b32.xlu0 %v78, 113
  %v1458 = vpop.permute.xlu0 %1457
  %vm1459 = vcmask 924672
  %v1460 = vsel %vm1459, %v1452, %v1454
  %v1461 = vsel %vm1459, %v1456, %v1458
  %v1465 = vsel %vm92, %v1447, 0
  %v1468 = vsel %vm92, %v1448, 0
  %v1471 = vsel %vm92, %v1449, 0
  %v1474 = vsel %vm92, %v1450, 0
  %1476 = vmatprep.subr.bf16.mxu0 0
  %1477 = vmatpush1.bf16.msra.mxu0 0
  %1478 = vmatprep.subr.bf16.mxu0 0
  %1479 = vmatpush1.bf16.msra.mxu0 0
  %1480 = vmatprep.subr.bf16.mxu0 0
  %1481 = vmatpush1.bf16.msra.mxu0 0
  %1482 = vmatprep.subr.bf16.mxu0 0
  %1483 = vmatpush1.bf16.msra.mxu0 0
  %1484 = vmatprep.subr.bf16.mxu0 0
  %1485 = vmatpush1.bf16.msra.mxu0 0
  %1486 = vmatprep.subr.bf16.mxu0 0
  %1487 = vmatpush1.bf16.msra.mxu0 0
  %1488 = vmatprep.subr.bf16.mxu0 0
  %1489 = vmatpush1.bf16.msra.mxu0 %v1461
  %1490 = vmatprep.subr.bf16.mxu0 0
  %1491 = vmatpush1.bf16.msra.mxu0 %v1460
  %1492 = vmatprep.subr.bf16.mxu0 0
  %1493 = vmatpush2.bf16.msra.mxu0 0
  %1494 = vmatprep.subr.bf16.mxu0 0
  %1495 = vmatpush2.bf16.msra.mxu0 0
  %1496 = vmatprep.subr.bf16.mxu0 0
  %1497 = vmatpush2.bf16.msra.mxu0 0
  %1498 = vmatprep.subr.bf16.mxu0 0
  %1499 = vmatpush2.bf16.msra.mxu0 0
  %1500 = vmatprep.subr.bf16.mxu0 0
  %1501 = vmatpush2.bf16.msra.mxu0 0
  %1502 = vmatprep.subr.bf16.mxu0 0
  %1503 = vmatpush2.bf16.msra.mxu0 0
  %1504 = vmatprep.subr.bf16.mxu0 0
  %1505 = vmatpush2.bf16.msra.mxu0 0
  %1506 = vmatprep.subr.bf16.mxu0 0
  %1507 = vmatpush2.bf16.msra.mxu0 0
  %1508 = vmatprep.mubr.bf16.mxu0 0
  %1509 = vmatmul.mubr.bf16.gmra.mxu0 %v1465
  %v1510 = vpop.f32.mrf.mxu0
  %v1511 = vadd.f32 0.0, %v1510
  %v1512 = vpop.f32.mrf.mxu0
  %v1513 = vpop.f32.mrf.mxu0
  %v1514 = vadd.f32 0.0, %v1513
  %v1515 = vpop.f32.mrf.mxu0
  %1516 = vmatprep.mubr.bf16.mxu0 0
  %1517 = vmatmul.mubr.bf16.gmra.mxu0 %v1468
  %v1518 = vpop.f32.mrf.mxu0
  %v1519 = vadd.f32 0.0, %v1518
  %v1520 = vpop.f32.mrf.mxu0
  %v1521 = vpop.f32.mrf.mxu0
  %v1522 = vadd.f32 0.0, %v1521
  %v1523 = vpop.f32.mrf.mxu0
  %1524 = vmatprep.mubr.bf16.mxu0 0
  %1525 = vmatmul.mubr.bf16.gmra.mxu0 %v1471
  %v1526 = vpop.f32.mrf.mxu0
  %v1527 = vadd.f32 0.0, %v1526
  %v1528 = vpop.f32.mrf.mxu0
  %v1529 = vpop.f32.mrf.mxu0
  %v1530 = vadd.f32 0.0, %v1529
  %v1531 = vpop.f32.mrf.mxu0
  %1532 = vmatprep.mubr.bf16.mxu0 0
  %1533 = vmatmul.mubr.bf16.gmra.mxu0 %v1474
  %v1534 = vpop.f32.mrf.mxu0
  %v1535 = vadd.f32 0.0, %v1534
  %v1536 = vpop.f32.mrf.mxu0
  %v1537 = vpop.f32.mrf.mxu0
  %v1538 = vadd.f32 0.0, %v1537
  %v1539 = vpop.f32.mrf.mxu0
  %1540 = vdwg.mxu0
  %v1541 = vadd.f32 %v1414, %v1511
  %v1542 = vadd.f32 %v1415, %v1514
  %v1543 = vadd.f32 %v1416, %v1519
  %v1544 = vadd.f32 %v1417, %v1522
  %v1545 = vadd.f32 %v1418, %v1527
  %v1546 = vadd.f32 %v1419, %v1530
  %v1547 = vadd.f32 %v1420, %v1535
  %v1548 = vadd.f32 %v1421, %v1538
  %s1549 = scalar_lea.vmem %s0, 384
  %v1550 = vld [vmem:[%s1549] sm:$0xf]
  %v1551 = vld [vmem:[%s1549 + $0x4] sm:$0xf]
  %v1552 = vld [vmem:[%s1549 + $0x8] sm:$0xf]
  %v1553 = vld [vmem:[%s1549 + $0xc] sm:$0xf]
  %v1554 = vld [vmem:[%s1549 + $0x10] sm:$0xf]
  %v1555 = vld [vmem:[%s1549 + $0x14] sm:$0xf]
  %v1556 = vld [vmem:[%s1549 + $0x18] sm:$0xf]
  %v1557 = vld [vmem:[%s1549 + $0x1c] sm:$0xf]
  %v1566 = vunpack.c.l.b16 %v1550
  %v1567 = vunpack.c.l.b16 %v1551
  %v1568 = vunpack.c.l.b16 %v1552
  %v1569 = vunpack.c.l.b16 %v1553
  %v1570 = vunpack.c.l.b16 %v1554
  %v1571 = vunpack.c.l.b16 %v1555
  %v1572 = vunpack.c.l.b16 %v1556
  %v1573 = vunpack.c.l.b16 %v1557
  %v1574 = vpack.c.b16 %v1567, %v1566
  %v1575 = vpack.c.b16 %v1569, %v1568
  %v1576 = vpack.c.b16 %v1571, %v1570
  %v1577 = vpack.c.b16 %v1573, %v1572
  %1578 = vrot.lane.b32.xlu0 %v75, 110
  %v1579 = vpop.permute.xlu0 %1578
  %1580 = vrot.lane.b32.xlu0 %v76, 110
  %v1581 = vpop.permute.xlu0 %1580
  %1582 = vrot.lane.b32.xlu0 %v77, 110
  %v1583 = vpop.permute.xlu0 %1582
  %1584 = vrot.lane.b32.xlu0 %v78, 110
  %v1585 = vpop.permute.xlu0 %1584
  %vm1586 = vcmask 900096
  %v1587 = vsel %vm1586, %v1579, %v1581
  %v1588 = vsel %vm1586, %v1583, %v1585
  %v1592 = vsel %vm92, %v1574, 0
  %v1595 = vsel %vm92, %v1575, 0
  %v1598 = vsel %vm92, %v1576, 0
  %v1601 = vsel %vm92, %v1577, 0
  %1603 = vmatprep.subr.bf16.mxu0 0
  %1604 = vmatpush1.bf16.msra.mxu0 0
  %1605 = vmatprep.subr.bf16.mxu0 0
  %1606 = vmatpush1.bf16.msra.mxu0 0
  %1607 = vmatprep.subr.bf16.mxu0 0
  %1608 = vmatpush1.bf16.msra.mxu0 0
  %1609 = vmatprep.subr.bf16.mxu0 0
  %1610 = vmatpush1.bf16.msra.mxu0 0
  %1611 = vmatprep.subr.bf16.mxu0 0
  %1612 = vmatpush1.bf16.msra.mxu0 0
  %1613 = vmatprep.subr.bf16.mxu0 0
  %1614 = vmatpush1.bf16.msra.mxu0 0
  %1615 = vmatprep.subr.bf16.mxu0 0
  %1616 = vmatpush1.bf16.msra.mxu0 %v1588
  %1617 = vmatprep.subr.bf16.mxu0 0
  %1618 = vmatpush1.bf16.msra.mxu0 %v1587
  %1619 = vmatprep.subr.bf16.mxu0 0
  %1620 = vmatpush2.bf16.msra.mxu0 0
  %1621 = vmatprep.subr.bf16.mxu0 0
  %1622 = vmatpush2.bf16.msra.mxu0 0
  %1623 = vmatprep.subr.bf16.mxu0 0
  %1624 = vmatpush2.bf16.msra.mxu0 0
  %1625 = vmatprep.subr.bf16.mxu0 0
  %1626 = vmatpush2.bf16.msra.mxu0 0
  %1627 = vmatprep.subr.bf16.mxu0 0
  %1628 = vmatpush2.bf16.msra.mxu0 0
  %1629 = vmatprep.subr.bf16.mxu0 0
  %1630 = vmatpush2.bf16.msra.mxu0 0
  %1631 = vmatprep.subr.bf16.mxu0 0
  %1632 = vmatpush2.bf16.msra.mxu0 0
  %1633 = vmatprep.subr.bf16.mxu0 0
  %1634 = vmatpush2.bf16.msra.mxu0 0
  %1635 = vmatprep.mubr.bf16.mxu0 0
  %1636 = vmatmul.mubr.bf16.gmra.mxu0 %v1592
  %v1637 = vpop.f32.mrf.mxu0
  %v1638 = vadd.f32 0.0, %v1637
  %v1639 = vpop.f32.mrf.mxu0
  %v1640 = vpop.f32.mrf.mxu0
  %v1641 = vadd.f32 0.0, %v1640
  %v1642 = vpop.f32.mrf.mxu0
  %1643 = vmatprep.mubr.bf16.mxu0 0
  %1644 = vmatmul.mubr.bf16.gmra.mxu0 %v1595
  %v1645 = vpop.f32.mrf.mxu0
  %v1646 = vadd.f32 0.0, %v1645
  %v1647 = vpop.f32.mrf.mxu0
  %v1648 = vpop.f32.mrf.mxu0
  %v1649 = vadd.f32 0.0, %v1648
  %v1650 = vpop.f32.mrf.mxu0
  %1651 = vmatprep.mubr.bf16.mxu0 0
  %1652 = vmatmul.mubr.bf16.gmra.mxu0 %v1598
  %v1653 = vpop.f32.mrf.mxu0
  %v1654 = vadd.f32 0.0, %v1653
  %v1655 = vpop.f32.mrf.mxu0
  %v1656 = vpop.f32.mrf.mxu0
  %v1657 = vadd.f32 0.0, %v1656
  %v1658 = vpop.f32.mrf.mxu0
  %1659 = vmatprep.mubr.bf16.mxu0 0
  %1660 = vmatmul.mubr.bf16.gmra.mxu0 %v1601
  %v1661 = vpop.f32.mrf.mxu0
  %v1662 = vadd.f32 0.0, %v1661
  %v1663 = vpop.f32.mrf.mxu0
  %v1664 = vpop.f32.mrf.mxu0
  %v1665 = vadd.f32 0.0, %v1664
  %v1666 = vpop.f32.mrf.mxu0
  %1667 = vdwg.mxu0
  %v1668 = vadd.f32 %v1541, %v1638
  %v1669 = vadd.f32 %v1542, %v1641
  %v1670 = vadd.f32 %v1543, %v1646
  %v1671 = vadd.f32 %v1544, %v1649
  %v1672 = vadd.f32 %v1545, %v1654
  %v1673 = vadd.f32 %v1546, %v1657
  %v1674 = vadd.f32 %v1547, %v1662
  %v1675 = vadd.f32 %v1548, %v1665
  %s1676 = scalar_lea.vmem %s0, 416
  %v1677 = vld [vmem:[%s1676] sm:$0xf]
  %v1678 = vld [vmem:[%s1676 + $0x4] sm:$0xf]
  %v1679 = vld [vmem:[%s1676 + $0x8] sm:$0xf]
  %v1680 = vld [vmem:[%s1676 + $0xc] sm:$0xf]
  %v1681 = vld [vmem:[%s1676 + $0x10] sm:$0xf]
  %v1682 = vld [vmem:[%s1676 + $0x14] sm:$0xf]
  %v1683 = vld [vmem:[%s1676 + $0x18] sm:$0xf]
  %v1684 = vld [vmem:[%s1676 + $0x1c] sm:$0xf]
  %v1693 = vunpack.c.l.b16 %v1677
  %v1694 = vunpack.c.l.b16 %v1678
  %v1695 = vunpack.c.l.b16 %v1679
  %v1696 = vunpack.c.l.b16 %v1680
  %v1697 = vunpack.c.l.b16 %v1681
  %v1698 = vunpack.c.l.b16 %v1682
  %v1699 = vunpack.c.l.b16 %v1683
  %v1700 = vunpack.c.l.b16 %v1684
  %v1701 = vpack.c.b16 %v1694, %v1693
  %v1702 = vpack.c.b16 %v1696, %v1695
  %v1703 = vpack.c.b16 %v1698, %v1697
  %v1704 = vpack.c.b16 %v1700, %v1699
  %1705 = vrot.lane.b32.xlu0 %v75, 109
  %v1706 = vpop.permute.xlu0 %1705
  %1707 = vrot.lane.b32.xlu0 %v76, 109
  %v1708 = vpop.permute.xlu0 %1707
  %1709 = vrot.lane.b32.xlu0 %v77, 109
  %v1710 = vpop.permute.xlu0 %1709
  %1711 = vrot.lane.b32.xlu0 %v78, 109
  %v1712 = vpop.permute.xlu0 %1711
  %vm1713 = vcmask 891904
  %v1714 = vsel %vm1713, %v1706, %v1708
  %v1715 = vsel %vm1713, %v1710, %v1712
  %v1719 = vsel %vm92, %v1701, 0
  %v1722 = vsel %vm92, %v1702, 0
  %v1725 = vsel %vm92, %v1703, 0
  %v1728 = vsel %vm92, %v1704, 0
  %1730 = vmatprep.subr.bf16.mxu0 0
  %1731 = vmatpush1.bf16.msra.mxu0 0
  %1732 = vmatprep.subr.bf16.mxu0 0
  %1733 = vmatpush1.bf16.msra.mxu0 0
  %1734 = vmatprep.subr.bf16.mxu0 0
  %1735 = vmatpush1.bf16.msra.mxu0 0
  %1736 = vmatprep.subr.bf16.mxu0 0
  %1737 = vmatpush1.bf16.msra.mxu0 0
  %1738 = vmatprep.subr.bf16.mxu0 0
  %1739 = vmatpush1.bf16.msra.mxu0 0
  %1740 = vmatprep.subr.bf16.mxu0 0
  %1741 = vmatpush1.bf16.msra.mxu0 0
  %1742 = vmatprep.subr.bf16.mxu0 0
  %1743 = vmatpush1.bf16.msra.mxu0 %v1715
  %1744 = vmatprep.subr.bf16.mxu0 0
  %1745 = vmatpush1.bf16.msra.mxu0 %v1714
  %1746 = vmatprep.subr.bf16.mxu0 0
  %1747 = vmatpush2.bf16.msra.mxu0 0
  %1748 = vmatprep.subr.bf16.mxu0 0
  %1749 = vmatpush2.bf16.msra.mxu0 0
  %1750 = vmatprep.subr.bf16.mxu0 0
  %1751 = vmatpush2.bf16.msra.mxu0 0
  %1752 = vmatprep.subr.bf16.mxu0 0
  %1753 = vmatpush2.bf16.msra.mxu0 0
  %1754 = vmatprep.subr.bf16.mxu0 0
  %1755 = vmatpush2.bf16.msra.mxu0 0
  %1756 = vmatprep.subr.bf16.mxu0 0
  %1757 = vmatpush2.bf16.msra.mxu0 0
  %1758 = vmatprep.subr.bf16.mxu0 0
  %1759 = vmatpush2.bf16.msra.mxu0 0
  %1760 = vmatprep.subr.bf16.mxu0 0
  %1761 = vmatpush2.bf16.msra.mxu0 0
  %1762 = vmatprep.mubr.bf16.mxu0 0
  %1763 = vmatmul.mubr.bf16.gmra.mxu0 %v1719
  %v1764 = vpop.f32.mrf.mxu0
  %v1765 = vadd.f32 0.0, %v1764
  %v1766 = vpop.f32.mrf.mxu0
  %v1767 = vpop.f32.mrf.mxu0
  %v1768 = vadd.f32 0.0, %v1767
  %v1769 = vpop.f32.mrf.mxu0
  %1770 = vmatprep.mubr.bf16.mxu0 0
  %1771 = vmatmul.mubr.bf16.gmra.mxu0 %v1722
  %v1772 = vpop.f32.mrf.mxu0
  %v1773 = vadd.f32 0.0, %v1772
  %v1774 = vpop.f32.mrf.mxu0
  %v1775 = vpop.f32.mrf.mxu0
  %v1776 = vadd.f32 0.0, %v1775
  %v1777 = vpop.f32.mrf.mxu0
  %1778 = vmatprep.mubr.bf16.mxu0 0
  %1779 = vmatmul.mubr.bf16.gmra.mxu0 %v1725
  %v1780 = vpop.f32.mrf.mxu0
  %v1781 = vadd.f32 0.0, %v1780
  %v1782 = vpop.f32.mrf.mxu0
  %v1783 = vpop.f32.mrf.mxu0
  %v1784 = vadd.f32 0.0, %v1783
  %v1785 = vpop.f32.mrf.mxu0
  %1786 = vmatprep.mubr.bf16.mxu0 0
  %1787 = vmatmul.mubr.bf16.gmra.mxu0 %v1728
  %v1788 = vpop.f32.mrf.mxu0
  %v1789 = vadd.f32 0.0, %v1788
  %v1790 = vpop.f32.mrf.mxu0
  %v1791 = vpop.f32.mrf.mxu0
  %v1792 = vadd.f32 0.0, %v1791
  %v1793 = vpop.f32.mrf.mxu0
  %1794 = vdwg.mxu0
  %v1795 = vadd.f32 %v1668, %v1765
  %v1796 = vadd.f32 %v1669, %v1768
  %v1797 = vadd.f32 %v1670, %v1773
  %v1798 = vadd.f32 %v1671, %v1776
  %v1799 = vadd.f32 %v1672, %v1781
  %v1800 = vadd.f32 %v1673, %v1784
  %v1801 = vadd.f32 %v1674, %v1789
  %v1802 = vadd.f32 %v1675, %v1792
  %s1803 = scalar_lea.vmem %s0, 448
  %v1804 = vld [vmem:[%s1803] sm:$0xf]
  %v1805 = vld [vmem:[%s1803 + $0x4] sm:$0xf]
  %v1806 = vld [vmem:[%s1803 + $0x8] sm:$0xf]
  %v1807 = vld [vmem:[%s1803 + $0xc] sm:$0xf]
  %v1808 = vld [vmem:[%s1803 + $0x10] sm:$0xf]
  %v1809 = vld [vmem:[%s1803 + $0x14] sm:$0xf]
  %v1810 = vld [vmem:[%s1803 + $0x18] sm:$0xf]
  %v1811 = vld [vmem:[%s1803 + $0x1c] sm:$0xf]
  %v1820 = vunpack.c.l.b16 %v1804
  %v1821 = vunpack.c.l.b16 %v1805
  %v1822 = vunpack.c.l.b16 %v1806
  %v1823 = vunpack.c.l.b16 %v1807
  %v1824 = vunpack.c.l.b16 %v1808
  %v1825 = vunpack.c.l.b16 %v1809
  %v1826 = vunpack.c.l.b16 %v1810
  %v1827 = vunpack.c.l.b16 %v1811
  %v1828 = vpack.c.b16 %v1821, %v1820
  %v1829 = vpack.c.b16 %v1823, %v1822
  %v1830 = vpack.c.b16 %v1825, %v1824
  %v1831 = vpack.c.b16 %v1827, %v1826
  %1832 = vrot.lane.b32.xlu0 %v75, 108
  %v1833 = vpop.permute.xlu0 %1832
  %1834 = vrot.lane.b32.xlu0 %v76, 108
  %v1835 = vpop.permute.xlu0 %1834
  %1836 = vrot.lane.b32.xlu0 %v77, 108
  %v1837 = vpop.permute.xlu0 %1836
  %1838 = vrot.lane.b32.xlu0 %v78, 108
  %v1839 = vpop.permute.xlu0 %1838
  %vm1840 = vcmask 883712
  %v1841 = vsel %vm1840, %v1833, %v1835
  %v1842 = vsel %vm1840, %v1837, %v1839
  %v1846 = vsel %vm92, %v1828, 0
  %v1849 = vsel %vm92, %v1829, 0
  %v1852 = vsel %vm92, %v1830, 0
  %v1855 = vsel %vm92, %v1831, 0
  %1857 = vmatprep.subr.bf16.mxu0 0
  %1858 = vmatpush1.bf16.msra.mxu0 0
  %1859 = vmatprep.subr.bf16.mxu0 0
  %1860 = vmatpush1.bf16.msra.mxu0 0
  %1861 = vmatprep.subr.bf16.mxu0 0
  %1862 = vmatpush1.bf16.msra.mxu0 0
  %1863 = vmatprep.subr.bf16.mxu0 0
  %1864 = vmatpush1.bf16.msra.mxu0 0
  %1865 = vmatprep.subr.bf16.mxu0 0
  %1866 = vmatpush1.bf16.msra.mxu0 0
  %1867 = vmatprep.subr.bf16.mxu0 0
  %1868 = vmatpush1.bf16.msra.mxu0 0
  %1869 = vmatprep.subr.bf16.mxu0 0
  %1870 = vmatpush1.bf16.msra.mxu0 %v1842
  %1871 = vmatprep.subr.bf16.mxu0 0
  %1872 = vmatpush1.bf16.msra.mxu0 %v1841
  %1873 = vmatprep.subr.bf16.mxu0 0
  %1874 = vmatpush2.bf16.msra.mxu0 0
  %1875 = vmatprep.subr.bf16.mxu0 0
  %1876 = vmatpush2.bf16.msra.mxu0 0
  %1877 = vmatprep.subr.bf16.mxu0 0
  %1878 = vmatpush2.bf16.msra.mxu0 0
  %1879 = vmatprep.subr.bf16.mxu0 0
  %1880 = vmatpush2.bf16.msra.mxu0 0
  %1881 = vmatprep.subr.bf16.mxu0 0
  %1882 = vmatpush2.bf16.msra.mxu0 0
  %1883 = vmatprep.subr.bf16.mxu0 0
  %1884 = vmatpush2.bf16.msra.mxu0 0
  %1885 = vmatprep.subr.bf16.mxu0 0
  %1886 = vmatpush2.bf16.msra.mxu0 0
  %1887 = vmatprep.subr.bf16.mxu0 0
  %1888 = vmatpush2.bf16.msra.mxu0 0
  %1889 = vmatprep.mubr.bf16.mxu0 0
  %1890 = vmatmul.mubr.bf16.gmra.mxu0 %v1846
  %v1891 = vpop.f32.mrf.mxu0
  %v1892 = vadd.f32 0.0, %v1891
  %v1893 = vpop.f32.mrf.mxu0
  %v1894 = vpop.f32.mrf.mxu0
  %v1895 = vadd.f32 0.0, %v1894
  %v1896 = vpop.f32.mrf.mxu0
  %1897 = vmatprep.mubr.bf16.mxu0 0
  %1898 = vmatmul.mubr.bf16.gmra.mxu0 %v1849
  %v1899 = vpop.f32.mrf.mxu0
  %v1900 = vadd.f32 0.0, %v1899
  %v1901 = vpop.f32.mrf.mxu0
  %v1902 = vpop.f32.mrf.mxu0
  %v1903 = vadd.f32 0.0, %v1902
  %v1904 = vpop.f32.mrf.mxu0
  %1905 = vmatprep.mubr.bf16.mxu0 0
  %1906 = vmatmul.mubr.bf16.gmra.mxu0 %v1852
  %v1907 = vpop.f32.mrf.mxu0
  %v1908 = vadd.f32 0.0, %v1907
  %v1909 = vpop.f32.mrf.mxu0
  %v1910 = vpop.f32.mrf.mxu0
  %v1911 = vadd.f32 0.0, %v1910
  %v1912 = vpop.f32.mrf.mxu0
  %1913 = vmatprep.mubr.bf16.mxu0 0
  %1914 = vmatmul.mubr.bf16.gmra.mxu0 %v1855
  %v1915 = vpop.f32.mrf.mxu0
  %v1916 = vadd.f32 0.0, %v1915
  %v1917 = vpop.f32.mrf.mxu0
  %v1918 = vpop.f32.mrf.mxu0
  %v1919 = vadd.f32 0.0, %v1918
  %v1920 = vpop.f32.mrf.mxu0
  %1921 = vdwg.mxu0
  %v1922 = vadd.f32 %v1795, %v1892
  %v1923 = vadd.f32 %v1796, %v1895
  %v1924 = vadd.f32 %v1797, %v1900
  %v1925 = vadd.f32 %v1798, %v1903
  %v1926 = vadd.f32 %v1799, %v1908
  %v1927 = vadd.f32 %v1800, %v1911
  %v1928 = vadd.f32 %v1801, %v1916
  %v1929 = vadd.f32 %v1802, %v1919
  %s1930 = scalar_lea.vmem %s0, 480
  %v1931 = vld [vmem:[%s1930] sm:$0xf]
  %v1932 = vld [vmem:[%s1930 + $0x4] sm:$0xf]
  %v1933 = vld [vmem:[%s1930 + $0x8] sm:$0xf]
  %v1934 = vld [vmem:[%s1930 + $0xc] sm:$0xf]
  %v1935 = vld [vmem:[%s1930 + $0x10] sm:$0xf]
  %v1936 = vld [vmem:[%s1930 + $0x14] sm:$0xf]
  %v1937 = vld [vmem:[%s1930 + $0x18] sm:$0xf]
  %v1938 = vld [vmem:[%s1930 + $0x1c] sm:$0xf]
  %v1947 = vunpack.c.l.b16 %v1931
  %v1948 = vunpack.c.l.b16 %v1932
  %v1949 = vunpack.c.l.b16 %v1933
  %v1950 = vunpack.c.l.b16 %v1934
  %v1951 = vunpack.c.l.b16 %v1935
  %v1952 = vunpack.c.l.b16 %v1936
  %v1953 = vunpack.c.l.b16 %v1937
  %v1954 = vunpack.c.l.b16 %v1938
  %v1955 = vpack.c.b16 %v1948, %v1947
  %v1956 = vpack.c.b16 %v1950, %v1949
  %v1957 = vpack.c.b16 %v1952, %v1951
  %v1958 = vpack.c.b16 %v1954, %v1953
  %1959 = vrot.lane.b32.xlu0 %v75, 107
  %v1960 = vpop.permute.xlu0 %1959
  %1961 = vrot.lane.b32.xlu0 %v76, 107
  %v1962 = vpop.permute.xlu0 %1961
  %1963 = vrot.lane.b32.xlu0 %v77, 107
  %v1964 = vpop.permute.xlu0 %1963
  %1965 = vrot.lane.b32.xlu0 %v78, 107
  %v1966 = vpop.permute.xlu0 %1965
  %vm1967 = vcmask 875520
  %v1968 = vsel %vm1967, %v1960, %v1962
  %v1969 = vsel %vm1967, %v1964, %v1966
  %v1973 = vsel %vm92, %v1955, 0
  %v1976 = vsel %vm92, %v1956, 0
  %v1979 = vsel %vm92, %v1957, 0
  %v1982 = vsel %vm92, %v1958, 0
  %1984 = vmatprep.subr.bf16.mxu0 0
  %1985 = vmatpush1.bf16.msra.mxu0 0
  %1986 = vmatprep.subr.bf16.mxu0 0
  %1987 = vmatpush1.bf16.msra.mxu0 0
  %1988 = vmatprep.subr.bf16.mxu0 0
  %1989 = vmatpush1.bf16.msra.mxu0 0
  %1990 = vmatprep.subr.bf16.mxu0 0
  %1991 = vmatpush1.bf16.msra.mxu0 0
  %1992 = vmatprep.subr.bf16.mxu0 0
  %1993 = vmatpush1.bf16.msra.mxu0 0
  %1994 = vmatprep.subr.bf16.mxu0 0
  %1995 = vmatpush1.bf16.msra.mxu0 0
  %1996 = vmatprep.subr.bf16.mxu0 0
  %1997 = vmatpush1.bf16.msra.mxu0 %v1969
  %1998 = vmatprep.subr.bf16.mxu0 0
  %1999 = vmatpush1.bf16.msra.mxu0 %v1968
  %2000 = vmatprep.subr.bf16.mxu0 0
  %2001 = vmatpush2.bf16.msra.mxu0 0
  %2002 = vmatprep.subr.bf16.mxu0 0
  %2003 = vmatpush2.bf16.msra.mxu0 0
  %2004 = vmatprep.subr.bf16.mxu0 0
  %2005 = vmatpush2.bf16.msra.mxu0 0
  %2006 = vmatprep.subr.bf16.mxu0 0
  %2007 = vmatpush2.bf16.msra.mxu0 0
  %2008 = vmatprep.subr.bf16.mxu0 0
  %2009 = vmatpush2.bf16.msra.mxu0 0
  %2010 = vmatprep.subr.bf16.mxu0 0
  %2011 = vmatpush2.bf16.msra.mxu0 0
  %2012 = vmatprep.subr.bf16.mxu0 0
  %2013 = vmatpush2.bf16.msra.mxu0 0
  %2014 = vmatprep.subr.bf16.mxu0 0
  %2015 = vmatpush2.bf16.msra.mxu0 0
  %2016 = vmatprep.mubr.bf16.mxu0 0
  %2017 = vmatmul.mubr.bf16.gmra.mxu0 %v1973
  %v2018 = vpop.f32.mrf.mxu0
  %v2019 = vadd.f32 0.0, %v2018
  %v2020 = vpop.f32.mrf.mxu0
  %v2021 = vpop.f32.mrf.mxu0
  %v2022 = vadd.f32 0.0, %v2021
  %v2023 = vpop.f32.mrf.mxu0
  %2024 = vmatprep.mubr.bf16.mxu0 0
  %2025 = vmatmul.mubr.bf16.gmra.mxu0 %v1976
  %v2026 = vpop.f32.mrf.mxu0
  %v2027 = vadd.f32 0.0, %v2026
  %v2028 = vpop.f32.mrf.mxu0
  %v2029 = vpop.f32.mrf.mxu0
  %v2030 = vadd.f32 0.0, %v2029
  %v2031 = vpop.f32.mrf.mxu0
  %2032 = vmatprep.mubr.bf16.mxu0 0
  %2033 = vmatmul.mubr.bf16.gmra.mxu0 %v1979
  %v2034 = vpop.f32.mrf.mxu0
  %v2035 = vadd.f32 0.0, %v2034
  %v2036 = vpop.f32.mrf.mxu0
  %v2037 = vpop.f32.mrf.mxu0
  %v2038 = vadd.f32 0.0, %v2037
  %v2039 = vpop.f32.mrf.mxu0
  %2040 = vmatprep.mubr.bf16.mxu0 0
  %2041 = vmatmul.mubr.bf16.gmra.mxu0 %v1982
  %v2042 = vpop.f32.mrf.mxu0
  %v2043 = vadd.f32 0.0, %v2042
  %v2044 = vpop.f32.mrf.mxu0
  %v2045 = vpop.f32.mrf.mxu0
  %v2046 = vadd.f32 0.0, %v2045
  %v2047 = vpop.f32.mrf.mxu0
  %2048 = vdwg.mxu0
  %v2049 = vadd.f32 %v1922, %v2019
  %v2050 = vadd.f32 %v1923, %v2022
  %v2051 = vadd.f32 %v1924, %v2027
  %v2052 = vadd.f32 %v1925, %v2030
  %v2053 = vadd.f32 %v1926, %v2035
  %v2054 = vadd.f32 %v1927, %v2038
  %v2055 = vadd.f32 %v1928, %v2043
  %v2056 = vadd.f32 %v1929, %v2046
  %v2057 = vld [vmem:[%s3] sm:$0xff]
  %v2058 = vld [vmem:[%s3 + $0x8] sm:$0xff]
  %v2059 = vld [vmem:[%s3 + $0x10] sm:$0xff]
  %v2060 = vld [vmem:[%s3 + $0x18] sm:$0xff]
  %v2061 = vld [vmem:[%s3 + $0x20] sm:$0xff]
  %v2062 = vld [vmem:[%s3 + $0x28] sm:$0xff]
  %v2063 = vld [vmem:[%s3 + $0x30] sm:$0xff]
  %v2064 = vld [vmem:[%s3 + $0x38] sm:$0xff]
  %v2065 = vld [vmem:[%s2] sm:$0x1]
  %v2067 = vlaneseq
  %v2068 = vshrl.u32 %v2067, 7
  %v2069 = vsub.s32 0, %v2068
  %v2070 = vrot.slane %v2065, %v2069
  %v2072 = vmul.f32 %v2049, %v2070
  %v2073 = vmul.f32 %v2050, %v2070
  %v2074 = vmul.f32 %v2051, %v2070
  %v2075 = vmul.f32 %v2052, %v2070
  %v2076 = vmul.f32 %v2053, %v2070
  %v2077 = vmul.f32 %v2054, %v2070
  %v2078 = vmul.f32 %v2055, %v2070
  %v2079 = vmul.f32 %v2056, %v2070
  %2080 = vadd.xlane.f32.xlu0 %v2072
  %v2081 = vpop.xlane.xlu0 %2080
  %2082 = vadd.xlane.f32.xlu0 %v2073
  %v2083 = vpop.xlane.xlu0 %2082
  %2084 = vadd.xlane.f32.xlu0 %v2074
  %v2085 = vpop.xlane.xlu0 %2084
  %2086 = vadd.xlane.f32.xlu0 %v2075
  %v2087 = vpop.xlane.xlu0 %2086
  %2088 = vadd.xlane.f32.xlu0 %v2076
  %v2089 = vpop.xlane.xlu0 %2088
  %2090 = vadd.xlane.f32.xlu0 %v2077
  %v2091 = vpop.xlane.xlu0 %2090
  %2092 = vadd.xlane.f32.xlu0 %v2078
  %v2093 = vpop.xlane.xlu0 %2092
  %2094 = vadd.xlane.f32.xlu0 %v2079
  %v2095 = vpop.xlane.xlu0 %2094
  %v2096 = vmul.f32 %v2081, 0.055555556
  %v2097 = vmul.f32 %v2083, 0.055555556
  %v2098 = vmul.f32 %v2085, 0.055555556
  %v2099 = vmul.f32 %v2087, 0.055555556
  %v2100 = vmul.f32 %v2089, 0.055555556
  %v2101 = vmul.f32 %v2091, 0.055555556
  %v2102 = vmul.f32 %v2093, 0.055555556
  %v2103 = vmul.f32 %v2095, 0.055555556
  %v2104 = vmul.f32 %v2072, %v2049
  %v2105 = vmul.f32 %v2073, %v2050
  %v2106 = vmul.f32 %v2074, %v2051
  %v2107 = vmul.f32 %v2075, %v2052
  %v2108 = vmul.f32 %v2076, %v2053
  %v2109 = vmul.f32 %v2077, %v2054
  %v2110 = vmul.f32 %v2078, %v2055
  %v2111 = vmul.f32 %v2079, %v2056
  %2112 = vadd.xlane.f32.xlu0 %v2104
  %v2113 = vpop.xlane.xlu0 %2112
  %2114 = vadd.xlane.f32.xlu0 %v2105
  %v2115 = vpop.xlane.xlu0 %2114
  %2116 = vadd.xlane.f32.xlu0 %v2106
  %v2117 = vpop.xlane.xlu0 %2116
  %2118 = vadd.xlane.f32.xlu0 %v2107
  %v2119 = vpop.xlane.xlu0 %2118
  %2120 = vadd.xlane.f32.xlu0 %v2108
  %v2121 = vpop.xlane.xlu0 %2120
  %2122 = vadd.xlane.f32.xlu0 %v2109
  %v2123 = vpop.xlane.xlu0 %2122
  %2124 = vadd.xlane.f32.xlu0 %v2110
  %v2125 = vpop.xlane.xlu0 %2124
  %2126 = vadd.xlane.f32.xlu0 %v2111
  %v2127 = vpop.xlane.xlu0 %2126
  %v2128 = vmul.f32 %v2113, 0.055555556
  %v2129 = vmul.f32 %v2115, 0.055555556
  %v2130 = vmul.f32 %v2117, 0.055555556
  %v2131 = vmul.f32 %v2119, 0.055555556
  %v2132 = vmul.f32 %v2121, 0.055555556
  %v2133 = vmul.f32 %v2123, 0.055555556
  %v2134 = vmul.f32 %v2125, 0.055555556
  %v2135 = vmul.f32 %v2127, 0.055555556
  %v2136 = vmul.f32 %v2096, %v2096
  %v2137 = vmul.f32 %v2097, %v2097
  %v2138 = vmul.f32 %v2098, %v2098
  %v2139 = vmul.f32 %v2099, %v2099
  %v2140 = vmul.f32 %v2100, %v2100
  %v2141 = vmul.f32 %v2101, %v2101
  %v2142 = vmul.f32 %v2102, %v2102
  %v2143 = vmul.f32 %v2103, %v2103
  %v2144 = vsub.f32 %v2128, %v2136
  %v2145 = vsub.f32 %v2129, %v2137
  %v2146 = vsub.f32 %v2130, %v2138
  %v2147 = vsub.f32 %v2131, %v2139
  %v2148 = vsub.f32 %v2132, %v2140
  %v2149 = vsub.f32 %v2133, %v2141
  %v2150 = vsub.f32 %v2134, %v2142
  %v2151 = vsub.f32 %v2135, %v2143
  %v2152 = vsub.f32 %v2049, %v2096
  %v2153 = vsub.f32 %v2050, %v2097
  %v2154 = vsub.f32 %v2051, %v2098
  %v2155 = vsub.f32 %v2052, %v2099
  %v2156 = vsub.f32 %v2053, %v2100
  %v2157 = vsub.f32 %v2054, %v2101
  %v2158 = vsub.f32 %v2055, %v2102
  %v2159 = vsub.f32 %v2056, %v2103
  %v2160 = vadd.f32 %v2144, 1e-05
  %v2161 = vadd.f32 %v2145, 1e-05
  %v2162 = vadd.f32 %v2146, 1e-05
  %v2163 = vadd.f32 %v2147, 1e-05
  %v2164 = vadd.f32 %v2148, 1e-05
  %v2165 = vadd.f32 %v2149, 1e-05
  %v2166 = vadd.f32 %v2150, 1e-05
  %v2167 = vadd.f32 %v2151, 1e-05
  %v2168 = vrsqrt.pop %v2160
  %v2169 = vrsqrt.pop %v2161
  %v2170 = vrsqrt.pop %v2162
  %v2171 = vrsqrt.pop %v2163
  %v2172 = vrsqrt.pop %v2164
  %v2173 = vrsqrt.pop %v2165
  %v2174 = vrsqrt.pop %v2166
  %v2175 = vrsqrt.pop %v2167
  %v2176 = vmul.f32 %v2152, %v2168
  %v2177 = vmul.f32 %v2153, %v2169
  %v2178 = vmul.f32 %v2154, %v2170
  %v2179 = vmul.f32 %v2155, %v2171
  %v2180 = vmul.f32 %v2156, %v2172
  %v2181 = vmul.f32 %v2157, %v2173
  %v2182 = vmul.f32 %v2158, %v2174
  %v2183 = vmul.f32 %v2159, %v2175
  %2185 = vset.pattern.permute.xlu0 1
  %2186 = vperm.xlu0 %2185, %v2057
  %v2187 = vpop.permute.xlu0 %2186
  %2190 = vset.pattern.permute.xlu0 1
  %2191 = vperm.xlu0 %2190, %v2058
  %v2192 = vpop.permute.xlu0 %2191
  %2195 = vset.pattern.permute.xlu0 1
  %2196 = vperm.xlu0 %2195, %v2059
  %v2197 = vpop.permute.xlu0 %2196
  %2200 = vset.pattern.permute.xlu0 1
  %2201 = vperm.xlu0 %2200, %v2060
  %v2202 = vpop.permute.xlu0 %2201
  %2205 = vset.pattern.permute.xlu0 1
  %2206 = vperm.xlu0 %2205, %v2061
  %v2207 = vpop.permute.xlu0 %2206
  %2210 = vset.pattern.permute.xlu0 1
  %2211 = vperm.xlu0 %2210, %v2062
  %v2212 = vpop.permute.xlu0 %2211
  %2215 = vset.pattern.permute.xlu0 1
  %2216 = vperm.xlu0 %2215, %v2063
  %v2217 = vpop.permute.xlu0 %2216
  %2220 = vset.pattern.permute.xlu0 1
  %2221 = vperm.xlu0 %2220, %v2064
  %v2222 = vpop.permute.xlu0 %2221
  %v2224 = vmul.f32 %v2176, %v2187
  %v2225 = vmul.f32 %v2177, %v2192
  %v2226 = vmul.f32 %v2178, %v2197
  %v2227 = vmul.f32 %v2179, %v2202
  %v2228 = vmul.f32 %v2180, %v2207
  %v2229 = vmul.f32 %v2181, %v2212
  %v2230 = vmul.f32 %v2182, %v2217
  %v2231 = vmul.f32 %v2183, %v2222
  %2232 = vset.pattern.permute.xlu0 2
  %2233 = vperm.xlu0 %2232, %v2057
  %v2234 = vpop.permute.xlu0 %2233
  %2236 = vset.pattern.permute.xlu0 2
  %2237 = vperm.xlu0 %2236, %v2058
  %v2238 = vpop.permute.xlu0 %2237
  %2240 = vset.pattern.permute.xlu0 2
  %2241 = vperm.xlu0 %2240, %v2059
  %v2242 = vpop.permute.xlu0 %2241
  %2244 = vset.pattern.permute.xlu0 2
  %2245 = vperm.xlu0 %2244, %v2060
  %v2246 = vpop.permute.xlu0 %2245
  %2248 = vset.pattern.permute.xlu0 2
  %2249 = vperm.xlu0 %2248, %v2061
  %v2250 = vpop.permute.xlu0 %2249
  %2252 = vset.pattern.permute.xlu0 2
  %2253 = vperm.xlu0 %2252, %v2062
  %v2254 = vpop.permute.xlu0 %2253
  %2256 = vset.pattern.permute.xlu0 2
  %2257 = vperm.xlu0 %2256, %v2063
  %v2258 = vpop.permute.xlu0 %2257
  %2260 = vset.pattern.permute.xlu0 2
  %2261 = vperm.xlu0 %2260, %v2064
  %v2262 = vpop.permute.xlu0 %2261
  %v2264 = vadd.f32 %v2224, %v2234
  %v2265 = vadd.f32 %v2225, %v2238
  %v2266 = vadd.f32 %v2226, %v2242
  %v2267 = vadd.f32 %v2227, %v2246
  %v2268 = vadd.f32 %v2228, %v2250
  %v2269 = vadd.f32 %v2229, %v2254
  %v2270 = vadd.f32 %v2230, %v2258
  %v2271 = vadd.f32 %v2231, %v2262
  %vm2272 = vcmp.ge.f32.partialorder %v2264, 0.0
  %vm2273 = vcmp.ge.f32.partialorder %v2265, 0.0
  %vm2274 = vcmp.ge.f32.partialorder %v2266, 0.0
  %vm2275 = vcmp.ge.f32.partialorder %v2267, 0.0
  %vm2276 = vcmp.ge.f32.partialorder %v2268, 0.0
  %vm2277 = vcmp.ge.f32.partialorder %v2269, 0.0
  %vm2278 = vcmp.ge.f32.partialorder %v2270, 0.0
  %vm2279 = vcmp.ge.f32.partialorder %v2271, 0.0
  %v2280 = vmul.f32 %v2264, 0.2
  %v2281 = vmul.f32 %v2265, 0.2
  %v2282 = vmul.f32 %v2266, 0.2
  %v2283 = vmul.f32 %v2267, 0.2
  %v2284 = vmul.f32 %v2268, 0.2
  %v2285 = vmul.f32 %v2269, 0.2
  %v2286 = vmul.f32 %v2270, 0.2
  %v2287 = vmul.f32 %v2271, 0.2
  %v2288 = vsel %vm2272, %v2264, %v2280
  %v2289 = vsel %vm2273, %v2265, %v2281
  %v2290 = vsel %vm2274, %v2266, %v2282
  %v2291 = vsel %vm2275, %v2267, %v2283
  %v2292 = vsel %vm2276, %v2268, %v2284
  %v2293 = vsel %vm2277, %v2269, %v2285
  %v2294 = vsel %vm2278, %v2270, %v2286
  %v2295 = vsel %vm2279, %v2271, %v2287
  %v2296 = vpack.c.bf16 %v2289, %v2288
  %v2297 = vpack.c.bf16 %v2291, %v2290
  %v2298 = vpack.c.bf16 %v2293, %v2292
  %v2299 = vpack.c.bf16 %v2295, %v2294
  %v2304 = vunpack.c.l.b16 %v2296
  %v2305 = vunpack.c.h.b16 %v2296
  %v2306 = vunpack.c.l.b16 %v2297
  %v2307 = vunpack.c.h.b16 %v2297
  %v2308 = vunpack.c.l.b16 %v2298
  %v2309 = vunpack.c.h.b16 %v2298
  %v2310 = vunpack.c.l.b16 %v2299
  %v2311 = vunpack.c.h.b16 %v2299
  %v2312 = vpack.c.b16 %v2304, %v2304
  %v2313 = vpack.c.b16 %v2305, %v2305
  %v2314 = vpack.c.b16 %v2306, %v2306
  %v2315 = vpack.c.b16 %v2307, %v2307
  %v2316 = vpack.c.b16 %v2308, %v2308
  %v2317 = vpack.c.b16 %v2309, %v2309
  %v2318 = vpack.c.b16 %v2310, %v2310
  %v2319 = vpack.c.b16 %v2311, %v2311
  %2328 = vst [vmem:[%s4] sm:$0xf] %v2312
  %2329 = vst [vmem:[%s4 + $0x4] sm:$0xf] %v2313
  %2330 = vst [vmem:[%s4 + $0x8] sm:$0xf] %v2314
  %2331 = vst [vmem:[%s4 + $0xc] sm:$0xf] %v2315
  %2332 = vst [vmem:[%s4 + $0x10] sm:$0xf] %v2316
  %2333 = vst [vmem:[%s4 + $0x14] sm:$0xf] %v2317
  %2334 = vst [vmem:[%s4 + $0x18] sm:$0xf] %v2318
  %2335 = vst [vmem:[%s4 + $0x1c] sm:$0xf] %v2319
  // Predicated region
  $region18: #{nlayer_discriminator_forward.8} parent=0 // pred_check
    _
  $region19: #{nlayer_discriminator_forward.8} parent=0 // pred_check_branch
    %2337 = sbr.rel (0) target = $region21
  $region20: #{nlayer_discriminator_forward.8} parent=0 // pred_region
    _
  $region21: #{nlayer_discriminator_forward.8} parent=0 // pred_fallthru
    _
  // Predicated region
  $region22: #{nlayer_discriminator_forward.8} parent=0 // pred_check
    _
  $region23: #{nlayer_discriminator_forward.8} parent=0 // pred_check_branch
    %2339 = sbr.rel (0) target = $region25
  $region24: #{nlayer_discriminator_forward.8} parent=0 // pred_region
    _
  $region25: #{nlayer_discriminator_forward.8} parent=0 // pred_fallthru
    _

</llo_original>
